<compile_context>
chip_gen: v7x
topology: tpu7x:2x2x1
jax: 0.10.0
libtpu: 0.0.40
codegen_flags: <defaults>
</compile_context>

<pallas_src>
import math
import jax
import jax.numpy as jnp
from jax import lax
from jax.experimental import pallas as pl
from jax.experimental.pallas import tpu as pltpu

NUM_FREQ = 20
FEAT_DIM = 64
NUM_HEADS = 8
HEAD_DIM = FEAT_DIM // NUM_HEADS
ATTN_SCALE = 1.0 / math.sqrt(HEAD_DIM)
LN_EPS = 1e-5
NEG_INF = -1e30

# ---------- packed row-vector table (every <=64-wide vector, zero-padded) ----------
_ROW_NAMES = (
    [f"conv_b{s}" for s in range(3)]
    + [f"freq_w{s}" for s in range(3)]
    + [f"conv_w{s}_{t}" for s in range(3) for t in range(3)]
    + [f"mlp_b1_{s}" for s in range(3)]
    + [f"ln1_g{s}" for s in range(3)]
    + [f"ln1_b{s}" for s in range(3)]
    + [f"mlp_b2_{s}" for s in range(3)]
    + [f"ln2_g{s}" for s in range(3)]
    + [f"ln2_b{s}" for s in range(3)]
    + [f"mlp_b3_{s}" for s in range(3)]
    + [f"sn_g{s}" for s in range(3)]
    + [f"sn_b{s}" for s in range(3)]
    + [f"pos{s}" for s in range(3)]
    + [f"fsw{s}" for s in range(3)]
    + ["attn_bias", "attn_ln_g", "attn_ln_b", "attn_proj_b",
       "st_b", "st_ln_g", "st_ln_b",
       "fin_b", "fin_ln_g", "fin_ln_b",
       "bb_b1", "bb_b2",
       "fc_b", "fc_ln_g", "fc_ln_b"]
)
ROW = {n: i for i, n in enumerate(_ROW_NAMES)}
NUM_ROWS = ((len(_ROW_NAMES) + 7) // 8) * 8

# ---------- packed (64,64) weight stack indices ----------
W_MLP3 = 0          # + s  (3 entries)
W_ATTN_PROJ = 3
W_ST_A, W_ST_B = 4, 5
W_FIN_A, W_FIN_B = 6, 7
W_BB2 = 8
W_FC_A, W_FC_B = 9, 10
NUM_W64 = 11

PARAM_ORDER = ["rows", "w64", "mlp_w1", "mlp_w2", "bb_w1", "qk_wt", "qk_bt", "wvo"]


def _gelu(x):
    # exact (erf-based) GELU, matching torch.nn.GELU default
    return 0.5 * x * (1.0 + lax.erf(x * (1.0 / math.sqrt(2.0))))


def _layernorm(x, g, b):
    mu = jnp.mean(x, axis=-1, keepdims=True)
    var = jnp.mean((x - mu) ** 2, axis=-1, keepdims=True)
    return (x - mu) * lax.rsqrt(var + LN_EPS) * g + b


def _mm(a, b):
    return jnp.dot(a, b, preferred_element_type=jnp.float32)


def _make_kernel(p_real, p_pad):
    """Kernel factory; P sizes are compile-time constants (Python closure)."""
    S = 3 * p_pad  # cross-scale sequence length

    def kernel(
        x_ri_ref, x_flat_ref,
        rows_ref, w64_ref, mlp_w1_ref, mlp_w2_ref, bb_w1_ref,
        qk_wt_ref, qk_bt_ref, wvo_ref,
        out_ref,
        stacked_ref, sb_ref, qkt_ref, acc_ref,
    ):
        rows = rows_ref

        re = x_ri_ref[0, 0]                       # (P_pad, 20)
        im = x_ri_ref[0, 1]
        mag = jnp.sqrt(re * re + im * im + 1e-8)

        row_ids = lax.broadcasted_iota(jnp.int32, (p_pad, 1), 0)
        if p_pad != p_real:
            # zero pad rows so the conv halo of the last real row is exactly 0
            mag = jnp.where(row_ids < p_real, mag, 0.0)

        # halos for depthwise Conv1d(kernel=3, pad=1) over the pairs axis,
        # via XLU sublane rotations + boundary masks (no concat relayouts).
        mag_prev = pltpu.roll(mag, 1, axis=0)
        mag_prev = jnp.where(row_ids == 0, 0.0, mag_prev)
        mag_next = pltpu.roll(mag, p_pad - 1, axis=0)
        mag_next = jnp.where(row_ids == p_real - 1, 0.0, mag_next)

        # --- per-scale processors (4s, 8s, 16s) -> VMEM scratch (3*P_pad, 64) ---
        for s in range(3):
            t = (mag_prev * rows[ROW[f"conv_w{s}_0"], :NUM_FREQ]
                 + mag * rows[ROW[f"conv_w{s}_1"], :NUM_FREQ]
                 + mag_next * rows[ROW[f"conv_w{s}_2"], :NUM_FREQ]
                 + rows[ROW[f"conv_b{s}"], :NUM_FREQ])
            t = t * rows[ROW[f"freq_w{s}"], :NUM_FREQ]      # frequency weighting

            h = _gelu(_mm(t, mlp_w1_ref[s]) + rows[ROW[f"mlp_b1_{s}"], :32])
            h = _layernorm(h, rows[ROW[f"ln1_g{s}"], :32], rows[ROW[f"ln1_b{s}"], :32])
            h = _gelu(_mm(h, mlp_w2_ref[s]) + rows[ROW[f"mlp_b2_{s}"]])
            h = _layernorm(h, rows[ROW[f"ln2_g{s}"]], rows[ROW[f"ln2_b{s}"]])
            h = _mm(h, w64_ref[W_MLP3 + s]) + rows[ROW[f"mlp_b3_{s}"]]
            h = _layernorm(h, rows[ROW[f"sn_g{s}"]], rows[ROW[f"sn_b{s}"]])
            # add positional encoding here and store directly (no concat)
            stacked_ref[s * p_pad:(s + 1) * p_pad, :] = h + rows[ROW[f"pos{s}"]]

        # --- cross-scale attention ---
        stacked = stacked_ref[...]                            # (S, 64) f32
        sb_ref[...] = stacked.astype(jnp.bfloat16)            # V input (bf16 scratch)

        # Q^T / K^T projection computed directly in transposed (128, S) layout.
        # ATTN_SCALE is already folded into the Q half of the weights/bias.
        qkt = lax.dot_general(qk_wt_ref[...], stacked,
                              (((1,), (1,)), ((), ())),
                              preferred_element_type=jnp.float32)
        qkt_ref[...] = qkt + qk_bt_ref[...]                   # (128, S)

        if p_pad != p_real:
            key_pos = lax.broadcasted_iota(jnp.int32, (1, S), 1)
            key_bias = jnp.where((key_pos % p_pad) < p_real, 0.0, NEG_INF)
        else:
            key_bias = None

        acc_ref[...] = jnp.zeros_like(acc_ref)

        def head_body(hd, carry):
            lo = pl.multiple_of(hd * HEAD_DIM, HEAD_DIM)
            ko = pl.multiple_of(FEAT_DIM + hd * HEAD_DIM, HEAD_DIM)
            # aligned sublane slices of the transposed QK scratch
            q_h = jnp.transpose(qkt_ref[pl.ds(lo, HEAD_DIM), :]).astype(jnp.bfloat16)  # (S,8)
            k_t = qkt_ref[pl.ds(ko, HEAD_DIM), :].astype(jnp.bfloat16)                 # (8,S)

            sc = jnp.dot(q_h, k_t, preferred_element_type=jnp.float32)                 # (S,S)
            if key_bias is not None:
                sc = sc + key_bias                            # mask padded keys
            sc = sc - jnp.max(sc, axis=-1, keepdims=True)
            e = jnp.exp(sc)
            l = jnp.sum(e, axis=-1, keepdims=True)

            # fused V * W_out projection for this head (weights pre-fused in wrapper)
            vo = jnp.dot(sb_ref[...], wvo_ref[hd],
                         preferred_element_type=jnp.float32)                           # (S,64)
            oh = jnp.dot(e.astype(jnp.bfloat16), vo.astype(jnp.bfloat16),
                         preferred_element_type=jnp.float32)                           # (S,64)
            # normalize AFTER the AV matmul; exact reciprocal (parity with torch)
            acc_ref[...] += oh * pl.reciprocal(l)
            return carry

        lax.fori_loop(0, NUM_HEADS, head_body, 0)

        # fused (b_v @ W_out + b_out) bias + residual (re-read stacked from VMEM)
        attn = acc_ref[...] + rows[ROW["attn_bias"]] + stacked_ref[...]
        attn = _layernorm(attn, rows[ROW["attn_ln_g"]], rows[ROW["attn_ln_b"]])
        attn = _mm(attn, w64_ref[W_ATTN_PROJ]) + rows[ROW["attn_proj_b"]]

        # aligned sublane splits (P_pad is a multiple of 16 -> free views)
        f4 = attn[0:p_pad]
        f8 = attn[p_pad:2 * p_pad]
        f16 = attn[2 * p_pad:3 * p_pad]

        # --- hierarchical multi-scale fusion (split-K, no lane concats) ---
        w4 = f4 * rows[ROW["fsw0"]]
        w8 = f8 * rows[ROW["fsw1"]]
        w16 = f16 * rows[ROW["fsw2"]]

        st = _gelu(_mm(w4, w64_ref[W_ST_A]) + _mm(w8, w64_ref[W_ST_B])
                   + rows[ROW["st_b"]])
        st = _layernorm(st, rows[ROW["st_ln_g"]], rows[ROW["st_ln_b"]])

        fused = _gelu(_mm(st, w64_ref[W_FIN_A]) + _mm(w16, w64_ref[W_FIN_B])
                      + rows[ROW["fin_b"]])
        fused = _layernorm(fused, rows[ROW["fin_ln_g"]], rows[ROW["fin_ln_b"]])

        # --- single-scale backbone: Linear(40,64) -> GELU -> Linear(64,64) ---
        xf = x_flat_ref[0]                                    # (P_pad, 40)
        ss = _gelu(_mm(xf, bb_w1_ref[...]) + rows[ROW["bb_b1"]])
        ss = _mm(ss, w64_ref[W_BB2]) + rows[ROW["bb_b2"]]

        # --- final combination (split-K, no lane concat) ---
        out = _gelu(_mm(fused, w64_ref[W_FC_A]) + _mm(ss, w64_ref[W_FC_B])
                    + rows[ROW["fc_b"]])
        out = _layernorm(out, rows[ROW["fc_ln_g"]], rows[ROW["fc_ln_b"]])

        out_ref[0] = out.astype(out_ref.dtype)

    return kernel


def _prepare_params(p):
    """Wrapper-side layout plumbing: pack rows/weights, fold scale, fuse Wv.Wout."""
    def row(v):
        v = jnp.asarray(v, jnp.float32).reshape(-1)
        return jnp.pad(v, (0, FEAT_DIM - v.shape[0]))

    vals = {}
    for s in range(3):
        vals[f"conv_b{s}"] = p["conv_b"][s]
        vals[f"freq_w{s}"] = p["freq_w"][s]
        for t in range(3):
            vals[f"conv_w{s}_{t}"] = p["conv_w"][s][:, t]
        vals[f"mlp_b1_{s}"] = p["mlp_b1"][s]
        vals[f"ln1_g{s}"] = p["ln1_g"][s]
        vals[f"ln1_b{s}"] = p["ln1_b"][s]
        vals[f"mlp_b2_{s}"] = p["mlp_b2"][s]
        vals[f"ln2_g{s}"] = p["ln2_g"][s]
        vals[f"ln2_b{s}"] = p["ln2_b"][s]
        vals[f"mlp_b3_{s}"] = p["mlp_b3"][s]
        vals[f"sn_g{s}"] = p["sn_g"][s]
        vals[f"sn_b{s}"] = p["sn_b"][s]
        vals[f"pos{s}"] = p["pos_enc"][s]
        vals[f"fsw{s}"] = p["fusion_sw"][s]

    wq, wk, wv = p["in_proj_w"][0], p["in_proj_w"][1], p["in_proj_w"][2]
    bq, bk, bv = p["in_proj_b"][0], p["in_proj_b"][1], p["in_proj_b"][2]
    w_out = p["attn_out_w"]

    # b_v folded through W_out (softmax rows sum to 1) + output bias
    vals["attn_bias"] = bv @ w_out + p["attn_out_b"][0]
    vals["attn_ln_g"] = p["attn_ln_g"][0]
    vals["attn_ln_b"] = p["attn_ln_b"][0]
    vals["attn_proj_b"] = p["attn_proj_b"][0]
    vals["st_b"] = p["st_b"][0]
    vals["st_ln_g"] = p["st_ln_g"][0]
    vals["st_ln_b"] = p["st_ln_b"][0]
    vals["fin_b"] = p["fin_b"][0]
    vals["fin_ln_g"] = p["fin_ln_g"][0]
    vals["fin_ln_b"] = p["fin_ln_b"][0]
    vals["bb_b1"] = p["bb_b1"][0]
    vals["bb_b2"] = p["bb_b2"][0]
    vals["fc_b"] = p["fc_b"][0]
    vals["fc_ln_g"] = p["fc_ln_g"][0]
    vals["fc_ln_b"] = p["fc_ln_b"][0]

    rows = [row(vals[name]) for name in _ROW_NAMES]
    rows += [jnp.zeros((FEAT_DIM,), jnp.float32)] * (NUM_ROWS - len(rows))
    rows = jnp.stack(rows)

    w64 = jnp.stack([
        p["mlp_w3"][0], p["mlp_w3"][1], p["mlp_w3"][2],
        p["attn_proj_w"],
        p["st_w"][:FEAT_DIM], p["st_w"][FEAT_DIM:],
        p["fin_w"][:FEAT_DIM], p["fin_w"][FEAT_DIM:],
        p["bb_w2"],
        p["fc_w"][:FEAT_DIM], p["fc_w"][FEAT_DIM:],
    ]).astype(jnp.float32)

    # QK-only projection, ATTN_SCALE folded into Q; supplied pre-transposed
    qk_w = jnp.concatenate([wq * ATTN_SCALE, wk], axis=1)          # (64, 128)
    qk_wt = jnp.transpose(qk_w)                                    # (128, 64)
    qk_bt = jnp.concatenate([bq * ATTN_SCALE, bk]).reshape(2 * FEAT_DIM, 1)

    # per-head fused V -> out-projection weights
    wvo = jnp.stack([
        wv[:, h * HEAD_DIM:(h + 1) * HEAD_DIM]
        @ w_out[h * HEAD_DIM:(h + 1) * HEAD_DIM, :]
        for h in range(NUM_HEADS)
    ]).astype(jnp.bfloat16)                                        # (8, 64, 64)

    return {
        "rows": rows,
        "w64": w64,
        "mlp_w1": p["mlp_w1"].astype(jnp.float32),   # (3, 20, 32)
        "mlp_w2": p["mlp_w2"].astype(jnp.float32),   # (3, 32, 64)
        "bb_w1": p["bb_w1"].astype(jnp.float32),     # (40, 64)
        "qk_wt": qk_wt.astype(jnp.float32),
        "qk_bt": qk_bt.astype(jnp.float32),
        "wvo": wvo,
    }


def multiscale_forward(x, params):
    """x: (B, P, 20, 2) float32 -> (B, P, 64) float32"""
    B, P, F, C = x.shape
    assert F == NUM_FREQ and C == 2

    # pad P up to a multiple of 16 so all f32/bf16 sublane splits are tile-aligned;
    # pad rows are zeroed/masked inside the kernel and sliced off here.
    P_pad = ((P + 15) // 16) * 16
    x = x.astype(jnp.float32)
    if P_pad != P:
        x = jnp.pad(x, ((0, 0), (0, P_pad - P), (0, 0), (0, 0)))

    x_ri = jnp.transpose(x, (0, 3, 1, 2))            # (B, 2, P_pad, 20)
    x_flat = x.reshape(B, P_pad, F * C)              # (B, P_pad, 40)

    kp = _prepare_params(params)

    def batched_spec(arr):
        nd = arr.ndim
        blk = (1,) + arr.shape[1:]
        return pl.BlockSpec(blk, lambda b, _n=nd: (b,) + (0,) * (_n - 1))

    def param_spec(arr):
        nd = arr.ndim
        return pl.BlockSpec(arr.shape, lambda b, _n=nd: (0,) * _n)

    inputs = [x_ri, x_flat] + [kp[name] for name in PARAM_ORDER]
    in_specs = ([batched_spec(x_ri), batched_spec(x_flat)]
                + [param_spec(kp[name]) for name in PARAM_ORDER])
    out_spec = pl.BlockSpec((1, P_pad, FEAT_DIM), lambda b: (b, 0, 0))

    S = 3 * P_pad
    out = pl.pallas_call(
        _make_kernel(P, P_pad),
        out_shape=jax.ShapeDtypeStruct((B, P_pad, FEAT_DIM), jnp.float32),
        grid_spec=pltpu.PrefetchScalarGridSpec(
            num_scalar_prefetch=0,
            grid=(B,),
            in_specs=in_specs,
            out_specs=out_spec,
            scratch_shapes=[
                pltpu.VMEM((S, FEAT_DIM), jnp.float32),       # stacked (+pos)
                pltpu.VMEM((S, FEAT_DIM), jnp.bfloat16),      # stacked bf16 (V input)
                pltpu.VMEM((2 * FEAT_DIM, S), jnp.float32),   # [Q^T ; K^T]
                pltpu.VMEM((S, FEAT_DIM), jnp.float32),       # attention accumulator
            ],
        ),
        compiler_params=pltpu.CompilerParams(
            dimension_semantics=("parallel",),
            vmem_limit_bytes=48 * 1024 * 1024,
        ),
    )(*inputs)
    return out[:, :P, :]


def init_params(key):
    keys = iter(jax.random.split(key, 64))

    def w(shape, scale=0.05):
        return (jax.random.normal(next(keys), shape) * scale).astype(jnp.float32)

    ones = lambda s: jnp.ones(s, jnp.float32)
    zeros = lambda s: jnp.zeros(s, jnp.float32)

    p = {}
    # scale processors (stacked [4s, 8s, 16s])
    p["conv_w"] = w((3, NUM_FREQ, 3))
    p["conv_b"] = w((3, NUM_FREQ))
    p["freq_w"] = jnp.array([
        [0.8, 0.8, 0.9, 0.9, 1.0, 1.0, 1.1, 1.1, 1.2, 1.2,
         1.3, 1.4, 1.4, 1.3, 1.2, 1.1, 1.4, 1.5, 1.5, 1.4],
        [0.7, 0.8, 0.9, 1.0, 1.1, 1.2, 1.3, 1.4, 1.5, 1.5,
         1.4, 1.3, 1.2, 1.1, 1.0, 0.9, 0.8, 0.7, 0.7, 0.6],
        [1.5, 1.4, 1.3, 1.2, 1.1, 1.0, 0.9, 1.0, 1.1, 1.2,
         1.0, 0.9, 0.8, 0.7, 0.6, 0.5, 0.4, 0.4, 0.3, 0.3],
    ], dtype=jnp.float32)
    p["mlp_w1"] = w((3, NUM_FREQ, 32)); p["mlp_b1"] = w((3, 32))
    p["ln1_g"] = ones((3, 32));         p["ln1_b"] = zeros((3, 32))
    p["mlp_w2"] = w((3, 32, 64));       p["mlp_b2"] = w((3, 64))
    p["ln2_g"] = ones((3, 64));         p["ln2_b"] = zeros((3, 64))
    p["mlp_w3"] = w((3, 64, 64));       p["mlp_b3"] = w((3, 64))
    p["sn_g"] = ones((3, 64));          p["sn_b"] = zeros((3, 64))

    # cross-scale attention.  position_embedding(eye(3)) == W.T + b -> (3, 64)
    pos_wt = w((3, 64))
    pos_b = w((1, 64))
    p["pos_enc"] = (pos_wt + pos_b).astype(jnp.float32)
    p["in_proj_w"] = w((3, 64, 64))     # [Wq^T, Wk^T, Wv^T]
    p["in_proj_b"] = w((3, 64))
    p["attn_out_w"] = w((64, 64));      p["attn_out_b"] = w((1, 64))
    p["attn_ln_g"] = ones((1, 64));     p["attn_ln_b"] = zeros((1, 64))
    p["attn_proj_w"] = w((64, 64));     p["attn_proj_b"] = w((1, 64))

    # hierarchical fusion; softmax of learnable scale_weights (init [1,1,1])
    sw = jax.nn.softmax(jnp.array([1.0, 1.0, 1.0], jnp.float32))
    p["fusion_sw"] = jnp.broadcast_to(sw[:, None], (3, 64)).astype(jnp.float32)
    p["st_w"] = w((128, 64));  p["st_b"] = w((1, 64))
    p["st_ln_g"] = ones((1, 64)); p["st_ln_b"] = zeros((1, 64))
    p["fin_w"] = w((128, 64)); p["fin_b"] = w((1, 64))
    p["fin_ln_g"] = ones((1, 64)); p["fin_ln_b"] = zeros((1, 64))

    # single-scale backbone fallback: Linear(40,64)->GELU->Linear(64,64)
    p["bb_w1"] = w((40, 64)); p["bb_b1"] = w((1, 64))
    p["bb_w2"] = w((64, 64)); p["bb_b2"] = w((1, 64))

    # final combination: Linear(128,64)->GELU->LayerNorm(64)
    p["fc_w"] = w((128, 64)); p["fc_b"] = w((1, 64))
    p["fc_ln_g"] = ones((1, 64)); p["fc_ln_b"] = zeros((1, 64))
    return p


if __name__ == "__main__":
    key = jax.random.PRNGKey(0)
    k_x, k_p = jax.random.split(key)
    params = init_params(k_p)

    # small stand-in for (batch, 361) pairs; P multiple of 16 -> no padding path
    B, P = 2, 16
    x = jax.random.normal(k_x, (B, P, NUM_FREQ, 2), dtype=jnp.float32)
    out = jax.block_until_ready(multiscale_forward(x, params))
    assert out.shape == (B, P, FEAT_DIM)
    assert bool(jnp.all(jnp.isfinite(out)))

    # also exercise the P-padding path (P=13 -> padded to 16 inside the kernel)
    B2, P2 = 2, 13
    x2 = jax.random.normal(k_x, (B2, P2, NUM_FREQ, 2), dtype=jnp.float32)
    out2 = jax.block_until_ready(multiscale_forward(x2, params))
    assert out2.shape == (B2, P2, FEAT_DIM)
    assert bool(jnp.all(jnp.isfinite(out2)))

    print("KERNEL_OK")
</pallas_src>

<mosaic_0001>
module attributes {stable_mosaic.version = 11 : i64} {
  func.func @kernel(%arg0: i32, %arg1: memref<1x2x16x20xf32, #tpu.memory_space<vmem>>, %arg2: memref<1x16x40xf32, #tpu.memory_space<vmem>>, %arg3: memref<64x64xf32, #tpu.memory_space<vmem>>, %arg4: memref<11x64x64xf32, #tpu.memory_space<vmem>>, %arg5: memref<3x20x32xf32, #tpu.memory_space<vmem>>, %arg6: memref<3x32x64xf32, #tpu.memory_space<vmem>>, %arg7: memref<40x64xf32, #tpu.memory_space<vmem>>, %arg8: memref<128x64xf32, #tpu.memory_space<vmem>>, %arg9: memref<128x1xf32, #tpu.memory_space<vmem>>, %arg10: memref<8x64x64xbf16, #tpu.memory_space<vmem>>, %arg11: memref<1x16x64xf32, #tpu.memory_space<vmem>>, %arg12: memref<48x64xf32, #tpu.memory_space<vmem>>, %arg13: memref<48x64xbf16, #tpu.memory_space<vmem>>, %arg14: memref<128x48xf32, #tpu.memory_space<vmem>>, %arg15: memref<48x64xf32, #tpu.memory_space<vmem>>) attributes {dimension_semantics = [#tpu.dimension_semantics<parallel>], iteration_bounds = array<i64: 2>, scalar_prefetch = 0 : i64, scratch_operands = 4 : i64, tpu.core_type = #tpu.core_type<tc>, window_params = [{transform_indices = @transform_0, window_bounds = array<i64: 1, 2, 16, 20>}, {transform_indices = @transform_1, window_bounds = array<i64: 1, 16, 40>}, {pipeline_mode = #tpu.pipeline_mode<synchronous>, transform_indices = @transform_2, window_bounds = array<i64: 64, 64>}, {pipeline_mode = #tpu.pipeline_mode<synchronous>, transform_indices = @transform_3, window_bounds = array<i64: 11, 64, 64>}, {pipeline_mode = #tpu.pipeline_mode<synchronous>, transform_indices = @transform_4, window_bounds = array<i64: 3, 20, 32>}, {pipeline_mode = #tpu.pipeline_mode<synchronous>, transform_indices = @transform_5, window_bounds = array<i64: 3, 32, 64>}, {pipeline_mode = #tpu.pipeline_mode<synchronous>, transform_indices = @transform_6, window_bounds = array<i64: 40, 64>}, {pipeline_mode = #tpu.pipeline_mode<synchronous>, transform_indices = @transform_7, window_bounds = array<i64: 128, 64>}, {pipeline_mode = #tpu.pipeline_mode<synchronous>, transform_indices = @transform_8, window_bounds = array<i64: 128, 1>}, {pipeline_mode = #tpu.pipeline_mode<synchronous>, transform_indices = @transform_9, window_bounds = array<i64: 8, 64, 64>}, {transform_indices = @transform_10, window_bounds = array<i64: 1, 16, 64>}]} {
    %c0 = arith.constant 0 : index
    %c0_0 = arith.constant 0 : index
    %c0_1 = arith.constant 0 : index
    %c0_2 = arith.constant 0 : index
    %0 = vector.load %arg1[%c0, %c0_0, %c0_1, %c0_2] : memref<1x2x16x20xf32, #tpu.memory_space<vmem>>, vector<1x1x16x20xf32>
    %1 = vector.shape_cast %0 : vector<1x1x16x20xf32> to vector<16x20xf32>
    %c0_3 = arith.constant 0 : index
    %c1 = arith.constant 1 : index
    %c0_4 = arith.constant 0 : index
    %c0_5 = arith.constant 0 : index
    %2 = vector.load %arg1[%c0_3, %c1, %c0_4, %c0_5] : memref<1x2x16x20xf32, #tpu.memory_space<vmem>>, vector<1x1x16x20xf32>
    %3 = vector.shape_cast %2 : vector<1x1x16x20xf32> to vector<16x20xf32>
    %4 = arith.mulf %1, %1 : vector<16x20xf32>
    %5 = arith.mulf %3, %3 : vector<16x20xf32>
    %6 = arith.addf %4, %5 : vector<16x20xf32>
    %cst = arith.constant 9.99999993E-9 : f32
    %7 = vector.broadcast %cst : f32 to vector<16x20xf32>
    %8 = arith.addf %6, %7 : vector<16x20xf32>
    %9 = math.sqrt %8 : vector<16x20xf32>
    %10 = tpu.iota {dimensions = array<i32: 0>} : vector<16x1xi32>
    %c1_i32 = arith.constant 1 : i32
    %11 = tpu.dynamic_rotate %9 by %c1_i32 dim 0 : vector<16x20xf32>, i32 -> vector<16x20xf32>
    %c0_i32 = arith.constant 0 : i32
    %12 = vector.broadcast %c0_i32 : i32 to vector<16x1xi32>
    %13 = arith.cmpi eq, %10, %12 : vector<16x1xi32>
    %cst_6 = arith.constant 0.000000e+00 : f32
    %14 = vector.shape_cast %13 : vector<16x1xi1> to vector<16x1xi1>
    %15 = vector.broadcast %14 : vector<16x1xi1> to vector<16x20xi1>
    %16 = vector.broadcast %cst_6 : f32 to vector<16x20xf32>
    %17 = arith.select %15, %16, %11 : vector<16x20xi1>, vector<16x20xf32>
    %c15_i32 = arith.constant 15 : i32
    %18 = tpu.dynamic_rotate %9 by %c15_i32 dim 0 : vector<16x20xf32>, i32 -> vector<16x20xf32>
    %c15_i32_7 = arith.constant 15 : i32
    %19 = vector.broadcast %c15_i32_7 : i32 to vector<16x1xi32>
    %20 = arith.cmpi eq, %10, %19 : vector<16x1xi32>
    %cst_8 = arith.constant 0.000000e+00 : f32
    %21 = vector.shape_cast %20 : vector<16x1xi1> to vector<16x1xi1>
    %22 = vector.broadcast %21 : vector<16x1xi1> to vector<16x20xi1>
    %23 = vector.broadcast %cst_8 : f32 to vector<16x20xf32>
    %24 = arith.select %22, %23, %18 : vector<16x20xi1>, vector<16x20xf32>
    %c6 = arith.constant 6 : index
    %c0_9 = arith.constant 0 : index
    %25 = vector.load %arg3[%c6, %c0_9] : memref<64x64xf32, #tpu.memory_space<vmem>>, vector<1x20xf32>
    %26 = vector.shape_cast %25 : vector<1x20xf32> to vector<20xf32>
    %27 = vector.shape_cast %26 : vector<20xf32> to vector<1x20xf32>
    %28 = vector.broadcast %27 : vector<1x20xf32> to vector<16x20xf32>
    %29 = arith.mulf %17, %28 : vector<16x20xf32>
    %c7 = arith.constant 7 : index
    %c0_10 = arith.constant 0 : index
    %30 = vector.load %arg3[%c7, %c0_10] : memref<64x64xf32, #tpu.memory_space<vmem>>, vector<1x20xf32>
    %31 = vector.shape_cast %30 : vector<1x20xf32> to vector<20xf32>
    %32 = vector.shape_cast %31 : vector<20xf32> to vector<1x20xf32>
    %33 = vector.broadcast %32 : vector<1x20xf32> to vector<16x20xf32>
    %34 = arith.mulf %9, %33 : vector<16x20xf32>
    %35 = arith.addf %29, %34 : vector<16x20xf32>
    %c8 = arith.constant 8 : index
    %c0_11 = arith.constant 0 : index
    %36 = vector.load %arg3[%c8, %c0_11] : memref<64x64xf32, #tpu.memory_space<vmem>>, vector<1x20xf32>
    %37 = vector.shape_cast %36 : vector<1x20xf32> to vector<20xf32>
    %38 = vector.shape_cast %37 : vector<20xf32> to vector<1x20xf32>
    %39 = vector.broadcast %38 : vector<1x20xf32> to vector<16x20xf32>
    %40 = arith.mulf %24, %39 : vector<16x20xf32>
    %41 = arith.addf %35, %40 : vector<16x20xf32>
    %c0_12 = arith.constant 0 : index
    %c0_13 = arith.constant 0 : index
    %42 = vector.load %arg3[%c0_12, %c0_13] : memref<64x64xf32, #tpu.memory_space<vmem>>, vector<1x20xf32>
    %43 = vector.shape_cast %42 : vector<1x20xf32> to vector<20xf32>
    %44 = vector.shape_cast %43 : vector<20xf32> to vector<1x20xf32>
    %45 = vector.broadcast %44 : vector<1x20xf32> to vector<16x20xf32>
    %46 = arith.addf %41, %45 : vector<16x20xf32>
    %c3 = arith.constant 3 : index
    %c0_14 = arith.constant 0 : index
    %47 = vector.load %arg3[%c3, %c0_14] : memref<64x64xf32, #tpu.memory_space<vmem>>, vector<1x20xf32>
    %48 = vector.shape_cast %47 : vector<1x20xf32> to vector<20xf32>
    %49 = vector.shape_cast %48 : vector<20xf32> to vector<1x20xf32>
    %50 = vector.broadcast %49 : vector<1x20xf32> to vector<16x20xf32>
    %51 = arith.mulf %46, %50 : vector<16x20xf32>
    %c0_15 = arith.constant 0 : index
    %c0_16 = arith.constant 0 : index
    %c0_17 = arith.constant 0 : index
    %52 = vector.load %arg5[%c0_15, %c0_16, %c0_17] : memref<3x20x32xf32, #tpu.memory_space<vmem>>, vector<1x20x32xf32>
    %53 = vector.shape_cast %52 : vector<1x20x32xf32> to vector<20x32xf32>
    %cst_18 = arith.constant dense<0.000000e+00> : vector<16x32xf32>
    %54 = tpu.matmul %51, %53, %cst_18 {dimension_numbers = #tpu.dot_dimension_numbers<[1], [0], [0], [1], [0, 0, 1, 1], [], []>} : vector<16x20xf32>, vector<20x32xf32>, vector<16x32xf32> -> vector<16x32xf32>
    %c15 = arith.constant 15 : index
    %c0_19 = arith.constant 0 : index
    %55 = vector.load %arg3[%c15, %c0_19] : memref<64x64xf32, #tpu.memory_space<vmem>>, vector<1x32xf32>
    %56 = vector.shape_cast %55 : vector<1x32xf32> to vector<32xf32>
    %57 = vector.shape_cast %56 : vector<32xf32> to vector<1x32xf32>
    %58 = vector.broadcast %57 : vector<1x32xf32> to vector<16x32xf32>
    %59 = arith.addf %54, %58 : vector<16x32xf32>
    %cst_20 = arith.constant 5.000000e-01 : f32
    %60 = vector.broadcast %cst_20 : f32 to vector<16x32xf32>
    %61 = arith.mulf %60, %59 : vector<16x32xf32>
    %cst_21 = arith.constant 0.707106769 : f32
    %62 = vector.broadcast %cst_21 : f32 to vector<16x32xf32>
    %63 = arith.mulf %59, %62 : vector<16x32xf32>
    %64 = math.erf %63 : vector<16x32xf32>
    %cst_22 = arith.constant 1.000000e+00 : f32
    %65 = vector.broadcast %cst_22 : f32 to vector<16x32xf32>
    %66 = arith.addf %65, %64 : vector<16x32xf32>
    %67 = arith.mulf %61, %66 : vector<16x32xf32>
    %c18 = arith.constant 18 : index
    %c0_23 = arith.constant 0 : index
    %68 = vector.load %arg3[%c18, %c0_23] : memref<64x64xf32, #tpu.memory_space<vmem>>, vector<1x32xf32>
    %69 = vector.shape_cast %68 : vector<1x32xf32> to vector<32xf32>
    %c21 = arith.constant 21 : index
    %c0_24 = arith.constant 0 : index
    %70 = vector.load %arg3[%c21, %c0_24] : memref<64x64xf32, #tpu.memory_space<vmem>>, vector<1x32xf32>
    %71 = vector.shape_cast %70 : vector<1x32xf32> to vector<32xf32>
    %cst_25 = arith.constant dense<0.000000e+00> : vector<16xf32>
    %72 = vector.multi_reduction <add>, %67, %cst_25 [1] : vector<16x32xf32> to vector<16xf32>
    %73 = vector.shape_cast %72 : vector<16xf32> to vector<16x1xf32>
    %cst_26 = arith.constant 3.200000e+01 : f32
    %74 = vector.broadcast %cst_26 : f32 to vector<16x1xf32>
    %75 = arith.divf %73, %74 : vector<16x1xf32>
    %76 = vector.broadcast %75 : vector<16x1xf32> to vector<16x32xf32>
    %77 = arith.subf %67, %76 : vector<16x32xf32>
    %78 = arith.mulf %77, %77 : vector<16x32xf32>
    %cst_27 = arith.constant dense<0.000000e+00> : vector<16xf32>
    %79 = vector.multi_reduction <add>, %78, %cst_27 [1] : vector<16x32xf32> to vector<16xf32>
    %80 = vector.shape_cast %79 : vector<16xf32> to vector<16x1xf32>
    %cst_28 = arith.constant 3.200000e+01 : f32
    %81 = vector.broadcast %cst_28 : f32 to vector<16x1xf32>
    %82 = arith.divf %80, %81 : vector<16x1xf32>
    %83 = vector.broadcast %75 : vector<16x1xf32> to vector<16x32xf32>
    %84 = arith.subf %67, %83 : vector<16x32xf32>
    %cst_29 = arith.constant 9.99999974E-6 : f32
    %85 = vector.broadcast %cst_29 : f32 to vector<16x1xf32>
    %86 = arith.addf %82, %85 : vector<16x1xf32>
    %87 = math.rsqrt %86 : vector<16x1xf32>
    %88 = vector.broadcast %87 : vector<16x1xf32> to vector<16x32xf32>
    %89 = arith.mulf %84, %88 : vector<16x32xf32>
    %90 = vector.shape_cast %69 : vector<32xf32> to vector<1x32xf32>
    %91 = vector.broadcast %90 : vector<1x32xf32> to vector<16x32xf32>
    %92 = arith.mulf %89, %91 : vector<16x32xf32>
    %93 = vector.shape_cast %71 : vector<32xf32> to vector<1x32xf32>
    %94 = vector.broadcast %93 : vector<1x32xf32> to vector<16x32xf32>
    %95 = arith.addf %92, %94 : vector<16x32xf32>
    %c0_30 = arith.constant 0 : index
    %c0_31 = arith.constant 0 : index
    %c0_32 = arith.constant 0 : index
    %96 = vector.load %arg6[%c0_30, %c0_31, %c0_32] : memref<3x32x64xf32, #tpu.memory_space<vmem>>, vector<1x32x64xf32>
    %97 = vector.shape_cast %96 : vector<1x32x64xf32> to vector<32x64xf32>
    %cst_33 = arith.constant dense<0.000000e+00> : vector<16x64xf32>
    %98 = tpu.matmul %95, %97, %cst_33 {dimension_numbers = #tpu.dot_dimension_numbers<[1], [0], [0], [1], [0, 0, 1, 1], [], []>} : vector<16x32xf32>, vector<32x64xf32>, vector<16x64xf32> -> vector<16x64xf32>
    %c24 = arith.constant 24 : index
    %c0_34 = arith.constant 0 : index
    %99 = vector.load %arg3[%c24, %c0_34] : memref<64x64xf32, #tpu.memory_space<vmem>>, vector<1x64xf32>
    %100 = vector.shape_cast %99 : vector<1x64xf32> to vector<64xf32>
    %101 = vector.shape_cast %100 : vector<64xf32> to vector<1x64xf32>
    %102 = vector.broadcast %101 : vector<1x64xf32> to vector<16x64xf32>
    %103 = arith.addf %98, %102 : vector<16x64xf32>
    %cst_35 = arith.constant 5.000000e-01 : f32
    %104 = vector.broadcast %cst_35 : f32 to vector<16x64xf32>
    %105 = arith.mulf %104, %103 : vector<16x64xf32>
    %cst_36 = arith.constant 0.707106769 : f32
    %106 = vector.broadcast %cst_36 : f32 to vector<16x64xf32>
    %107 = arith.mulf %103, %106 : vector<16x64xf32>
    %108 = math.erf %107 : vector<16x64xf32>
    %cst_37 = arith.constant 1.000000e+00 : f32
    %109 = vector.broadcast %cst_37 : f32 to vector<16x64xf32>
    %110 = arith.addf %109, %108 : vector<16x64xf32>
    %111 = arith.mulf %105, %110 : vector<16x64xf32>
    %c27 = arith.constant 27 : index
    %c0_38 = arith.constant 0 : index
    %112 = vector.load %arg3[%c27, %c0_38] : memref<64x64xf32, #tpu.memory_space<vmem>>, vector<1x64xf32>
    %113 = vector.shape_cast %112 : vector<1x64xf32> to vector<64xf32>
    %c30 = arith.constant 30 : index
    %c0_39 = arith.constant 0 : index
    %114 = vector.load %arg3[%c30, %c0_39] : memref<64x64xf32, #tpu.memory_space<vmem>>, vector<1x64xf32>
    %115 = vector.shape_cast %114 : vector<1x64xf32> to vector<64xf32>
    %cst_40 = arith.constant dense<0.000000e+00> : vector<16xf32>
    %116 = vector.multi_reduction <add>, %111, %cst_40 [1] : vector<16x64xf32> to vector<16xf32>
    %117 = vector.shape_cast %116 : vector<16xf32> to vector<16x1xf32>
    %cst_41 = arith.constant 6.400000e+01 : f32
    %118 = vector.broadcast %cst_41 : f32 to vector<16x1xf32>
    %119 = arith.divf %117, %118 : vector<16x1xf32>
    %120 = vector.broadcast %119 : vector<16x1xf32> to vector<16x64xf32>
    %121 = arith.subf %111, %120 : vector<16x64xf32>
    %122 = arith.mulf %121, %121 : vector<16x64xf32>
    %cst_42 = arith.constant dense<0.000000e+00> : vector<16xf32>
    %123 = vector.multi_reduction <add>, %122, %cst_42 [1] : vector<16x64xf32> to vector<16xf32>
    %124 = vector.shape_cast %123 : vector<16xf32> to vector<16x1xf32>
    %cst_43 = arith.constant 6.400000e+01 : f32
    %125 = vector.broadcast %cst_43 : f32 to vector<16x1xf32>
    %126 = arith.divf %124, %125 : vector<16x1xf32>
    %127 = vector.broadcast %119 : vector<16x1xf32> to vector<16x64xf32>
    %128 = arith.subf %111, %127 : vector<16x64xf32>
    %cst_44 = arith.constant 9.99999974E-6 : f32
    %129 = vector.broadcast %cst_44 : f32 to vector<16x1xf32>
    %130 = arith.addf %126, %129 : vector<16x1xf32>
    %131 = math.rsqrt %130 : vector<16x1xf32>
    %132 = vector.broadcast %131 : vector<16x1xf32> to vector<16x64xf32>
    %133 = arith.mulf %128, %132 : vector<16x64xf32>
    %134 = vector.shape_cast %113 : vector<64xf32> to vector<1x64xf32>
    %135 = vector.broadcast %134 : vector<1x64xf32> to vector<16x64xf32>
    %136 = arith.mulf %133, %135 : vector<16x64xf32>
    %137 = vector.shape_cast %115 : vector<64xf32> to vector<1x64xf32>
    %138 = vector.broadcast %137 : vector<1x64xf32> to vector<16x64xf32>
    %139 = arith.addf %136, %138 : vector<16x64xf32>
    %c0_45 = arith.constant 0 : index
    %c0_46 = arith.constant 0 : index
    %c0_47 = arith.constant 0 : index
    %140 = vector.load %arg4[%c0_45, %c0_46, %c0_47] : memref<11x64x64xf32, #tpu.memory_space<vmem>>, vector<1x64x64xf32>
    %141 = vector.shape_cast %140 : vector<1x64x64xf32> to vector<64x64xf32>
    %cst_48 = arith.constant dense<0.000000e+00> : vector<16x64xf32>
    %142 = tpu.matmul %139, %141, %cst_48 {dimension_numbers = #tpu.dot_dimension_numbers<[1], [0], [0], [1], [0, 0, 1, 1], [], []>} : vector<16x64xf32>, vector<64x64xf32>, vector<16x64xf32> -> vector<16x64xf32>
    %c33 = arith.constant 33 : index
    %c0_49 = arith.constant 0 : index
    %143 = vector.load %arg3[%c33, %c0_49] : memref<64x64xf32, #tpu.memory_space<vmem>>, vector<1x64xf32>
    %144 = vector.shape_cast %143 : vector<1x64xf32> to vector<64xf32>
    %145 = vector.shape_cast %144 : vector<64xf32> to vector<1x64xf32>
    %146 = vector.broadcast %145 : vector<1x64xf32> to vector<16x64xf32>
    %147 = arith.addf %142, %146 : vector<16x64xf32>
    %c36 = arith.constant 36 : index
    %c0_50 = arith.constant 0 : index
    %148 = vector.load %arg3[%c36, %c0_50] : memref<64x64xf32, #tpu.memory_space<vmem>>, vector<1x64xf32>
    %149 = vector.shape_cast %148 : vector<1x64xf32> to vector<64xf32>
    %c39 = arith.constant 39 : index
    %c0_51 = arith.constant 0 : index
    %150 = vector.load %arg3[%c39, %c0_51] : memref<64x64xf32, #tpu.memory_space<vmem>>, vector<1x64xf32>
    %151 = vector.shape_cast %150 : vector<1x64xf32> to vector<64xf32>
    %cst_52 = arith.constant dense<0.000000e+00> : vector<16xf32>
    %152 = vector.multi_reduction <add>, %147, %cst_52 [1] : vector<16x64xf32> to vector<16xf32>
    %153 = vector.shape_cast %152 : vector<16xf32> to vector<16x1xf32>
    %cst_53 = arith.constant 6.400000e+01 : f32
    %154 = vector.broadcast %cst_53 : f32 to vector<16x1xf32>
    %155 = arith.divf %153, %154 : vector<16x1xf32>
    %156 = vector.broadcast %155 : vector<16x1xf32> to vector<16x64xf32>
    %157 = arith.subf %147, %156 : vector<16x64xf32>
    %158 = arith.mulf %157, %157 : vector<16x64xf32>
    %cst_54 = arith.constant dense<0.000000e+00> : vector<16xf32>
    %159 = vector.multi_reduction <add>, %158, %cst_54 [1] : vector<16x64xf32> to vector<16xf32>
    %160 = vector.shape_cast %159 : vector<16xf32> to vector<16x1xf32>
    %cst_55 = arith.constant 6.400000e+01 : f32
    %161 = vector.broadcast %cst_55 : f32 to vector<16x1xf32>
    %162 = arith.divf %160, %161 : vector<16x1xf32>
    %163 = vector.broadcast %155 : vector<16x1xf32> to vector<16x64xf32>
    %164 = arith.subf %147, %163 : vector<16x64xf32>
    %cst_56 = arith.constant 9.99999974E-6 : f32
    %165 = vector.broadcast %cst_56 : f32 to vector<16x1xf32>
    %166 = arith.addf %162, %165 : vector<16x1xf32>
    %167 = math.rsqrt %166 : vector<16x1xf32>
    %168 = vector.broadcast %167 : vector<16x1xf32> to vector<16x64xf32>
    %169 = arith.mulf %164, %168 : vector<16x64xf32>
    %170 = vector.shape_cast %149 : vector<64xf32> to vector<1x64xf32>
    %171 = vector.broadcast %170 : vector<1x64xf32> to vector<16x64xf32>
    %172 = arith.mulf %169, %171 : vector<16x64xf32>
    %173 = vector.shape_cast %151 : vector<64xf32> to vector<1x64xf32>
    %174 = vector.broadcast %173 : vector<1x64xf32> to vector<16x64xf32>
    %175 = arith.addf %172, %174 : vector<16x64xf32>
    %c42 = arith.constant 42 : index
    %c0_57 = arith.constant 0 : index
    %176 = vector.load %arg3[%c42, %c0_57] : memref<64x64xf32, #tpu.memory_space<vmem>>, vector<1x64xf32>
    %177 = vector.shape_cast %176 : vector<1x64xf32> to vector<64xf32>
    %178 = vector.shape_cast %177 : vector<64xf32> to vector<1x64xf32>
    %179 = vector.broadcast %178 : vector<1x64xf32> to vector<16x64xf32>
    %180 = arith.addf %175, %179 : vector<16x64xf32>
    %c0_58 = arith.constant 0 : index
    %c0_59 = arith.constant 0 : index
    %181 = vector.load %arg12[%c0_58, %c0_59] : memref<48x64xf32, #tpu.memory_space<vmem>>, vector<16x64xf32>
    tpu.vector_store %arg12[%c0_58, %c0_59], %180 {strides = array<i32>} : memref<48x64xf32, #tpu.memory_space<vmem>>, vector<16x64xf32>,
    %c9 = arith.constant 9 : index
    %c0_60 = arith.constant 0 : index
    %182 = vector.load %arg3[%c9, %c0_60] : memref<64x64xf32, #tpu.memory_space<vmem>>, vector<1x20xf32>
    %183 = vector.shape_cast %182 : vector<1x20xf32> to vector<20xf32>
    %184 = vector.shape_cast %183 : vector<20xf32> to vector<1x20xf32>
    %185 = vector.broadcast %184 : vector<1x20xf32> to vector<16x20xf32>
    %186 = arith.mulf %17, %185 : vector<16x20xf32>
    %c10 = arith.constant 10 : index
    %c0_61 = arith.constant 0 : index
    %187 = vector.load %arg3[%c10, %c0_61] : memref<64x64xf32, #tpu.memory_space<vmem>>, vector<1x20xf32>
    %188 = vector.shape_cast %187 : vector<1x20xf32> to vector<20xf32>
    %189 = vector.shape_cast %188 : vector<20xf32> to vector<1x20xf32>
    %190 = vector.broadcast %189 : vector<1x20xf32> to vector<16x20xf32>
    %191 = arith.mulf %9, %190 : vector<16x20xf32>
    %192 = arith.addf %186, %191 : vector<16x20xf32>
    %c11 = arith.constant 11 : index
    %c0_62 = arith.constant 0 : index
    %193 = vector.load %arg3[%c11, %c0_62] : memref<64x64xf32, #tpu.memory_space<vmem>>, vector<1x20xf32>
    %194 = vector.shape_cast %193 : vector<1x20xf32> to vector<20xf32>
    %195 = vector.shape_cast %194 : vector<20xf32> to vector<1x20xf32>
    %196 = vector.broadcast %195 : vector<1x20xf32> to vector<16x20xf32>
    %197 = arith.mulf %24, %196 : vector<16x20xf32>
    %198 = arith.addf %192, %197 : vector<16x20xf32>
    %c1_63 = arith.constant 1 : index
    %c0_64 = arith.constant 0 : index
    %199 = vector.load %arg3[%c1_63, %c0_64] : memref<64x64xf32, #tpu.memory_space<vmem>>, vector<1x20xf32>
    %200 = vector.shape_cast %199 : vector<1x20xf32> to vector<20xf32>
    %201 = vector.shape_cast %200 : vector<20xf32> to vector<1x20xf32>
    %202 = vector.broadcast %201 : vector<1x20xf32> to vector<16x20xf32>
    %203 = arith.addf %198, %202 : vector<16x20xf32>
    %c4 = arith.constant 4 : index
    %c0_65 = arith.constant 0 : index
    %204 = vector.load %arg3[%c4, %c0_65] : memref<64x64xf32, #tpu.memory_space<vmem>>, vector<1x20xf32>
    %205 = vector.shape_cast %204 : vector<1x20xf32> to vector<20xf32>
    %206 = vector.shape_cast %205 : vector<20xf32> to vector<1x20xf32>
    %207 = vector.broadcast %206 : vector<1x20xf32> to vector<16x20xf32>
    %208 = arith.mulf %203, %207 : vector<16x20xf32>
    %c1_66 = arith.constant 1 : index
    %c0_67 = arith.constant 0 : index
    %c0_68 = arith.constant 0 : index
    %209 = vector.load %arg5[%c1_66, %c0_67, %c0_68] : memref<3x20x32xf32, #tpu.memory_space<vmem>>, vector<1x20x32xf32>
    %210 = vector.shape_cast %209 : vector<1x20x32xf32> to vector<20x32xf32>
    %cst_69 = arith.constant dense<0.000000e+00> : vector<16x32xf32>
    %211 = tpu.matmul %208, %210, %cst_69 {dimension_numbers = #tpu.dot_dimension_numbers<[1], [0], [0], [1], [0, 0, 1, 1], [], []>} : vector<16x20xf32>, vector<20x32xf32>, vector<16x32xf32> -> vector<16x32xf32>
    %c16 = arith.constant 16 : index
    %c0_70 = arith.constant 0 : index
    %212 = vector.load %arg3[%c16, %c0_70] : memref<64x64xf32, #tpu.memory_space<vmem>>, vector<1x32xf32>
    %213 = vector.shape_cast %212 : vector<1x32xf32> to vector<32xf32>
    %214 = vector.shape_cast %213 : vector<32xf32> to vector<1x32xf32>
    %215 = vector.broadcast %214 : vector<1x32xf32> to vector<16x32xf32>
    %216 = arith.addf %211, %215 : vector<16x32xf32>
    %cst_71 = arith.constant 5.000000e-01 : f32
    %217 = vector.broadcast %cst_71 : f32 to vector<16x32xf32>
    %218 = arith.mulf %217, %216 : vector<16x32xf32>
    %cst_72 = arith.constant 0.707106769 : f32
    %219 = vector.broadcast %cst_72 : f32 to vector<16x32xf32>
    %220 = arith.mulf %216, %219 : vector<16x32xf32>
    %221 = math.erf %220 : vector<16x32xf32>
    %cst_73 = arith.constant 1.000000e+00 : f32
    %222 = vector.broadcast %cst_73 : f32 to vector<16x32xf32>
    %223 = arith.addf %222, %221 : vector<16x32xf32>
    %224 = arith.mulf %218, %223 : vector<16x32xf32>
    %c19 = arith.constant 19 : index
    %c0_74 = arith.constant 0 : index
    %225 = vector.load %arg3[%c19, %c0_74] : memref<64x64xf32, #tpu.memory_space<vmem>>, vector<1x32xf32>
    %226 = vector.shape_cast %225 : vector<1x32xf32> to vector<32xf32>
    %c22 = arith.constant 22 : index
    %c0_75 = arith.constant 0 : index
    %227 = vector.load %arg3[%c22, %c0_75] : memref<64x64xf32, #tpu.memory_space<vmem>>, vector<1x32xf32>
    %228 = vector.shape_cast %227 : vector<1x32xf32> to vector<32xf32>
    %cst_76 = arith.constant dense<0.000000e+00> : vector<16xf32>
    %229 = vector.multi_reduction <add>, %224, %cst_76 [1] : vector<16x32xf32> to vector<16xf32>
    %230 = vector.shape_cast %229 : vector<16xf32> to vector<16x1xf32>
    %cst_77 = arith.constant 3.200000e+01 : f32
    %231 = vector.broadcast %cst_77 : f32 to vector<16x1xf32>
    %232 = arith.divf %230, %231 : vector<16x1xf32>
    %233 = vector.broadcast %232 : vector<16x1xf32> to vector<16x32xf32>
    %234 = arith.subf %224, %233 : vector<16x32xf32>
    %235 = arith.mulf %234, %234 : vector<16x32xf32>
    %cst_78 = arith.constant dense<0.000000e+00> : vector<16xf32>
    %236 = vector.multi_reduction <add>, %235, %cst_78 [1] : vector<16x32xf32> to vector<16xf32>
    %237 = vector.shape_cast %236 : vector<16xf32> to vector<16x1xf32>
    %cst_79 = arith.constant 3.200000e+01 : f32
    %238 = vector.broadcast %cst_79 : f32 to vector<16x1xf32>
    %239 = arith.divf %237, %238 : vector<16x1xf32>
    %240 = vector.broadcast %232 : vector<16x1xf32> to vector<16x32xf32>
    %241 = arith.subf %224, %240 : vector<16x32xf32>
    %cst_80 = arith.constant 9.99999974E-6 : f32
    %242 = vector.broadcast %cst_80 : f32 to vector<16x1xf32>
    %243 = arith.addf %239, %242 : vector<16x1xf32>
    %244 = math.rsqrt %243 : vector<16x1xf32>
    %245 = vector.broadcast %244 : vector<16x1xf32> to vector<16x32xf32>
    %246 = arith.mulf %241, %245 : vector<16x32xf32>
    %247 = vector.shape_cast %226 : vector<32xf32> to vector<1x32xf32>
    %248 = vector.broadcast %247 : vector<1x32xf32> to vector<16x32xf32>
    %249 = arith.mulf %246, %248 : vector<16x32xf32>
    %250 = vector.shape_cast %228 : vector<32xf32> to vector<1x32xf32>
    %251 = vector.broadcast %250 : vector<1x32xf32> to vector<16x32xf32>
    %252 = arith.addf %249, %251 : vector<16x32xf32>
    %c1_81 = arith.constant 1 : index
    %c0_82 = arith.constant 0 : index
    %c0_83 = arith.constant 0 : index
    %253 = vector.load %arg6[%c1_81, %c0_82, %c0_83] : memref<3x32x64xf32, #tpu.memory_space<vmem>>, vector<1x32x64xf32>
    %254 = vector.shape_cast %253 : vector<1x32x64xf32> to vector<32x64xf32>
    %cst_84 = arith.constant dense<0.000000e+00> : vector<16x64xf32>
    %255 = tpu.matmul %252, %254, %cst_84 {dimension_numbers = #tpu.dot_dimension_numbers<[1], [0], [0], [1], [0, 0, 1, 1], [], []>} : vector<16x32xf32>, vector<32x64xf32>, vector<16x64xf32> -> vector<16x64xf32>
    %c25 = arith.constant 25 : index
    %c0_85 = arith.constant 0 : index
    %256 = vector.load %arg3[%c25, %c0_85] : memref<64x64xf32, #tpu.memory_space<vmem>>, vector<1x64xf32>
    %257 = vector.shape_cast %256 : vector<1x64xf32> to vector<64xf32>
    %258 = vector.shape_cast %257 : vector<64xf32> to vector<1x64xf32>
    %259 = vector.broadcast %258 : vector<1x64xf32> to vector<16x64xf32>
    %260 = arith.addf %255, %259 : vector<16x64xf32>
    %cst_86 = arith.constant 5.000000e-01 : f32
    %261 = vector.broadcast %cst_86 : f32 to vector<16x64xf32>
    %262 = arith.mulf %261, %260 : vector<16x64xf32>
    %cst_87 = arith.constant 0.707106769 : f32
    %263 = vector.broadcast %cst_87 : f32 to vector<16x64xf32>
    %264 = arith.mulf %260, %263 : vector<16x64xf32>
    %265 = math.erf %264 : vector<16x64xf32>
    %cst_88 = arith.constant 1.000000e+00 : f32
    %266 = vector.broadcast %cst_88 : f32 to vector<16x64xf32>
    %267 = arith.addf %266, %265 : vector<16x64xf32>
    %268 = arith.mulf %262, %267 : vector<16x64xf32>
    %c28 = arith.constant 28 : index
    %c0_89 = arith.constant 0 : index
    %269 = vector.load %arg3[%c28, %c0_89] : memref<64x64xf32, #tpu.memory_space<vmem>>, vector<1x64xf32>
    %270 = vector.shape_cast %269 : vector<1x64xf32> to vector<64xf32>
    %c31 = arith.constant 31 : index
    %c0_90 = arith.constant 0 : index
    %271 = vector.load %arg3[%c31, %c0_90] : memref<64x64xf32, #tpu.memory_space<vmem>>, vector<1x64xf32>
    %272 = vector.shape_cast %271 : vector<1x64xf32> to vector<64xf32>
    %cst_91 = arith.constant dense<0.000000e+00> : vector<16xf32>
    %273 = vector.multi_reduction <add>, %268, %cst_91 [1] : vector<16x64xf32> to vector<16xf32>
    %274 = vector.shape_cast %273 : vector<16xf32> to vector<16x1xf32>
    %cst_92 = arith.constant 6.400000e+01 : f32
    %275 = vector.broadcast %cst_92 : f32 to vector<16x1xf32>
    %276 = arith.divf %274, %275 : vector<16x1xf32>
    %277 = vector.broadcast %276 : vector<16x1xf32> to vector<16x64xf32>
    %278 = arith.subf %268, %277 : vector<16x64xf32>
    %279 = arith.mulf %278, %278 : vector<16x64xf32>
    %cst_93 = arith.constant dense<0.000000e+00> : vector<16xf32>
    %280 = vector.multi_reduction <add>, %279, %cst_93 [1] : vector<16x64xf32> to vector<16xf32>
    %281 = vector.shape_cast %280 : vector<16xf32> to vector<16x1xf32>
    %cst_94 = arith.constant 6.400000e+01 : f32
    %282 = vector.broadcast %cst_94 : f32 to vector<16x1xf32>
    %283 = arith.divf %281, %282 : vector<16x1xf32>
    %284 = vector.broadcast %276 : vector<16x1xf32> to vector<16x64xf32>
    %285 = arith.subf %268, %284 : vector<16x64xf32>
    %cst_95 = arith.constant 9.99999974E-6 : f32
    %286 = vector.broadcast %cst_95 : f32 to vector<16x1xf32>
    %287 = arith.addf %283, %286 : vector<16x1xf32>
    %288 = math.rsqrt %287 : vector<16x1xf32>
    %289 = vector.broadcast %288 : vector<16x1xf32> to vector<16x64xf32>
    %290 = arith.mulf %285, %289 : vector<16x64xf32>
    %291 = vector.shape_cast %270 : vector<64xf32> to vector<1x64xf32>
    %292 = vector.broadcast %291 : vector<1x64xf32> to vector<16x64xf32>
    %293 = arith.mulf %290, %292 : vector<16x64xf32>
    %294 = vector.shape_cast %272 : vector<64xf32> to vector<1x64xf32>
    %295 = vector.broadcast %294 : vector<1x64xf32> to vector<16x64xf32>
    %296 = arith.addf %293, %295 : vector<16x64xf32>
    %c1_96 = arith.constant 1 : index
    %c0_97 = arith.constant 0 : index
    %c0_98 = arith.constant 0 : index
    %297 = vector.load %arg4[%c1_96, %c0_97, %c0_98] : memref<11x64x64xf32, #tpu.memory_space<vmem>>, vector<1x64x64xf32>
    %298 = vector.shape_cast %297 : vector<1x64x64xf32> to vector<64x64xf32>
    %cst_99 = arith.constant dense<0.000000e+00> : vector<16x64xf32>
    %299 = tpu.matmul %296, %298, %cst_99 {dimension_numbers = #tpu.dot_dimension_numbers<[1], [0], [0], [1], [0, 0, 1, 1], [], []>} : vector<16x64xf32>, vector<64x64xf32>, vector<16x64xf32> -> vector<16x64xf32>
    %c34 = arith.constant 34 : index
    %c0_100 = arith.constant 0 : index
    %300 = vector.load %arg3[%c34, %c0_100] : memref<64x64xf32, #tpu.memory_space<vmem>>, vector<1x64xf32>
    %301 = vector.shape_cast %300 : vector<1x64xf32> to vector<64xf32>
    %302 = vector.shape_cast %301 : vector<64xf32> to vector<1x64xf32>
    %303 = vector.broadcast %302 : vector<1x64xf32> to vector<16x64xf32>
    %304 = arith.addf %299, %303 : vector<16x64xf32>
    %c37 = arith.constant 37 : index
    %c0_101 = arith.constant 0 : index
    %305 = vector.load %arg3[%c37, %c0_101] : memref<64x64xf32, #tpu.memory_space<vmem>>, vector<1x64xf32>
    %306 = vector.shape_cast %305 : vector<1x64xf32> to vector<64xf32>
    %c40 = arith.constant 40 : index
    %c0_102 = arith.constant 0 : index
    %307 = vector.load %arg3[%c40, %c0_102] : memref<64x64xf32, #tpu.memory_space<vmem>>, vector<1x64xf32>
    %308 = vector.shape_cast %307 : vector<1x64xf32> to vector<64xf32>
    %cst_103 = arith.constant dense<0.000000e+00> : vector<16xf32>
    %309 = vector.multi_reduction <add>, %304, %cst_103 [1] : vector<16x64xf32> to vector<16xf32>
    %310 = vector.shape_cast %309 : vector<16xf32> to vector<16x1xf32>
    %cst_104 = arith.constant 6.400000e+01 : f32
    %311 = vector.broadcast %cst_104 : f32 to vector<16x1xf32>
    %312 = arith.divf %310, %311 : vector<16x1xf32>
    %313 = vector.broadcast %312 : vector<16x1xf32> to vector<16x64xf32>
    %314 = arith.subf %304, %313 : vector<16x64xf32>
    %315 = arith.mulf %314, %314 : vector<16x64xf32>
    %cst_105 = arith.constant dense<0.000000e+00> : vector<16xf32>
    %316 = vector.multi_reduction <add>, %315, %cst_105 [1] : vector<16x64xf32> to vector<16xf32>
    %317 = vector.shape_cast %316 : vector<16xf32> to vector<16x1xf32>
    %cst_106 = arith.constant 6.400000e+01 : f32
    %318 = vector.broadcast %cst_106 : f32 to vector<16x1xf32>
    %319 = arith.divf %317, %318 : vector<16x1xf32>
    %320 = vector.broadcast %312 : vector<16x1xf32> to vector<16x64xf32>
    %321 = arith.subf %304, %320 : vector<16x64xf32>
    %cst_107 = arith.constant 9.99999974E-6 : f32
    %322 = vector.broadcast %cst_107 : f32 to vector<16x1xf32>
    %323 = arith.addf %319, %322 : vector<16x1xf32>
    %324 = math.rsqrt %323 : vector<16x1xf32>
    %325 = vector.broadcast %324 : vector<16x1xf32> to vector<16x64xf32>
    %326 = arith.mulf %321, %325 : vector<16x64xf32>
    %327 = vector.shape_cast %306 : vector<64xf32> to vector<1x64xf32>
    %328 = vector.broadcast %327 : vector<1x64xf32> to vector<16x64xf32>
    %329 = arith.mulf %326, %328 : vector<16x64xf32>
    %330 = vector.shape_cast %308 : vector<64xf32> to vector<1x64xf32>
    %331 = vector.broadcast %330 : vector<1x64xf32> to vector<16x64xf32>
    %332 = arith.addf %329, %331 : vector<16x64xf32>
    %c43 = arith.constant 43 : index
    %c0_108 = arith.constant 0 : index
    %333 = vector.load %arg3[%c43, %c0_108] : memref<64x64xf32, #tpu.memory_space<vmem>>, vector<1x64xf32>
    %334 = vector.shape_cast %333 : vector<1x64xf32> to vector<64xf32>
    %335 = vector.shape_cast %334 : vector<64xf32> to vector<1x64xf32>
    %336 = vector.broadcast %335 : vector<1x64xf32> to vector<16x64xf32>
    %337 = arith.addf %332, %336 : vector<16x64xf32>
    %c16_109 = arith.constant 16 : index
    %c0_110 = arith.constant 0 : index
    %338 = vector.load %arg12[%c16_109, %c0_110] : memref<48x64xf32, #tpu.memory_space<vmem>>, vector<16x64xf32>
    tpu.vector_store %arg12[%c16_109, %c0_110], %337 {strides = array<i32>} : memref<48x64xf32, #tpu.memory_space<vmem>>, vector<16x64xf32>,
    %c12 = arith.constant 12 : index
    %c0_111 = arith.constant 0 : index
    %339 = vector.load %arg3[%c12, %c0_111] : memref<64x64xf32, #tpu.memory_space<vmem>>, vector<1x20xf32>
    %340 = vector.shape_cast %339 : vector<1x20xf32> to vector<20xf32>
    %341 = vector.shape_cast %340 : vector<20xf32> to vector<1x20xf32>
    %342 = vector.broadcast %341 : vector<1x20xf32> to vector<16x20xf32>
    %343 = arith.mulf %17, %342 : vector<16x20xf32>
    %c13 = arith.constant 13 : index
    %c0_112 = arith.constant 0 : index
    %344 = vector.load %arg3[%c13, %c0_112] : memref<64x64xf32, #tpu.memory_space<vmem>>, vector<1x20xf32>
    %345 = vector.shape_cast %344 : vector<1x20xf32> to vector<20xf32>
    %346 = vector.shape_cast %345 : vector<20xf32> to vector<1x20xf32>
    %347 = vector.broadcast %346 : vector<1x20xf32> to vector<16x20xf32>
    %348 = arith.mulf %9, %347 : vector<16x20xf32>
    %349 = arith.addf %343, %348 : vector<16x20xf32>
    %c14 = arith.constant 14 : index
    %c0_113 = arith.constant 0 : index
    %350 = vector.load %arg3[%c14, %c0_113] : memref<64x64xf32, #tpu.memory_space<vmem>>, vector<1x20xf32>
    %351 = vector.shape_cast %350 : vector<1x20xf32> to vector<20xf32>
    %352 = vector.shape_cast %351 : vector<20xf32> to vector<1x20xf32>
    %353 = vector.broadcast %352 : vector<1x20xf32> to vector<16x20xf32>
    %354 = arith.mulf %24, %353 : vector<16x20xf32>
    %355 = arith.addf %349, %354 : vector<16x20xf32>
    %c2 = arith.constant 2 : index
    %c0_114 = arith.constant 0 : index
    %356 = vector.load %arg3[%c2, %c0_114] : memref<64x64xf32, #tpu.memory_space<vmem>>, vector<1x20xf32>
    %357 = vector.shape_cast %356 : vector<1x20xf32> to vector<20xf32>
    %358 = vector.shape_cast %357 : vector<20xf32> to vector<1x20xf32>
    %359 = vector.broadcast %358 : vector<1x20xf32> to vector<16x20xf32>
    %360 = arith.addf %355, %359 : vector<16x20xf32>
    %c5 = arith.constant 5 : index
    %c0_115 = arith.constant 0 : index
    %361 = vector.load %arg3[%c5, %c0_115] : memref<64x64xf32, #tpu.memory_space<vmem>>, vector<1x20xf32>
    %362 = vector.shape_cast %361 : vector<1x20xf32> to vector<20xf32>
    %363 = vector.shape_cast %362 : vector<20xf32> to vector<1x20xf32>
    %364 = vector.broadcast %363 : vector<1x20xf32> to vector<16x20xf32>
    %365 = arith.mulf %360, %364 : vector<16x20xf32>
    %c2_116 = arith.constant 2 : index
    %c0_117 = arith.constant 0 : index
    %c0_118 = arith.constant 0 : index
    %366 = vector.load %arg5[%c2_116, %c0_117, %c0_118] : memref<3x20x32xf32, #tpu.memory_space<vmem>>, vector<1x20x32xf32>
    %367 = vector.shape_cast %366 : vector<1x20x32xf32> to vector<20x32xf32>
    %cst_119 = arith.constant dense<0.000000e+00> : vector<16x32xf32>
    %368 = tpu.matmul %365, %367, %cst_119 {dimension_numbers = #tpu.dot_dimension_numbers<[1], [0], [0], [1], [0, 0, 1, 1], [], []>} : vector<16x20xf32>, vector<20x32xf32>, vector<16x32xf32> -> vector<16x32xf32>
    %c17 = arith.constant 17 : index
    %c0_120 = arith.constant 0 : index
    %369 = vector.load %arg3[%c17, %c0_120] : memref<64x64xf32, #tpu.memory_space<vmem>>, vector<1x32xf32>
    %370 = vector.shape_cast %369 : vector<1x32xf32> to vector<32xf32>
    %371 = vector.shape_cast %370 : vector<32xf32> to vector<1x32xf32>
    %372 = vector.broadcast %371 : vector<1x32xf32> to vector<16x32xf32>
    %373 = arith.addf %368, %372 : vector<16x32xf32>
    %cst_121 = arith.constant 5.000000e-01 : f32
    %374 = vector.broadcast %cst_121 : f32 to vector<16x32xf32>
    %375 = arith.mulf %374, %373 : vector<16x32xf32>
    %cst_122 = arith.constant 0.707106769 : f32
    %376 = vector.broadcast %cst_122 : f32 to vector<16x32xf32>
    %377 = arith.mulf %373, %376 : vector<16x32xf32>
    %378 = math.erf %377 : vector<16x32xf32>
    %cst_123 = arith.constant 1.000000e+00 : f32
    %379 = vector.broadcast %cst_123 : f32 to vector<16x32xf32>
    %380 = arith.addf %379, %378 : vector<16x32xf32>
    %381 = arith.mulf %375, %380 : vector<16x32xf32>
    %c20 = arith.constant 20 : index
    %c0_124 = arith.constant 0 : index
    %382 = vector.load %arg3[%c20, %c0_124] : memref<64x64xf32, #tpu.memory_space<vmem>>, vector<1x32xf32>
    %383 = vector.shape_cast %382 : vector<1x32xf32> to vector<32xf32>
    %c23 = arith.constant 23 : index
    %c0_125 = arith.constant 0 : index
    %384 = vector.load %arg3[%c23, %c0_125] : memref<64x64xf32, #tpu.memory_space<vmem>>, vector<1x32xf32>
    %385 = vector.shape_cast %384 : vector<1x32xf32> to vector<32xf32>
    %cst_126 = arith.constant dense<0.000000e+00> : vector<16xf32>
    %386 = vector.multi_reduction <add>, %381, %cst_126 [1] : vector<16x32xf32> to vector<16xf32>
    %387 = vector.shape_cast %386 : vector<16xf32> to vector<16x1xf32>
    %cst_127 = arith.constant 3.200000e+01 : f32
    %388 = vector.broadcast %cst_127 : f32 to vector<16x1xf32>
    %389 = arith.divf %387, %388 : vector<16x1xf32>
    %390 = vector.broadcast %389 : vector<16x1xf32> to vector<16x32xf32>
    %391 = arith.subf %381, %390 : vector<16x32xf32>
    %392 = arith.mulf %391, %391 : vector<16x32xf32>
    %cst_128 = arith.constant dense<0.000000e+00> : vector<16xf32>
    %393 = vector.multi_reduction <add>, %392, %cst_128 [1] : vector<16x32xf32> to vector<16xf32>
    %394 = vector.shape_cast %393 : vector<16xf32> to vector<16x1xf32>
    %cst_129 = arith.constant 3.200000e+01 : f32
    %395 = vector.broadcast %cst_129 : f32 to vector<16x1xf32>
    %396 = arith.divf %394, %395 : vector<16x1xf32>
    %397 = vector.broadcast %389 : vector<16x1xf32> to vector<16x32xf32>
    %398 = arith.subf %381, %397 : vector<16x32xf32>
    %cst_130 = arith.constant 9.99999974E-6 : f32
    %399 = vector.broadcast %cst_130 : f32 to vector<16x1xf32>
    %400 = arith.addf %396, %399 : vector<16x1xf32>
    %401 = math.rsqrt %400 : vector<16x1xf32>
    %402 = vector.broadcast %401 : vector<16x1xf32> to vector<16x32xf32>
    %403 = arith.mulf %398, %402 : vector<16x32xf32>
    %404 = vector.shape_cast %383 : vector<32xf32> to vector<1x32xf32>
    %405 = vector.broadcast %404 : vector<1x32xf32> to vector<16x32xf32>
    %406 = arith.mulf %403, %405 : vector<16x32xf32>
    %407 = vector.shape_cast %385 : vector<32xf32> to vector<1x32xf32>
    %408 = vector.broadcast %407 : vector<1x32xf32> to vector<16x32xf32>
    %409 = arith.addf %406, %408 : vector<16x32xf32>
    %c2_131 = arith.constant 2 : index
    %c0_132 = arith.constant 0 : index
    %c0_133 = arith.constant 0 : index
    %410 = vector.load %arg6[%c2_131, %c0_132, %c0_133] : memref<3x32x64xf32, #tpu.memory_space<vmem>>, vector<1x32x64xf32>
    %411 = vector.shape_cast %410 : vector<1x32x64xf32> to vector<32x64xf32>
    %cst_134 = arith.constant dense<0.000000e+00> : vector<16x64xf32>
    %412 = tpu.matmul %409, %411, %cst_134 {dimension_numbers = #tpu.dot_dimension_numbers<[1], [0], [0], [1], [0, 0, 1, 1], [], []>} : vector<16x32xf32>, vector<32x64xf32>, vector<16x64xf32> -> vector<16x64xf32>
    %c26 = arith.constant 26 : index
    %c0_135 = arith.constant 0 : index
    %413 = vector.load %arg3[%c26, %c0_135] : memref<64x64xf32, #tpu.memory_space<vmem>>, vector<1x64xf32>
    %414 = vector.shape_cast %413 : vector<1x64xf32> to vector<64xf32>
    %415 = vector.shape_cast %414 : vector<64xf32> to vector<1x64xf32>
    %416 = vector.broadcast %415 : vector<1x64xf32> to vector<16x64xf32>
    %417 = arith.addf %412, %416 : vector<16x64xf32>
    %cst_136 = arith.constant 5.000000e-01 : f32
    %418 = vector.broadcast %cst_136 : f32 to vector<16x64xf32>
    %419 = arith.mulf %418, %417 : vector<16x64xf32>
    %cst_137 = arith.constant 0.707106769 : f32
    %420 = vector.broadcast %cst_137 : f32 to vector<16x64xf32>
    %421 = arith.mulf %417, %420 : vector<16x64xf32>
    %422 = math.erf %421 : vector<16x64xf32>
    %cst_138 = arith.constant 1.000000e+00 : f32
    %423 = vector.broadcast %cst_138 : f32 to vector<16x64xf32>
    %424 = arith.addf %423, %422 : vector<16x64xf32>
    %425 = arith.mulf %419, %424 : vector<16x64xf32>
    %c29 = arith.constant 29 : index
    %c0_139 = arith.constant 0 : index
    %426 = vector.load %arg3[%c29, %c0_139] : memref<64x64xf32, #tpu.memory_space<vmem>>, vector<1x64xf32>
    %427 = vector.shape_cast %426 : vector<1x64xf32> to vector<64xf32>
    %c32 = arith.constant 32 : index
    %c0_140 = arith.constant 0 : index
    %428 = vector.load %arg3[%c32, %c0_140] : memref<64x64xf32, #tpu.memory_space<vmem>>, vector<1x64xf32>
    %429 = vector.shape_cast %428 : vector<1x64xf32> to vector<64xf32>
    %cst_141 = arith.constant dense<0.000000e+00> : vector<16xf32>
    %430 = vector.multi_reduction <add>, %425, %cst_141 [1] : vector<16x64xf32> to vector<16xf32>
    %431 = vector.shape_cast %430 : vector<16xf32> to vector<16x1xf32>
    %cst_142 = arith.constant 6.400000e+01 : f32
    %432 = vector.broadcast %cst_142 : f32 to vector<16x1xf32>
    %433 = arith.divf %431, %432 : vector<16x1xf32>
    %434 = vector.broadcast %433 : vector<16x1xf32> to vector<16x64xf32>
    %435 = arith.subf %425, %434 : vector<16x64xf32>
    %436 = arith.mulf %435, %435 : vector<16x64xf32>
    %cst_143 = arith.constant dense<0.000000e+00> : vector<16xf32>
    %437 = vector.multi_reduction <add>, %436, %cst_143 [1] : vector<16x64xf32> to vector<16xf32>
    %438 = vector.shape_cast %437 : vector<16xf32> to vector<16x1xf32>
    %cst_144 = arith.constant 6.400000e+01 : f32
    %439 = vector.broadcast %cst_144 : f32 to vector<16x1xf32>
    %440 = arith.divf %438, %439 : vector<16x1xf32>
    %441 = vector.broadcast %433 : vector<16x1xf32> to vector<16x64xf32>
    %442 = arith.subf %425, %441 : vector<16x64xf32>
    %cst_145 = arith.constant 9.99999974E-6 : f32
    %443 = vector.broadcast %cst_145 : f32 to vector<16x1xf32>
    %444 = arith.addf %440, %443 : vector<16x1xf32>
    %445 = math.rsqrt %444 : vector<16x1xf32>
    %446 = vector.broadcast %445 : vector<16x1xf32> to vector<16x64xf32>
    %447 = arith.mulf %442, %446 : vector<16x64xf32>
    %448 = vector.shape_cast %427 : vector<64xf32> to vector<1x64xf32>
    %449 = vector.broadcast %448 : vector<1x64xf32> to vector<16x64xf32>
    %450 = arith.mulf %447, %449 : vector<16x64xf32>
    %451 = vector.shape_cast %429 : vector<64xf32> to vector<1x64xf32>
    %452 = vector.broadcast %451 : vector<1x64xf32> to vector<16x64xf32>
    %453 = arith.addf %450, %452 : vector<16x64xf32>
    %c2_146 = arith.constant 2 : index
    %c0_147 = arith.constant 0 : index
    %c0_148 = arith.constant 0 : index
    %454 = vector.load %arg4[%c2_146, %c0_147, %c0_148] : memref<11x64x64xf32, #tpu.memory_space<vmem>>, vector<1x64x64xf32>
    %455 = vector.shape_cast %454 : vector<1x64x64xf32> to vector<64x64xf32>
    %cst_149 = arith.constant dense<0.000000e+00> : vector<16x64xf32>
    %456 = tpu.matmul %453, %455, %cst_149 {dimension_numbers = #tpu.dot_dimension_numbers<[1], [0], [0], [1], [0, 0, 1, 1], [], []>} : vector<16x64xf32>, vector<64x64xf32>, vector<16x64xf32> -> vector<16x64xf32>
    %c35 = arith.constant 35 : index
    %c0_150 = arith.constant 0 : index
    %457 = vector.load %arg3[%c35, %c0_150] : memref<64x64xf32, #tpu.memory_space<vmem>>, vector<1x64xf32>
    %458 = vector.shape_cast %457 : vector<1x64xf32> to vector<64xf32>
    %459 = vector.shape_cast %458 : vector<64xf32> to vector<1x64xf32>
    %460 = vector.broadcast %459 : vector<1x64xf32> to vector<16x64xf32>
    %461 = arith.addf %456, %460 : vector<16x64xf32>
    %c38 = arith.constant 38 : index
    %c0_151 = arith.constant 0 : index
    %462 = vector.load %arg3[%c38, %c0_151] : memref<64x64xf32, #tpu.memory_space<vmem>>, vector<1x64xf32>
    %463 = vector.shape_cast %462 : vector<1x64xf32> to vector<64xf32>
    %c41 = arith.constant 41 : index
    %c0_152 = arith.constant 0 : index
    %464 = vector.load %arg3[%c41, %c0_152] : memref<64x64xf32, #tpu.memory_space<vmem>>, vector<1x64xf32>
    %465 = vector.shape_cast %464 : vector<1x64xf32> to vector<64xf32>
    %cst_153 = arith.constant dense<0.000000e+00> : vector<16xf32>
    %466 = vector.multi_reduction <add>, %461, %cst_153 [1] : vector<16x64xf32> to vector<16xf32>
    %467 = vector.shape_cast %466 : vector<16xf32> to vector<16x1xf32>
    %cst_154 = arith.constant 6.400000e+01 : f32
    %468 = vector.broadcast %cst_154 : f32 to vector<16x1xf32>
    %469 = arith.divf %467, %468 : vector<16x1xf32>
    %470 = vector.broadcast %469 : vector<16x1xf32> to vector<16x64xf32>
    %471 = arith.subf %461, %470 : vector<16x64xf32>
    %472 = arith.mulf %471, %471 : vector<16x64xf32>
    %cst_155 = arith.constant dense<0.000000e+00> : vector<16xf32>
    %473 = vector.multi_reduction <add>, %472, %cst_155 [1] : vector<16x64xf32> to vector<16xf32>
    %474 = vector.shape_cast %473 : vector<16xf32> to vector<16x1xf32>
    %cst_156 = arith.constant 6.400000e+01 : f32
    %475 = vector.broadcast %cst_156 : f32 to vector<16x1xf32>
    %476 = arith.divf %474, %475 : vector<16x1xf32>
    %477 = vector.broadcast %469 : vector<16x1xf32> to vector<16x64xf32>
    %478 = arith.subf %461, %477 : vector<16x64xf32>
    %cst_157 = arith.constant 9.99999974E-6 : f32
    %479 = vector.broadcast %cst_157 : f32 to vector<16x1xf32>
    %480 = arith.addf %476, %479 : vector<16x1xf32>
    %481 = math.rsqrt %480 : vector<16x1xf32>
    %482 = vector.broadcast %481 : vector<16x1xf32> to vector<16x64xf32>
    %483 = arith.mulf %478, %482 : vector<16x64xf32>
    %484 = vector.shape_cast %463 : vector<64xf32> to vector<1x64xf32>
    %485 = vector.broadcast %484 : vector<1x64xf32> to vector<16x64xf32>
    %486 = arith.mulf %483, %485 : vector<16x64xf32>
    %487 = vector.shape_cast %465 : vector<64xf32> to vector<1x64xf32>
    %488 = vector.broadcast %487 : vector<1x64xf32> to vector<16x64xf32>
    %489 = arith.addf %486, %488 : vector<16x64xf32>
    %c44 = arith.constant 44 : index
    %c0_158 = arith.constant 0 : index
    %490 = vector.load %arg3[%c44, %c0_158] : memref<64x64xf32, #tpu.memory_space<vmem>>, vector<1x64xf32>
    %491 = vector.shape_cast %490 : vector<1x64xf32> to vector<64xf32>
    %492 = vector.shape_cast %491 : vector<64xf32> to vector<1x64xf32>
    %493 = vector.broadcast %492 : vector<1x64xf32> to vector<16x64xf32>
    %494 = arith.addf %489, %493 : vector<16x64xf32>
    %c32_159 = arith.constant 32 : index
    %c0_160 = arith.constant 0 : index
    %495 = vector.load %arg12[%c32_159, %c0_160] : memref<48x64xf32, #tpu.memory_space<vmem>>, vector<16x64xf32>
    tpu.vector_store %arg12[%c32_159, %c0_160], %494 {strides = array<i32>} : memref<48x64xf32, #tpu.memory_space<vmem>>, vector<16x64xf32>,
    %c0_161 = arith.constant 0 : index
    %c0_162 = arith.constant 0 : index
    %496 = vector.load %arg12[%c0_161, %c0_162] : memref<48x64xf32, #tpu.memory_space<vmem>>, vector<48x64xf32>
    %497 = arith.truncf %496 : vector<48x64xf32> to vector<48x64xbf16>
    %c0_163 = arith.constant 0 : index
    %c0_164 = arith.constant 0 : index
    %498 = vector.load %arg13[%c0_163, %c0_164] : memref<48x64xbf16, #tpu.memory_space<vmem>>, vector<48x64xbf16>
    tpu.vector_store %arg13[%c0_163, %c0_164], %497 {strides = array<i32>} : memref<48x64xbf16, #tpu.memory_space<vmem>>, vector<48x64xbf16>,
    %c0_165 = arith.constant 0 : index
    %c0_166 = arith.constant 0 : index
    %499 = vector.load %arg8[%c0_165, %c0_166] : memref<128x64xf32, #tpu.memory_space<vmem>>, vector<128x64xf32>
    %cst_167 = arith.constant dense<0.000000e+00> : vector<128x48xf32>
    %500 = tpu.matmul %499, %496, %cst_167 {dimension_numbers = #tpu.dot_dimension_numbers<[1], [1], [0], [0], [0, 0, 1, 0], [], []>} : vector<128x64xf32>, vector<48x64xf32>, vector<128x48xf32> -> vector<128x48xf32>
    %c0_168 = arith.constant 0 : index
    %c0_169 = arith.constant 0 : index
    %501 = vector.load %arg9[%c0_168, %c0_169] : memref<128x1xf32, #tpu.memory_space<vmem>>, vector<128x1xf32>
    %502 = vector.broadcast %501 : vector<128x1xf32> to vector<128x48xf32>
    %503 = arith.addf %500, %502 : vector<128x48xf32>
    %c0_170 = arith.constant 0 : index
    %c0_171 = arith.constant 0 : index
    %504 = vector.load %arg14[%c0_170, %c0_171] : memref<128x48xf32, #tpu.memory_space<vmem>>, vector<128x48xf32>
    tpu.vector_store %arg14[%c0_170, %c0_171], %503 {strides = array<i32>} : memref<128x48xf32, #tpu.memory_space<vmem>>, vector<128x48xf32>,
    %cst_172 = arith.constant 0.000000e+00 : f32
    %505 = vector.broadcast %cst_172 : f32 to vector<48x64xf32>
    %c0_173 = arith.constant 0 : index
    %c0_174 = arith.constant 0 : index
    %506 = vector.load %arg15[%c0_173, %c0_174] : memref<48x64xf32, #tpu.memory_space<vmem>>, vector<48x64xf32>
    tpu.vector_store %arg15[%c0_173, %c0_174], %505 {strides = array<i32>} : memref<48x64xf32, #tpu.memory_space<vmem>>, vector<48x64xf32>,
    %c0_i32_175 = arith.constant 0 : i32
    %c8_i32 = arith.constant 8 : i32
    %507 = arith.addi %c0_i32_175, %c8_i32 : i32
    %c1_i32_176 = arith.constant 1 : i32
    scf.for %arg16 = %c0_i32_175 to %507 step %c1_i32_176  : i32 {
      %c8_i32_273 = arith.constant 8 : i32
      %742 = arith.muli %arg16, %c8_i32_273 : i32
      %743 = tpu.assume_multiple %742, 8 : i32
      %c8_i32_274 = arith.constant 8 : i32
      %744 = arith.muli %arg16, %c8_i32_274 : i32
      %c64_i32 = arith.constant 64 : i32
      %745 = arith.addi %c64_i32, %744 : i32
      %746 = tpu.assume_multiple %745, 8 : i32
      %747 = arith.index_cast %743 : i32 to index
      %c0_275 = arith.constant 0 : index
      %748 = vector.load %arg14[%747, %c0_275] : memref<128x48xf32, #tpu.memory_space<vmem>>, vector<8x48xf32>
      %749 = tpu.transpose %748, [1, 0] : vector<8x48xf32> -> vector<48x8xf32>
      %750 = arith.truncf %749 : vector<48x8xf32> to vector<48x8xbf16>
      %751 = arith.index_cast %746 : i32 to index
      %c0_276 = arith.constant 0 : index
      %752 = vector.load %arg14[%751, %c0_276] : memref<128x48xf32, #tpu.memory_space<vmem>>, vector<8x48xf32>
      %753 = arith.truncf %752 : vector<8x48xf32> to vector<8x48xbf16>
      %cst_277 = arith.constant dense<0.000000e+00> : vector<48x48xf32>
      %754 = tpu.matmul %750, %753, %cst_277 {dimension_numbers = #tpu.dot_dimension_numbers<[1], [0], [0], [1], [0, 0, 1, 1], [], []>} : vector<48x8xbf16>, vector<8x48xbf16>, vector<48x48xf32> -> vector<48x48xf32>
      %cst_278 = arith.constant dense<0xFF800000> : vector<48xf32>
      %755 = vector.multi_reduction <maximumf>, %754, %cst_278 [1] : vector<48x48xf32> to vector<48xf32>
      %756 = vector.shape_cast %755 : vector<48xf32> to vector<48x1xf32>
      %757 = vector.broadcast %756 : vector<48x1xf32> to vector<48x48xf32>
      %758 = arith.subf %754, %757 : vector<48x48xf32>
      %759 = math.exp %758 : vector<48x48xf32>
      %cst_279 = arith.constant dense<0.000000e+00> : vector<48xf32>
      %760 = vector.multi_reduction <add>, %759, %cst_279 [1] : vector<48x48xf32> to vector<48xf32>
      %761 = vector.shape_cast %760 : vector<48xf32> to vector<48x1xf32>
      %c0_280 = arith.constant 0 : index
      %c0_281 = arith.constant 0 : index
      %762 = vector.load %arg13[%c0_280, %c0_281] : memref<48x64xbf16, #tpu.memory_space<vmem>>, vector<48x64xbf16>
      %763 = arith.index_cast %arg16 : i32 to index
      %c0_282 = arith.constant 0 : index
      %c0_283 = arith.constant 0 : index
      %764 = vector.load %arg10[%763, %c0_282, %c0_283] : memref<8x64x64xbf16, #tpu.memory_space<vmem>>, vector<1x64x64xbf16>
      %765 = vector.shape_cast %764 : vector<1x64x64xbf16> to vector<64x64xbf16>
      %cst_284 = arith.constant dense<0.000000e+00> : vector<48x64xf32>
      %766 = tpu.matmul %762, %765, %cst_284 {dimension_numbers = #tpu.dot_dimension_numbers<[1], [0], [0], [1], [0, 0, 1, 1], [], []>} : vector<48x64xbf16>, vector<64x64xbf16>, vector<48x64xf32> -> vector<48x64xf32>
      %767 = arith.truncf %759 : vector<48x48xf32> to vector<48x48xbf16>
      %768 = arith.truncf %766 : vector<48x64xf32> to vector<48x64xbf16>
      %cst_285 = arith.constant dense<0.000000e+00> : vector<48x64xf32>
      %769 = tpu.matmul %767, %768, %cst_285 {dimension_numbers = #tpu.dot_dimension_numbers<[1], [0], [0], [1], [0, 0, 1, 1], [], []>} : vector<48x48xbf16>, vector<48x64xbf16>, vector<48x64xf32> -> vector<48x64xf32>
      %c0_286 = arith.constant 0 : index
      %c0_287 = arith.constant 0 : index
      %770 = vector.load %arg15[%c0_286, %c0_287] : memref<48x64xf32, #tpu.memory_space<vmem>>, vector<48x64xf32>
      %771 = tpu.reciprocal %761 : vector<48x1xf32> -> vector<48x1xf32>
      %772 = vector.broadcast %771 : vector<48x1xf32> to vector<48x64xf32>
      %773 = arith.mulf %769, %772 : vector<48x64xf32>
      %774 = arith.addf %770, %773 : vector<48x64xf32>
      %c0_288 = arith.constant 0 : index
      %c0_289 = arith.constant 0 : index
      %775 = vector.load %arg15[%c0_288, %c0_289] : memref<48x64xf32, #tpu.memory_space<vmem>>, vector<48x64xf32>
      tpu.vector_store %arg15[%c0_288, %c0_289], %774 {strides = array<i32>} : memref<48x64xf32, #tpu.memory_space<vmem>>, vector<48x64xf32>,
    }
    %c8_i32_177 = arith.constant 8 : i32
    %c0_178 = arith.constant 0 : index
    %c0_179 = arith.constant 0 : index
    %508 = vector.load %arg15[%c0_178, %c0_179] : memref<48x64xf32, #tpu.memory_space<vmem>>, vector<48x64xf32>
    %c48 = arith.constant 48 : index
    %c0_180 = arith.constant 0 : index
    %509 = vector.load %arg3[%c48, %c0_180] : memref<64x64xf32, #tpu.memory_space<vmem>>, vector<1x64xf32>
    %510 = vector.shape_cast %509 : vector<1x64xf32> to vector<64xf32>
    %511 = vector.shape_cast %510 : vector<64xf32> to vector<1x64xf32>
    %512 = vector.broadcast %511 : vector<1x64xf32> to vector<48x64xf32>
    %513 = arith.addf %508, %512 : vector<48x64xf32>
    %c0_181 = arith.constant 0 : index
    %c0_182 = arith.constant 0 : index
    %514 = vector.load %arg12[%c0_181, %c0_182] : memref<48x64xf32, #tpu.memory_space<vmem>>, vector<48x64xf32>
    %515 = arith.addf %513, %514 : vector<48x64xf32>
    %c49 = arith.constant 49 : index
    %c0_183 = arith.constant 0 : index
    %516 = vector.load %arg3[%c49, %c0_183] : memref<64x64xf32, #tpu.memory_space<vmem>>, vector<1x64xf32>
    %517 = vector.shape_cast %516 : vector<1x64xf32> to vector<64xf32>
    %c50 = arith.constant 50 : index
    %c0_184 = arith.constant 0 : index
    %518 = vector.load %arg3[%c50, %c0_184] : memref<64x64xf32, #tpu.memory_space<vmem>>, vector<1x64xf32>
    %519 = vector.shape_cast %518 : vector<1x64xf32> to vector<64xf32>
    %cst_185 = arith.constant dense<0.000000e+00> : vector<48xf32>
    %520 = vector.multi_reduction <add>, %515, %cst_185 [1] : vector<48x64xf32> to vector<48xf32>
    %521 = vector.shape_cast %520 : vector<48xf32> to vector<48x1xf32>
    %cst_186 = arith.constant 6.400000e+01 : f32
    %522 = vector.broadcast %cst_186 : f32 to vector<48x1xf32>
    %523 = arith.divf %521, %522 : vector<48x1xf32>
    %524 = vector.broadcast %523 : vector<48x1xf32> to vector<48x64xf32>
    %525 = arith.subf %515, %524 : vector<48x64xf32>
    %526 = arith.mulf %525, %525 : vector<48x64xf32>
    %cst_187 = arith.constant dense<0.000000e+00> : vector<48xf32>
    %527 = vector.multi_reduction <add>, %526, %cst_187 [1] : vector<48x64xf32> to vector<48xf32>
    %528 = vector.shape_cast %527 : vector<48xf32> to vector<48x1xf32>
    %cst_188 = arith.constant 6.400000e+01 : f32
    %529 = vector.broadcast %cst_188 : f32 to vector<48x1xf32>
    %530 = arith.divf %528, %529 : vector<48x1xf32>
    %531 = vector.broadcast %523 : vector<48x1xf32> to vector<48x64xf32>
    %532 = arith.subf %515, %531 : vector<48x64xf32>
    %cst_189 = arith.constant 9.99999974E-6 : f32
    %533 = vector.broadcast %cst_189 : f32 to vector<48x1xf32>
    %534 = arith.addf %530, %533 : vector<48x1xf32>
    %535 = math.rsqrt %534 : vector<48x1xf32>
    %536 = vector.broadcast %535 : vector<48x1xf32> to vector<48x64xf32>
    %537 = arith.mulf %532, %536 : vector<48x64xf32>
    %538 = vector.shape_cast %517 : vector<64xf32> to vector<1x64xf32>
    %539 = vector.broadcast %538 : vector<1x64xf32> to vector<48x64xf32>
    %540 = arith.mulf %537, %539 : vector<48x64xf32>
    %541 = vector.shape_cast %519 : vector<64xf32> to vector<1x64xf32>
    %542 = vector.broadcast %541 : vector<1x64xf32> to vector<48x64xf32>
    %543 = arith.addf %540, %542 : vector<48x64xf32>
    %c3_190 = arith.constant 3 : index
    %c0_191 = arith.constant 0 : index
    %c0_192 = arith.constant 0 : index
    %544 = vector.load %arg4[%c3_190, %c0_191, %c0_192] : memref<11x64x64xf32, #tpu.memory_space<vmem>>, vector<1x64x64xf32>
    %545 = vector.shape_cast %544 : vector<1x64x64xf32> to vector<64x64xf32>
    %cst_193 = arith.constant dense<0.000000e+00> : vector<48x64xf32>
    %546 = tpu.matmul %543, %545, %cst_193 {dimension_numbers = #tpu.dot_dimension_numbers<[1], [0], [0], [1], [0, 0, 1, 1], [], []>} : vector<48x64xf32>, vector<64x64xf32>, vector<48x64xf32> -> vector<48x64xf32>
    %c51 = arith.constant 51 : index
    %c0_194 = arith.constant 0 : index
    %547 = vector.load %arg3[%c51, %c0_194] : memref<64x64xf32, #tpu.memory_space<vmem>>, vector<1x64xf32>
    %548 = vector.shape_cast %547 : vector<1x64xf32> to vector<64xf32>
    %549 = vector.shape_cast %548 : vector<64xf32> to vector<1x64xf32>
    %550 = vector.broadcast %549 : vector<1x64xf32> to vector<48x64xf32>
    %551 = arith.addf %546, %550 : vector<48x64xf32>
    %552 = vector.extract_strided_slice %551 {offsets = [0, 0], sizes = [16, 64], strides = [1, 1]} : vector<48x64xf32> to vector<16x64xf32>
    %553 = vector.extract_strided_slice %551 {offsets = [16, 0], sizes = [16, 64], strides = [1, 1]} : vector<48x64xf32> to vector<16x64xf32>
    %554 = vector.extract_strided_slice %551 {offsets = [32, 0], sizes = [16, 64], strides = [1, 1]} : vector<48x64xf32> to vector<16x64xf32>
    %c45 = arith.constant 45 : index
    %c0_195 = arith.constant 0 : index
    %555 = vector.load %arg3[%c45, %c0_195] : memref<64x64xf32, #tpu.memory_space<vmem>>, vector<1x64xf32>
    %556 = vector.shape_cast %555 : vector<1x64xf32> to vector<64xf32>
    %557 = vector.shape_cast %556 : vector<64xf32> to vector<1x64xf32>
    %558 = vector.broadcast %557 : vector<1x64xf32> to vector<16x64xf32>
    %559 = arith.mulf %552, %558 : vector<16x64xf32>
    %c46 = arith.constant 46 : index
    %c0_196 = arith.constant 0 : index
    %560 = vector.load %arg3[%c46, %c0_196] : memref<64x64xf32, #tpu.memory_space<vmem>>, vector<1x64xf32>
    %561 = vector.shape_cast %560 : vector<1x64xf32> to vector<64xf32>
    %562 = vector.shape_cast %561 : vector<64xf32> to vector<1x64xf32>
    %563 = vector.broadcast %562 : vector<1x64xf32> to vector<16x64xf32>
    %564 = arith.mulf %553, %563 : vector<16x64xf32>
    %c47 = arith.constant 47 : index
    %c0_197 = arith.constant 0 : index
    %565 = vector.load %arg3[%c47, %c0_197] : memref<64x64xf32, #tpu.memory_space<vmem>>, vector<1x64xf32>
    %566 = vector.shape_cast %565 : vector<1x64xf32> to vector<64xf32>
    %567 = vector.shape_cast %566 : vector<64xf32> to vector<1x64xf32>
    %568 = vector.broadcast %567 : vector<1x64xf32> to vector<16x64xf32>
    %569 = arith.mulf %554, %568 : vector<16x64xf32>
    %c4_198 = arith.constant 4 : index
    %c0_199 = arith.constant 0 : index
    %c0_200 = arith.constant 0 : index
    %570 = vector.load %arg4[%c4_198, %c0_199, %c0_200] : memref<11x64x64xf32, #tpu.memory_space<vmem>>, vector<1x64x64xf32>
    %571 = vector.shape_cast %570 : vector<1x64x64xf32> to vector<64x64xf32>
    %cst_201 = arith.constant dense<0.000000e+00> : vector<16x64xf32>
    %572 = tpu.matmul %559, %571, %cst_201 {dimension_numbers = #tpu.dot_dimension_numbers<[1], [0], [0], [1], [0, 0, 1, 1], [], []>} : vector<16x64xf32>, vector<64x64xf32>, vector<16x64xf32> -> vector<16x64xf32>
    %c5_202 = arith.constant 5 : index
    %c0_203 = arith.constant 0 : index
    %c0_204 = arith.constant 0 : index
    %573 = vector.load %arg4[%c5_202, %c0_203, %c0_204] : memref<11x64x64xf32, #tpu.memory_space<vmem>>, vector<1x64x64xf32>
    %574 = vector.shape_cast %573 : vector<1x64x64xf32> to vector<64x64xf32>
    %cst_205 = arith.constant dense<0.000000e+00> : vector<16x64xf32>
    %575 = tpu.matmul %564, %574, %cst_205 {dimension_numbers = #tpu.dot_dimension_numbers<[1], [0], [0], [1], [0, 0, 1, 1], [], []>} : vector<16x64xf32>, vector<64x64xf32>, vector<16x64xf32> -> vector<16x64xf32>
    %576 = arith.addf %572, %575 : vector<16x64xf32>
    %c52 = arith.constant 52 : index
    %c0_206 = arith.constant 0 : index
    %577 = vector.load %arg3[%c52, %c0_206] : memref<64x64xf32, #tpu.memory_space<vmem>>, vector<1x64xf32>
    %578 = vector.shape_cast %577 : vector<1x64xf32> to vector<64xf32>
    %579 = vector.shape_cast %578 : vector<64xf32> to vector<1x64xf32>
    %580 = vector.broadcast %579 : vector<1x64xf32> to vector<16x64xf32>
    %581 = arith.addf %576, %580 : vector<16x64xf32>
    %cst_207 = arith.constant 5.000000e-01 : f32
    %582 = vector.broadcast %cst_207 : f32 to vector<16x64xf32>
    %583 = arith.mulf %582, %581 : vector<16x64xf32>
    %cst_208 = arith.constant 0.707106769 : f32
    %584 = vector.broadcast %cst_208 : f32 to vector<16x64xf32>
    %585 = arith.mulf %581, %584 : vector<16x64xf32>
    %586 = math.erf %585 : vector<16x64xf32>
    %cst_209 = arith.constant 1.000000e+00 : f32
    %587 = vector.broadcast %cst_209 : f32 to vector<16x64xf32>
    %588 = arith.addf %587, %586 : vector<16x64xf32>
    %589 = arith.mulf %583, %588 : vector<16x64xf32>
    %c53 = arith.constant 53 : index
    %c0_210 = arith.constant 0 : index
    %590 = vector.load %arg3[%c53, %c0_210] : memref<64x64xf32, #tpu.memory_space<vmem>>, vector<1x64xf32>
    %591 = vector.shape_cast %590 : vector<1x64xf32> to vector<64xf32>
    %c54 = arith.constant 54 : index
    %c0_211 = arith.constant 0 : index
    %592 = vector.load %arg3[%c54, %c0_211] : memref<64x64xf32, #tpu.memory_space<vmem>>, vector<1x64xf32>
    %593 = vector.shape_cast %592 : vector<1x64xf32> to vector<64xf32>
    %cst_212 = arith.constant dense<0.000000e+00> : vector<16xf32>
    %594 = vector.multi_reduction <add>, %589, %cst_212 [1] : vector<16x64xf32> to vector<16xf32>
    %595 = vector.shape_cast %594 : vector<16xf32> to vector<16x1xf32>
    %cst_213 = arith.constant 6.400000e+01 : f32
    %596 = vector.broadcast %cst_213 : f32 to vector<16x1xf32>
    %597 = arith.divf %595, %596 : vector<16x1xf32>
    %598 = vector.broadcast %597 : vector<16x1xf32> to vector<16x64xf32>
    %599 = arith.subf %589, %598 : vector<16x64xf32>
    %600 = arith.mulf %599, %599 : vector<16x64xf32>
    %cst_214 = arith.constant dense<0.000000e+00> : vector<16xf32>
    %601 = vector.multi_reduction <add>, %600, %cst_214 [1] : vector<16x64xf32> to vector<16xf32>
    %602 = vector.shape_cast %601 : vector<16xf32> to vector<16x1xf32>
    %cst_215 = arith.constant 6.400000e+01 : f32
    %603 = vector.broadcast %cst_215 : f32 to vector<16x1xf32>
    %604 = arith.divf %602, %603 : vector<16x1xf32>
    %605 = vector.broadcast %597 : vector<16x1xf32> to vector<16x64xf32>
    %606 = arith.subf %589, %605 : vector<16x64xf32>
    %cst_216 = arith.constant 9.99999974E-6 : f32
    %607 = vector.broadcast %cst_216 : f32 to vector<16x1xf32>
    %608 = arith.addf %604, %607 : vector<16x1xf32>
    %609 = math.rsqrt %608 : vector<16x1xf32>
    %610 = vector.broadcast %609 : vector<16x1xf32> to vector<16x64xf32>
    %611 = arith.mulf %606, %610 : vector<16x64xf32>
    %612 = vector.shape_cast %591 : vector<64xf32> to vector<1x64xf32>
    %613 = vector.broadcast %612 : vector<1x64xf32> to vector<16x64xf32>
    %614 = arith.mulf %611, %613 : vector<16x64xf32>
    %615 = vector.shape_cast %593 : vector<64xf32> to vector<1x64xf32>
    %616 = vector.broadcast %615 : vector<1x64xf32> to vector<16x64xf32>
    %617 = arith.addf %614, %616 : vector<16x64xf32>
    %c6_217 = arith.constant 6 : index
    %c0_218 = arith.constant 0 : index
    %c0_219 = arith.constant 0 : index
    %618 = vector.load %arg4[%c6_217, %c0_218, %c0_219] : memref<11x64x64xf32, #tpu.memory_space<vmem>>, vector<1x64x64xf32>
    %619 = vector.shape_cast %618 : vector<1x64x64xf32> to vector<64x64xf32>
    %cst_220 = arith.constant dense<0.000000e+00> : vector<16x64xf32>
    %620 = tpu.matmul %617, %619, %cst_220 {dimension_numbers = #tpu.dot_dimension_numbers<[1], [0], [0], [1], [0, 0, 1, 1], [], []>} : vector<16x64xf32>, vector<64x64xf32>, vector<16x64xf32> -> vector<16x64xf32>
    %c7_221 = arith.constant 7 : index
    %c0_222 = arith.constant 0 : index
    %c0_223 = arith.constant 0 : index
    %621 = vector.load %arg4[%c7_221, %c0_222, %c0_223] : memref<11x64x64xf32, #tpu.memory_space<vmem>>, vector<1x64x64xf32>
    %622 = vector.shape_cast %621 : vector<1x64x64xf32> to vector<64x64xf32>
    %cst_224 = arith.constant dense<0.000000e+00> : vector<16x64xf32>
    %623 = tpu.matmul %569, %622, %cst_224 {dimension_numbers = #tpu.dot_dimension_numbers<[1], [0], [0], [1], [0, 0, 1, 1], [], []>} : vector<16x64xf32>, vector<64x64xf32>, vector<16x64xf32> -> vector<16x64xf32>
    %624 = arith.addf %620, %623 : vector<16x64xf32>
    %c55 = arith.constant 55 : index
    %c0_225 = arith.constant 0 : index
    %625 = vector.load %arg3[%c55, %c0_225] : memref<64x64xf32, #tpu.memory_space<vmem>>, vector<1x64xf32>
    %626 = vector.shape_cast %625 : vector<1x64xf32> to vector<64xf32>
    %627 = vector.shape_cast %626 : vector<64xf32> to vector<1x64xf32>
    %628 = vector.broadcast %627 : vector<1x64xf32> to vector<16x64xf32>
    %629 = arith.addf %624, %628 : vector<16x64xf32>
    %cst_226 = arith.constant 5.000000e-01 : f32
    %630 = vector.broadcast %cst_226 : f32 to vector<16x64xf32>
    %631 = arith.mulf %630, %629 : vector<16x64xf32>
    %cst_227 = arith.constant 0.707106769 : f32
    %632 = vector.broadcast %cst_227 : f32 to vector<16x64xf32>
    %633 = arith.mulf %629, %632 : vector<16x64xf32>
    %634 = math.erf %633 : vector<16x64xf32>
    %cst_228 = arith.constant 1.000000e+00 : f32
    %635 = vector.broadcast %cst_228 : f32 to vector<16x64xf32>
    %636 = arith.addf %635, %634 : vector<16x64xf32>
    %637 = arith.mulf %631, %636 : vector<16x64xf32>
    %c56 = arith.constant 56 : index
    %c0_229 = arith.constant 0 : index
    %638 = vector.load %arg3[%c56, %c0_229] : memref<64x64xf32, #tpu.memory_space<vmem>>, vector<1x64xf32>
    %639 = vector.shape_cast %638 : vector<1x64xf32> to vector<64xf32>
    %c57 = arith.constant 57 : index
    %c0_230 = arith.constant 0 : index
    %640 = vector.load %arg3[%c57, %c0_230] : memref<64x64xf32, #tpu.memory_space<vmem>>, vector<1x64xf32>
    %641 = vector.shape_cast %640 : vector<1x64xf32> to vector<64xf32>
    %cst_231 = arith.constant dense<0.000000e+00> : vector<16xf32>
    %642 = vector.multi_reduction <add>, %637, %cst_231 [1] : vector<16x64xf32> to vector<16xf32>
    %643 = vector.shape_cast %642 : vector<16xf32> to vector<16x1xf32>
    %cst_232 = arith.constant 6.400000e+01 : f32
    %644 = vector.broadcast %cst_232 : f32 to vector<16x1xf32>
    %645 = arith.divf %643, %644 : vector<16x1xf32>
    %646 = vector.broadcast %645 : vector<16x1xf32> to vector<16x64xf32>
    %647 = arith.subf %637, %646 : vector<16x64xf32>
    %648 = arith.mulf %647, %647 : vector<16x64xf32>
    %cst_233 = arith.constant dense<0.000000e+00> : vector<16xf32>
    %649 = vector.multi_reduction <add>, %648, %cst_233 [1] : vector<16x64xf32> to vector<16xf32>
    %650 = vector.shape_cast %649 : vector<16xf32> to vector<16x1xf32>
    %cst_234 = arith.constant 6.400000e+01 : f32
    %651 = vector.broadcast %cst_234 : f32 to vector<16x1xf32>
    %652 = arith.divf %650, %651 : vector<16x1xf32>
    %653 = vector.broadcast %645 : vector<16x1xf32> to vector<16x64xf32>
    %654 = arith.subf %637, %653 : vector<16x64xf32>
    %cst_235 = arith.constant 9.99999974E-6 : f32
    %655 = vector.broadcast %cst_235 : f32 to vector<16x1xf32>
    %656 = arith.addf %652, %655 : vector<16x1xf32>
    %657 = math.rsqrt %656 : vector<16x1xf32>
    %658 = vector.broadcast %657 : vector<16x1xf32> to vector<16x64xf32>
    %659 = arith.mulf %654, %658 : vector<16x64xf32>
    %660 = vector.shape_cast %639 : vector<64xf32> to vector<1x64xf32>
    %661 = vector.broadcast %660 : vector<1x64xf32> to vector<16x64xf32>
    %662 = arith.mulf %659, %661 : vector<16x64xf32>
    %663 = vector.shape_cast %641 : vector<64xf32> to vector<1x64xf32>
    %664 = vector.broadcast %663 : vector<1x64xf32> to vector<16x64xf32>
    %665 = arith.addf %662, %664 : vector<16x64xf32>
    %c0_236 = arith.constant 0 : index
    %c0_237 = arith.constant 0 : index
    %c0_238 = arith.constant 0 : index
    %666 = vector.load %arg2[%c0_236, %c0_237, %c0_238] : memref<1x16x40xf32, #tpu.memory_space<vmem>>, vector<1x16x40xf32>
    %667 = vector.shape_cast %666 : vector<1x16x40xf32> to vector<16x40xf32>
    %c0_239 = arith.constant 0 : index
    %c0_240 = arith.constant 0 : index
    %668 = vector.load %arg7[%c0_239, %c0_240] : memref<40x64xf32, #tpu.memory_space<vmem>>, vector<40x64xf32>
    %cst_241 = arith.constant dense<0.000000e+00> : vector<16x64xf32>
    %669 = tpu.matmul %667, %668, %cst_241 {dimension_numbers = #tpu.dot_dimension_numbers<[1], [0], [0], [1], [0, 0, 1, 1], [], []>} : vector<16x40xf32>, vector<40x64xf32>, vector<16x64xf32> -> vector<16x64xf32>
    %c58 = arith.constant 58 : index
    %c0_242 = arith.constant 0 : index
    %670 = vector.load %arg3[%c58, %c0_242] : memref<64x64xf32, #tpu.memory_space<vmem>>, vector<1x64xf32>
    %671 = vector.shape_cast %670 : vector<1x64xf32> to vector<64xf32>
    %672 = vector.shape_cast %671 : vector<64xf32> to vector<1x64xf32>
    %673 = vector.broadcast %672 : vector<1x64xf32> to vector<16x64xf32>
    %674 = arith.addf %669, %673 : vector<16x64xf32>
    %cst_243 = arith.constant 5.000000e-01 : f32
    %675 = vector.broadcast %cst_243 : f32 to vector<16x64xf32>
    %676 = arith.mulf %675, %674 : vector<16x64xf32>
    %cst_244 = arith.constant 0.707106769 : f32
    %677 = vector.broadcast %cst_244 : f32 to vector<16x64xf32>
    %678 = arith.mulf %674, %677 : vector<16x64xf32>
    %679 = math.erf %678 : vector<16x64xf32>
    %cst_245 = arith.constant 1.000000e+00 : f32
    %680 = vector.broadcast %cst_245 : f32 to vector<16x64xf32>
    %681 = arith.addf %680, %679 : vector<16x64xf32>
    %682 = arith.mulf %676, %681 : vector<16x64xf32>
    %c8_246 = arith.constant 8 : index
    %c0_247 = arith.constant 0 : index
    %c0_248 = arith.constant 0 : index
    %683 = vector.load %arg4[%c8_246, %c0_247, %c0_248] : memref<11x64x64xf32, #tpu.memory_space<vmem>>, vector<1x64x64xf32>
    %684 = vector.shape_cast %683 : vector<1x64x64xf32> to vector<64x64xf32>
    %cst_249 = arith.constant dense<0.000000e+00> : vector<16x64xf32>
    %685 = tpu.matmul %682, %684, %cst_249 {dimension_numbers = #tpu.dot_dimension_numbers<[1], [0], [0], [1], [0, 0, 1, 1], [], []>} : vector<16x64xf32>, vector<64x64xf32>, vector<16x64xf32> -> vector<16x64xf32>
    %c59 = arith.constant 59 : index
    %c0_250 = arith.constant 0 : index
    %686 = vector.load %arg3[%c59, %c0_250] : memref<64x64xf32, #tpu.memory_space<vmem>>, vector<1x64xf32>
    %687 = vector.shape_cast %686 : vector<1x64xf32> to vector<64xf32>
    %688 = vector.shape_cast %687 : vector<64xf32> to vector<1x64xf32>
    %689 = vector.broadcast %688 : vector<1x64xf32> to vector<16x64xf32>
    %690 = arith.addf %685, %689 : vector<16x64xf32>
    %c9_251 = arith.constant 9 : index
    %c0_252 = arith.constant 0 : index
    %c0_253 = arith.constant 0 : index
    %691 = vector.load %arg4[%c9_251, %c0_252, %c0_253] : memref<11x64x64xf32, #tpu.memory_space<vmem>>, vector<1x64x64xf32>
    %692 = vector.shape_cast %691 : vector<1x64x64xf32> to vector<64x64xf32>
    %cst_254 = arith.constant dense<0.000000e+00> : vector<16x64xf32>
    %693 = tpu.matmul %665, %692, %cst_254 {dimension_numbers = #tpu.dot_dimension_numbers<[1], [0], [0], [1], [0, 0, 1, 1], [], []>} : vector<16x64xf32>, vector<64x64xf32>, vector<16x64xf32> -> vector<16x64xf32>
    %c10_255 = arith.constant 10 : index
    %c0_256 = arith.constant 0 : index
    %c0_257 = arith.constant 0 : index
    %694 = vector.load %arg4[%c10_255, %c0_256, %c0_257] : memref<11x64x64xf32, #tpu.memory_space<vmem>>, vector<1x64x64xf32>
    %695 = vector.shape_cast %694 : vector<1x64x64xf32> to vector<64x64xf32>
    %cst_258 = arith.constant dense<0.000000e+00> : vector<16x64xf32>
    %696 = tpu.matmul %690, %695, %cst_258 {dimension_numbers = #tpu.dot_dimension_numbers<[1], [0], [0], [1], [0, 0, 1, 1], [], []>} : vector<16x64xf32>, vector<64x64xf32>, vector<16x64xf32> -> vector<16x64xf32>
    %697 = arith.addf %693, %696 : vector<16x64xf32>
    %c60 = arith.constant 60 : index
    %c0_259 = arith.constant 0 : index
    %698 = vector.load %arg3[%c60, %c0_259] : memref<64x64xf32, #tpu.memory_space<vmem>>, vector<1x64xf32>
    %699 = vector.shape_cast %698 : vector<1x64xf32> to vector<64xf32>
    %700 = vector.shape_cast %699 : vector<64xf32> to vector<1x64xf32>
    %701 = vector.broadcast %700 : vector<1x64xf32> to vector<16x64xf32>
    %702 = arith.addf %697, %701 : vector<16x64xf32>
    %cst_260 = arith.constant 5.000000e-01 : f32
    %703 = vector.broadcast %cst_260 : f32 to vector<16x64xf32>
    %704 = arith.mulf %703, %702 : vector<16x64xf32>
    %cst_261 = arith.constant 0.707106769 : f32
    %705 = vector.broadcast %cst_261 : f32 to vector<16x64xf32>
    %706 = arith.mulf %702, %705 : vector<16x64xf32>
    %707 = math.erf %706 : vector<16x64xf32>
    %cst_262 = arith.constant 1.000000e+00 : f32
    %708 = vector.broadcast %cst_262 : f32 to vector<16x64xf32>
    %709 = arith.addf %708, %707 : vector<16x64xf32>
    %710 = arith.mulf %704, %709 : vector<16x64xf32>
    %c61 = arith.constant 61 : index
    %c0_263 = arith.constant 0 : index
    %711 = vector.load %arg3[%c61, %c0_263] : memref<64x64xf32, #tpu.memory_space<vmem>>, vector<1x64xf32>
    %712 = vector.shape_cast %711 : vector<1x64xf32> to vector<64xf32>
    %c62 = arith.constant 62 : index
    %c0_264 = arith.constant 0 : index
    %713 = vector.load %arg3[%c62, %c0_264] : memref<64x64xf32, #tpu.memory_space<vmem>>, vector<1x64xf32>
    %714 = vector.shape_cast %713 : vector<1x64xf32> to vector<64xf32>
    %cst_265 = arith.constant dense<0.000000e+00> : vector<16xf32>
    %715 = vector.multi_reduction <add>, %710, %cst_265 [1] : vector<16x64xf32> to vector<16xf32>
    %716 = vector.shape_cast %715 : vector<16xf32> to vector<16x1xf32>
    %cst_266 = arith.constant 6.400000e+01 : f32
    %717 = vector.broadcast %cst_266 : f32 to vector<16x1xf32>
    %718 = arith.divf %716, %717 : vector<16x1xf32>
    %719 = vector.broadcast %718 : vector<16x1xf32> to vector<16x64xf32>
    %720 = arith.subf %710, %719 : vector<16x64xf32>
    %721 = arith.mulf %720, %720 : vector<16x64xf32>
    %cst_267 = arith.constant dense<0.000000e+00> : vector<16xf32>
    %722 = vector.multi_reduction <add>, %721, %cst_267 [1] : vector<16x64xf32> to vector<16xf32>
    %723 = vector.shape_cast %722 : vector<16xf32> to vector<16x1xf32>
    %cst_268 = arith.constant 6.400000e+01 : f32
    %724 = vector.broadcast %cst_268 : f32 to vector<16x1xf32>
    %725 = arith.divf %723, %724 : vector<16x1xf32>
    %726 = vector.broadcast %718 : vector<16x1xf32> to vector<16x64xf32>
    %727 = arith.subf %710, %726 : vector<16x64xf32>
    %cst_269 = arith.constant 9.99999974E-6 : f32
    %728 = vector.broadcast %cst_269 : f32 to vector<16x1xf32>
    %729 = arith.addf %725, %728 : vector<16x1xf32>
    %730 = math.rsqrt %729 : vector<16x1xf32>
    %731 = vector.broadcast %730 : vector<16x1xf32> to vector<16x64xf32>
    %732 = arith.mulf %727, %731 : vector<16x64xf32>
    %733 = vector.shape_cast %712 : vector<64xf32> to vector<1x64xf32>
    %734 = vector.broadcast %733 : vector<1x64xf32> to vector<16x64xf32>
    %735 = arith.mulf %732, %734 : vector<16x64xf32>
    %736 = vector.shape_cast %714 : vector<64xf32> to vector<1x64xf32>
    %737 = vector.broadcast %736 : vector<1x64xf32> to vector<16x64xf32>
    %738 = arith.addf %735, %737 : vector<16x64xf32>
    %c0_270 = arith.constant 0 : index
    %c0_271 = arith.constant 0 : index
    %c0_272 = arith.constant 0 : index
    %739 = vector.load %arg11[%c0_270, %c0_271, %c0_272] : memref<1x16x64xf32, #tpu.memory_space<vmem>>, vector<1x16x64xf32>
    %740 = vector.shape_cast %739 : vector<1x16x64xf32> to vector<16x64xf32>
    %741 = vector.shape_cast %738 : vector<16x64xf32> to vector<1x16x64xf32>
    tpu.vector_store %arg11[%c0_270, %c0_271, %c0_272], %741 {strides = array<i32>} : memref<1x16x64xf32, #tpu.memory_space<vmem>>, vector<1x16x64xf32>,
    return
  }
  func.func @transform_0(%arg0: i32) -> (i32, i32, i32, i32) {
    %c0_i32 = arith.constant 0 : i32
    %c0_i32_0 = arith.constant 0 : i32
    %c0_i32_1 = arith.constant 0 : i32
    %c0_i32_2 = arith.constant 0 : i32
    return %arg0, %c0_i32, %c0_i32_0, %c0_i32_1 : i32, i32, i32, i32
  }
  func.func @transform_1(%arg0: i32) -> (i32, i32, i32) {
    %c0_i32 = arith.constant 0 : i32
    %c0_i32_0 = arith.constant 0 : i32
    %c0_i32_1 = arith.constant 0 : i32
    return %arg0, %c0_i32, %c0_i32_0 : i32, i32, i32
  }
  func.func @transform_2(%arg0: i32) -> (i32, i32) {
    %c0_i32 = arith.constant 0 : i32
    %c0_i32_0 = arith.constant 0 : i32
    %c0_i32_1 = arith.constant 0 : i32
    return %c0_i32, %c0_i32_0 : i32, i32
  }
  func.func @transform_3(%arg0: i32) -> (i32, i32, i32) {
    %c0_i32 = arith.constant 0 : i32
    %c0_i32_0 = arith.constant 0 : i32
    %c0_i32_1 = arith.constant 0 : i32
    %c0_i32_2 = arith.constant 0 : i32
    return %c0_i32, %c0_i32_0, %c0_i32_1 : i32, i32, i32
  }
  func.func @transform_4(%arg0: i32) -> (i32, i32, i32) {
    %c0_i32 = arith.constant 0 : i32
    %c0_i32_0 = arith.constant 0 : i32
    %c0_i32_1 = arith.constant 0 : i32
    %c0_i32_2 = arith.constant 0 : i32
    return %c0_i32, %c0_i32_0, %c0_i32_1 : i32, i32, i32
  }
  func.func @transform_5(%arg0: i32) -> (i32, i32, i32) {
    %c0_i32 = arith.constant 0 : i32
    %c0_i32_0 = arith.constant 0 : i32
    %c0_i32_1 = arith.constant 0 : i32
    %c0_i32_2 = arith.constant 0 : i32
    return %c0_i32, %c0_i32_0, %c0_i32_1 : i32, i32, i32
  }
  func.func @transform_6(%arg0: i32) -> (i32, i32) {
    %c0_i32 = arith.constant 0 : i32
    %c0_i32_0 = arith.constant 0 : i32
    %c0_i32_1 = arith.constant 0 : i32
    return %c0_i32, %c0_i32_0 : i32, i32
  }
  func.func @transform_7(%arg0: i32) -> (i32, i32) {
    %c0_i32 = arith.constant 0 : i32
    %c0_i32_0 = arith.constant 0 : i32
    %c0_i32_1 = arith.constant 0 : i32
    return %c0_i32, %c0_i32_0 : i32, i32
  }
  func.func @transform_8(%arg0: i32) -> (i32, i32) {
    %c0_i32 = arith.constant 0 : i32
    %c0_i32_0 = arith.constant 0 : i32
    %c0_i32_1 = arith.constant 0 : i32
    return %c0_i32, %c0_i32_0 : i32, i32
  }
  func.func @transform_9(%arg0: i32) -> (i32, i32, i32) {
    %c0_i32 = arith.constant 0 : i32
    %c0_i32_0 = arith.constant 0 : i32
    %c0_i32_1 = arith.constant 0 : i32
    %c0_i32_2 = arith.constant 0 : i32
    return %c0_i32, %c0_i32_0, %c0_i32_1 : i32, i32, i32
  }
  func.func @transform_10(%arg0: i32) -> (i32, i32, i32) {
    %c0_i32 = arith.constant 0 : i32
    %c0_i32_0 = arith.constant 0 : i32
    %c0_i32_1 = arith.constant 0 : i32
    return %arg0, %c0_i32, %c0_i32_0 : i32, i32, i32
  }
}

</mosaic_0001>

<llo_original>
// kernel: tpu_custom_call.1
$region0: #{tpu_custom_call.1}
  #allocation0 [shape = 'u32[]', space=smem, size = 0x4, offset = 0x4, fixed_abs, tag = 'smem constant byte address 0x4 - core index']
  #allocation1 [shape = 'u32[144,128]{1,0:T(1,128)}', space=vmem, size = 0x12000, scoped, tag = 'internal scratch']
  #allocation2 [shape = 'f32[48,64]{1,0:T(8,128)}', space=vmem, size = 0x6000, scoped, tag = 'scratch operand']
  #allocation3 [shape = 'bf16[48,64]{1,0:T(16,128)(2,1)}', space=vmem, size = 0x3000, scoped, tag = 'scratch operand']
  #allocation4 [shape = 'f32[128,48]{1,0:T(8,128)}', space=vmem, size = 0x10000, scoped, tag = 'scratch operand']
  #allocation5 [shape = 'f32[48,64]{1,0:T(8,128)}', space=vmem, size = 0x6000, scoped, tag = 'scratch operand']
  %s0 = inlined_call_operand.hbm [shape: f32[2,2,16,20], index: 0, kind: input, shape index: {}]
  %s1 = inlined_call_operand.hbm [shape: f32[2,16,40], index: 1, kind: input, shape index: {}]
  %s2 = inlined_call_operand.hbm [shape: f32[64,64], index: 2, kind: input, shape index: {}]
  %s3 = inlined_call_operand.hbm [shape: f32[11,64,64], index: 3, kind: input, shape index: {}]
  %s4 = inlined_call_operand.hbm [shape: f32[3,20,32], index: 4, kind: input, shape index: {}]
  %s5 = inlined_call_operand.vmem [shape: f32[3,32,64], index: 5, kind: input, shape index: {}]
  %s6 = inlined_call_operand.hbm [shape: f32[40,64], index: 6, kind: input, shape index: {}]
  %s7 = inlined_call_operand.vmem [shape: f32[128,64], index: 7, kind: input, shape index: {}]
  %s8 = inlined_call_operand.vmem [shape: f32[128,1], index: 8, kind: input, shape index: {}]
  %s9 = inlined_call_operand.vmem [shape: bf16[8,64,64], index: 9, kind: input, shape index: {}]
  %s10 = inlined_call_operand.hbm [shape: f32[2,16,64], index: 10, kind: output, shape index: {}]
  %s11 = sld [smem:[#allocation0]]
  $region104: #{tpu_custom_call.1} parent=0
    _
  %s13 = ssub.s32 1, %s11
  %s14 = scalar_select 0, %s13, %s11
  $region1: #{tpu_custom_call.1} parent=0
    #allocation6 [shape = 'u8[32768]{0}', space=vmem, size = 0x8000, scoped, tag = 'input window, operand 0']
    #allocation7 [shape = 's32[2]{0}', space=sflag, size = 0x8, scoped, tag = 'scoped memory for tpu_custom_call.1']
    #allocation8 [shape = 's32[2]{0}', space=sflag, size = 0x8, scoped, tag = 'scoped memory for tpu_custom_call.1']
    #allocation9 [shape = 'u8[16384]{0}', space=vmem, size = 0x4000, scoped, tag = 'input window, operand 1']
    #allocation10 [shape = 's32[2]{0}', space=sflag, size = 0x8, scoped, tag = 'scoped memory for tpu_custom_call.1']
    #allocation11 [shape = 'u8[32768]{0}', space=vmem, size = 0x8000, scoped, tag = 'input window, operand 2, single buffered']
    #allocation12 [shape = 'u8[360448]{0}', space=vmem, size = 0x58000, scoped, tag = 'input window, operand 3, single buffered']
    #allocation13 [shape = 's32[1]{0}', space=sflag, size = 0x4, scoped, tag = 'scoped memory for tpu_custom_call.1']
    #allocation14 [shape = 'u8[36864]{0}', space=vmem, size = 0x9000, scoped, tag = 'input window, operand 4, single buffered']
    #allocation15 [shape = 'u8[20480]{0}', space=vmem, size = 0x5000, scoped, tag = 'input window, operand 6, single buffered']
    #allocation16 [shape = 's32[1]{0}', space=sflag, size = 0x4, scoped, tag = 'scoped memory for tpu_custom_call.1']
    #allocation17 [shape = 'u8[16384]{0}', space=vmem, size = 0x4000, scoped, tag = 'output window, operand 0']
    %15 = vsyncpa [#allocation7], 0
    %s16 = scalar_lea.sflag [#allocation7], 1
    %17 = vsyncpa %s16, 0
    %18 = vsyncpa [#allocation10], 0
    %s19 = scalar_lea.sflag [#allocation10], 1
    %20 = vsyncpa %s19, 0
    %21 = vsyncpa [#allocation13], 0
    %22 = vsyncpa [#allocation16], 0
    %23 = vsyncpa [#allocation8], 0
    %s24 = scalar_lea.sflag [#allocation8], 1
    %25 = vsyncpa %s24, 0
    loop: start=0, step=1, limit=4
    $region2: #{tpu_custom_call.1} parent=1 // loop_pre_header
      _
    $region3: #{tpu_custom_call.1} parent=1 // loop_header
      %s27 = sphi 0, %s31
      %p28 = scmp.ge.s32.totalorder %s27, 4
      %s37 = sphi 0, %s39
      %s40 = sphi 0, %s37
      %s41 = sphi 0, %s40
      %s57 = sphi 0, %s41
      %s63 = sphi 0, %s65
      %s66 = sphi 0, %s63
      %s67 = sphi 0, %s66
      %s83 = sphi 0, %s67
      %s87 = sphi 0, %s87
      %s89 = sphi 0, %s87
      %s90 = sphi 0, %s89
      %s104 = sphi 0, %s90
      %s108 = sphi 0, %s108
      %s110 = sphi 0, %s108
      %s111 = sphi 0, %s110
      %s125 = sphi 0, %s111
      %s129 = sphi 0, %s129
      %s131 = sphi 0, %s129
      %s132 = sphi 0, %s131
      %s146 = sphi 0, %s132
      %s150 = sphi 0, %s150
      %s152 = sphi 0, %s150
      %s153 = sphi 0, %s152
      %s167 = sphi 0, %s153
      %s171 = sphi 0, %s171
      %s173 = sphi 0, %s171
      %s174 = sphi 0, %s173
      %s188 = sphi 0, %s174
      %s192 = sphi 0, %s192
      %s194 = sphi 0, %s192
      %s195 = sphi 0, %s194
      %s209 = sphi 0, %s195
      %s213 = sphi 0, %s213
      %s215 = sphi 0, %s213
      %s216 = sphi 0, %s215
      %s230 = sphi 0, %s216
      %s234 = sphi 0, %s234
      %s236 = sphi 0, %s234
      %s237 = sphi 0, %s236
      %s251 = sphi 0, %s237
      %s257 = sphi 0, %s259
      %s260 = sphi 0, %s257
      %s261 = sphi 0, %s260
      %s277 = sphi 0, %s261
    $region4: #{tpu_custom_call.1} parent=1 // loop_header_branch
      %30 = sbr.rel (%p28) target = $region8
    $region5: #{tpu_custom_call.1} parent=1 // loop_body
      %s32 = ssub.s32 %s27, 1
      %s33 = ssub.s32 %s27, 2
      %s34 = sadd.s32 %s27, 1
      %s35 = ssub.s32 %s27, %s34
      %p36 = scmp.eq.s32.totalorder %s35, 0
      %s38 = sadd.s32 %s37, 1
      %s39 = scalar_select %p36, %s37, %s38
      %p42 = pneg %p36
      %p43 = scmp.eq.s32.totalorder %s27, 1
      %p44 = por %p42, %p43
      %p45 = scmp.ne.s32.totalorder %s37, %s40
      %p46 = scmp.eq.s32.totalorder %s27, 0
      %p47 = por %p45, %p46
      %p48 = scmp.ne.s32.totalorder %s37, %s40
      %p49 = scmp.eq.s32.totalorder %s32, 1
      %p50 = por %p48, %p49
      %p51 = scmp.ne.s32.totalorder %s40, %s41
      %p52 = scmp.eq.s32.totalorder %s32, 0
      %p53 = por %p51, %p52
      %p54 = scmp.ne.s32.totalorder %s40, %s41
      %p55 = scmp.eq.s32.totalorder %s33, 1
      %p56 = por %p54, %p55
      %p58 = scmp.ne.s32.totalorder %s41, %s57
      %p59 = scmp.eq.s32.totalorder %s33, 0
      %p60 = por %p58, %p59
      %s61 = ssub.s32 %s27, %s34
      %p62 = scmp.eq.s32.totalorder %s61, 0
      %s64 = sadd.s32 %s63, 1
      %s65 = scalar_select %p62, %s63, %s64
      %p68 = pneg %p62
      %p69 = scmp.eq.s32.totalorder %s27, 1
      %p70 = por %p68, %p69
      %p71 = scmp.ne.s32.totalorder %s63, %s66
      %p72 = scmp.eq.s32.totalorder %s27, 0
      %p73 = por %p71, %p72
      %p74 = scmp.ne.s32.totalorder %s63, %s66
      %p75 = scmp.eq.s32.totalorder %s32, 1
      %p76 = por %p74, %p75
      %p77 = scmp.ne.s32.totalorder %s66, %s67
      %p78 = scmp.eq.s32.totalorder %s32, 0
      %p79 = por %p77, %p78
      %p80 = scmp.ne.s32.totalorder %s66, %s67
      %p81 = scmp.eq.s32.totalorder %s33, 1
      %p82 = por %p80, %p81
      %p84 = scmp.ne.s32.totalorder %s67, %s83
      %p85 = scmp.eq.s32.totalorder %s33, 0
      %p86 = por %p84, %p85
      %s88 = sadd.s32 %s87, 1
      %p91 = scmp.eq.s32.totalorder %s27, 1
      %p92 = scmp.ne.s32.totalorder %s87, %s89
      %p93 = scmp.eq.s32.totalorder %s27, 0
      %p94 = por %p92, %p93
      %p95 = scmp.ne.s32.totalorder %s87, %s89
      %p96 = scmp.eq.s32.totalorder %s32, 1
      %p97 = por %p95, %p96
      %p98 = scmp.ne.s32.totalorder %s89, %s90
      %p99 = scmp.eq.s32.totalorder %s32, 0
      %p100 = por %p98, %p99
      %p101 = scmp.ne.s32.totalorder %s89, %s90
      %p102 = scmp.eq.s32.totalorder %s33, 1
      %p103 = por %p101, %p102
      %p105 = scmp.ne.s32.totalorder %s90, %s104
      %p106 = scmp.eq.s32.totalorder %s33, 0
      %p107 = por %p105, %p106
      %s109 = sadd.s32 %s108, 1
      %p112 = scmp.eq.s32.totalorder %s27, 1
      %p113 = scmp.ne.s32.totalorder %s108, %s110
      %p114 = scmp.eq.s32.totalorder %s27, 0
      %p115 = por %p113, %p114
      %p116 = scmp.ne.s32.totalorder %s108, %s110
      %p117 = scmp.eq.s32.totalorder %s32, 1
      %p118 = por %p116, %p117
      %p119 = scmp.ne.s32.totalorder %s110, %s111
      %p120 = scmp.eq.s32.totalorder %s32, 0
      %p121 = por %p119, %p120
      %p122 = scmp.ne.s32.totalorder %s110, %s111
      %p123 = scmp.eq.s32.totalorder %s33, 1
      %p124 = por %p122, %p123
      %p126 = scmp.ne.s32.totalorder %s111, %s125
      %p127 = scmp.eq.s32.totalorder %s33, 0
      %p128 = por %p126, %p127
      %s130 = sadd.s32 %s129, 1
      %p133 = scmp.eq.s32.totalorder %s27, 1
      %p134 = scmp.ne.s32.totalorder %s129, %s131
      %p135 = scmp.eq.s32.totalorder %s27, 0
      %p136 = por %p134, %p135
      %p137 = scmp.ne.s32.totalorder %s129, %s131
      %p138 = scmp.eq.s32.totalorder %s32, 1
      %p139 = por %p137, %p138
      %p140 = scmp.ne.s32.totalorder %s131, %s132
      %p141 = scmp.eq.s32.totalorder %s32, 0
      %p142 = por %p140, %p141
      %p143 = scmp.ne.s32.totalorder %s131, %s132
      %p144 = scmp.eq.s32.totalorder %s33, 1
      %p145 = por %p143, %p144
      %p147 = scmp.ne.s32.totalorder %s132, %s146
      %p148 = scmp.eq.s32.totalorder %s33, 0
      %p149 = por %p147, %p148
      %s151 = sadd.s32 %s150, 1
      %p154 = scmp.eq.s32.totalorder %s27, 1
      %p155 = scmp.ne.s32.totalorder %s150, %s152
      %p156 = scmp.eq.s32.totalorder %s27, 0
      %p157 = por %p155, %p156
      %p158 = scmp.ne.s32.totalorder %s150, %s152
      %p159 = scmp.eq.s32.totalorder %s32, 1
      %p160 = por %p158, %p159
      %p161 = scmp.ne.s32.totalorder %s152, %s153
      %p162 = scmp.eq.s32.totalorder %s32, 0
      %p163 = por %p161, %p162
      %p164 = scmp.ne.s32.totalorder %s152, %s153
      %p165 = scmp.eq.s32.totalorder %s33, 1
      %p166 = por %p164, %p165
      %p168 = scmp.ne.s32.totalorder %s153, %s167
      %p169 = scmp.eq.s32.totalorder %s33, 0
      %p170 = por %p168, %p169
      %s172 = sadd.s32 %s171, 1
      %p175 = scmp.eq.s32.totalorder %s27, 1
      %p176 = scmp.ne.s32.totalorder %s171, %s173
      %p177 = scmp.eq.s32.totalorder %s27, 0
      %p178 = por %p176, %p177
      %p179 = scmp.ne.s32.totalorder %s171, %s173
      %p180 = scmp.eq.s32.totalorder %s32, 1
      %p181 = por %p179, %p180
      %p182 = scmp.ne.s32.totalorder %s173, %s174
      %p183 = scmp.eq.s32.totalorder %s32, 0
      %p184 = por %p182, %p183
      %p185 = scmp.ne.s32.totalorder %s173, %s174
      %p186 = scmp.eq.s32.totalorder %s33, 1
      %p187 = por %p185, %p186
      %p189 = scmp.ne.s32.totalorder %s174, %s188
      %p190 = scmp.eq.s32.totalorder %s33, 0
      %p191 = por %p189, %p190
      %s193 = sadd.s32 %s192, 1
      %p196 = scmp.eq.s32.totalorder %s27, 1
      %p197 = scmp.ne.s32.totalorder %s192, %s194
      %p198 = scmp.eq.s32.totalorder %s27, 0
      %p199 = por %p197, %p198
      %p200 = scmp.ne.s32.totalorder %s192, %s194
      %p201 = scmp.eq.s32.totalorder %s32, 1
      %p202 = por %p200, %p201
      %p203 = scmp.ne.s32.totalorder %s194, %s195
      %p204 = scmp.eq.s32.totalorder %s32, 0
      %p205 = por %p203, %p204
      %p206 = scmp.ne.s32.totalorder %s194, %s195
      %p207 = scmp.eq.s32.totalorder %s33, 1
      %p208 = por %p206, %p207
      %p210 = scmp.ne.s32.totalorder %s195, %s209
      %p211 = scmp.eq.s32.totalorder %s33, 0
      %p212 = por %p210, %p211
      %s214 = sadd.s32 %s213, 1
      %p217 = scmp.eq.s32.totalorder %s27, 1
      %p218 = scmp.ne.s32.totalorder %s213, %s215
      %p219 = scmp.eq.s32.totalorder %s27, 0
      %p220 = por %p218, %p219
      %p221 = scmp.ne.s32.totalorder %s213, %s215
      %p222 = scmp.eq.s32.totalorder %s32, 1
      %p223 = por %p221, %p222
      %p224 = scmp.ne.s32.totalorder %s215, %s216
      %p225 = scmp.eq.s32.totalorder %s32, 0
      %p226 = por %p224, %p225
      %p227 = scmp.ne.s32.totalorder %s215, %s216
      %p228 = scmp.eq.s32.totalorder %s33, 1
      %p229 = por %p227, %p228
      %p231 = scmp.ne.s32.totalorder %s216, %s230
      %p232 = scmp.eq.s32.totalorder %s33, 0
      %p233 = por %p231, %p232
      %s235 = sadd.s32 %s234, 1
      %p238 = scmp.eq.s32.totalorder %s27, 1
      %p239 = scmp.ne.s32.totalorder %s234, %s236
      %p240 = scmp.eq.s32.totalorder %s27, 0
      %p241 = por %p239, %p240
      %p242 = scmp.ne.s32.totalorder %s234, %s236
      %p243 = scmp.eq.s32.totalorder %s32, 1
      %p244 = por %p242, %p243
      %p245 = scmp.ne.s32.totalorder %s236, %s237
      %p246 = scmp.eq.s32.totalorder %s32, 0
      %p247 = por %p245, %p246
      %p248 = scmp.ne.s32.totalorder %s236, %s237
      %p249 = scmp.eq.s32.totalorder %s33, 1
      %p250 = por %p248, %p249
      %p252 = scmp.ne.s32.totalorder %s237, %s251
      %p253 = scmp.eq.s32.totalorder %s33, 0
      %p254 = por %p252, %p253
      %s255 = ssub.s32 %s27, %s34
      %p256 = scmp.eq.s32.totalorder %s255, 0
      %s258 = sadd.s32 %s257, 1
      %s259 = scalar_select %p256, %s257, %s258
      %p262 = pneg %p256
      %p263 = scmp.eq.s32.totalorder %s27, 1
      %p264 = por %p262, %p263
      %p265 = scmp.ne.s32.totalorder %s257, %s260
      %p266 = scmp.eq.s32.totalorder %s27, 0
      %p267 = por %p265, %p266
      %p268 = scmp.ne.s32.totalorder %s257, %s260
      %p269 = scmp.eq.s32.totalorder %s32, 1
      %p270 = por %p268, %p269
      %p271 = scmp.ne.s32.totalorder %s260, %s261
      %p272 = scmp.eq.s32.totalorder %s32, 0
      %p273 = por %p271, %p272
      %p274 = scmp.ne.s32.totalorder %s260, %s261
      %p275 = scmp.eq.s32.totalorder %s33, 1
      %p276 = por %p274, %p275
      %p278 = scmp.ne.s32.totalorder %s261, %s277
      %p279 = scmp.eq.s32.totalorder %s33, 0
      %p280 = por %p278, %p279
      %p281 = scmp.le.s32.totalorder 1, %s27
      %p282 = scmp.lt.s32.totalorder %s27, 3
      %p283 = pnand %p281, %p282
      %p284 = pneg %p283
      // Predicated region
      $region9: #{tpu_custom_call.1} parent=5 // pred_check
        _
      $region10: #{tpu_custom_call.1} parent=5 // pred_check_branch
        %286 = sbr.rel (%p283) target = $region12
      $region11: #{tpu_custom_call.1} parent=5 // pred_region
        %s287 = ssub.s32 %s27, 1
        // Predicated region
        $region13: #{tpu_custom_call.1} parent=11 // pred_check
          %p288 = pneg %p100
        $region14: #{tpu_custom_call.1} parent=11 // pred_check_branch
          %290 = sbr.rel (%p288) target = $region16
        $region15: #{tpu_custom_call.1} parent=11 // pred_region
          %s292 = ssub.s32 1024, 1024
          %293 = vsyncadd [#allocation10], %s292
          %s294 = sshll.u32 [#allocation11], 4
          %s295 = int_to_ptr.vmem [resolvable:$true] %s294
          %300 = dma.hbm_to_vmem [thread:$0]  %s2, 1024, %s295, [#allocation10], 128, 128, 8
        $region16: #{tpu_custom_call.1} parent=11 // pred_fallthru
          _
        // Predicated region
        $region17: #{tpu_custom_call.1} parent=11 // pred_check
          %p301 = pneg %p121
        $region18: #{tpu_custom_call.1} parent=11 // pred_check_branch
          %303 = sbr.rel (%p301) target = $region20
        $region19: #{tpu_custom_call.1} parent=11 // pred_region
          %s305 = ssub.s32 11264, 11264
          %306 = vsyncadd [#allocation13], %s305
          %s307 = sshll.u32 [#allocation12], 4
          %s308 = int_to_ptr.vmem [resolvable:$true] %s307
          %313 = dma.hbm_to_vmem [thread:$0]  %s3, 11264, %s308, [#allocation13], 128, 128, 8
        $region20: #{tpu_custom_call.1} parent=11 // pred_fallthru
          _
        // Predicated region
        $region21: #{tpu_custom_call.1} parent=11 // pred_check
          %p314 = pneg %p142
        $region22: #{tpu_custom_call.1} parent=11 // pred_check_branch
          %316 = sbr.rel (%p314) target = $region24
        $region23: #{tpu_custom_call.1} parent=11 // pred_region
          %s318 = ssub.s32 1152, 1152
          %319 = vsyncadd [#allocation13], %s318
          %s320 = sshll.u32 [#allocation14], 4
          %s321 = int_to_ptr.vmem [resolvable:$true] %s320
          %326 = dma.hbm_to_vmem [thread:$0]  %s4, 1152, %s321, [#allocation13], 128, 128, 8
        $region24: #{tpu_custom_call.1} parent=11 // pred_fallthru
          _
        // Predicated region
        $region25: #{tpu_custom_call.1} parent=11 // pred_check
          %p327 = pneg %p163
        $region26: #{tpu_custom_call.1} parent=11 // pred_check_branch
          %329 = sbr.rel (%p327) target = $region28
        $region27: #{tpu_custom_call.1} parent=11 // pred_region
          _
        $region28: #{tpu_custom_call.1} parent=11 // pred_fallthru
          _
        // Predicated region
        $region29: #{tpu_custom_call.1} parent=11 // pred_check
          %p330 = pneg %p184
        $region30: #{tpu_custom_call.1} parent=11 // pred_check_branch
          %332 = sbr.rel (%p330) target = $region32
        $region31: #{tpu_custom_call.1} parent=11 // pred_region
          %s334 = ssub.s32 640, 640
          %335 = vsyncadd [#allocation16], %s334
          %s336 = sshll.u32 [#allocation15], 4
          %s337 = int_to_ptr.vmem [resolvable:$true] %s336
          %342 = dma.hbm_to_vmem [thread:$0]  %s6, 640, %s337, [#allocation16], 128, 128, 8
        $region32: #{tpu_custom_call.1} parent=11 // pred_fallthru
          _
        // Predicated region
        $region33: #{tpu_custom_call.1} parent=11 // pred_check
          %p343 = pneg %p205
        $region34: #{tpu_custom_call.1} parent=11 // pred_check_branch
          %345 = sbr.rel (%p343) target = $region36
        $region35: #{tpu_custom_call.1} parent=11 // pred_region
          _
        $region36: #{tpu_custom_call.1} parent=11 // pred_fallthru
          _
        // Predicated region
        $region37: #{tpu_custom_call.1} parent=11 // pred_check
          %p346 = pneg %p226
        $region38: #{tpu_custom_call.1} parent=11 // pred_check_branch
          %348 = sbr.rel (%p346) target = $region40
        $region39: #{tpu_custom_call.1} parent=11 // pred_region
          _
        $region40: #{tpu_custom_call.1} parent=11 // pred_fallthru
          _
        // Predicated region
        $region41: #{tpu_custom_call.1} parent=11 // pred_check
          %p349 = pneg %p247
        $region42: #{tpu_custom_call.1} parent=11 // pred_check_branch
          %351 = sbr.rel (%p349) target = $region44
        $region43: #{tpu_custom_call.1} parent=11 // pred_region
          _
        $region44: #{tpu_custom_call.1} parent=11 // pred_fallthru
          _
      $region12: #{tpu_custom_call.1} parent=5 // pred_fallthru
        _
      %p352 = scmp.lt.s32.totalorder %s27, 2
      // Predicated region
      $region45: #{tpu_custom_call.1} parent=5 // pred_check
        %p353 = pneg %p352
      $region46: #{tpu_custom_call.1} parent=5 // pred_check_branch
        %355 = sbr.rel (%p353) target = $region48
      $region47: #{tpu_custom_call.1} parent=5 // pred_region
        // Predicated region
        $region49: #{tpu_custom_call.1} parent=47 // pred_check
          %p356 = pneg %p47
        $region50: #{tpu_custom_call.1} parent=47 // pred_check_branch
          %358 = sbr.rel (%p356) target = $region52
        $region51: #{tpu_custom_call.1} parent=47 // pred_region
          %s359 = sand.u32 %s37, 1
          %s360 = scalar_lea.sflag [#allocation7], %s359
          %s361 = sand.u32 %s37, 1
          %s362 = smul.addr %s361, 32
          %s363 = scalar_lea.vmem [#allocation6], %s362
          %s365 = ssub.s32 512, 512
          %366 = vsyncadd %s360, %s365
          %s367 = smul.addr %s27, 4
          %s368 = smul.addr %s367, 128
          %s369 = scalar_lea.hbm %s0, %s368
          %s370 = sshll.u32 %s363, 4
          %s371 = int_to_ptr.vmem [resolvable:$true] %s370
          %376 = dma.hbm_to_vmem [thread:$0]  %s369, 512, %s371, %s360, 128, 128, 8
        $region52: #{tpu_custom_call.1} parent=47 // pred_fallthru
          _
        // Predicated region
        $region53: #{tpu_custom_call.1} parent=47 // pred_check
          %p377 = pneg %p73
        $region54: #{tpu_custom_call.1} parent=47 // pred_check_branch
          %379 = sbr.rel (%p377) target = $region56
        $region55: #{tpu_custom_call.1} parent=47 // pred_region
          %s380 = sand.u32 %s27, 1
          %s381 = scalar_lea.sflag [#allocation10], %s380
          %s382 = sand.u32 %s63, 1
          %s383 = smul.addr %s382, 16
          %s384 = scalar_lea.vmem [#allocation9], %s383
          %s386 = ssub.s32 256, 256
          %387 = vsyncadd %s381, %s386
          %s388 = smul.addr %s27, 2
          %s389 = smul.addr %s388, 128
          %s390 = scalar_lea.hbm %s1, %s389
          %s391 = sshll.u32 %s384, 4
          %s392 = int_to_ptr.vmem [resolvable:$true] %s391
          %397 = dma.hbm_to_vmem [thread:$0]  %s390, 256, %s392, %s381, 128, 128, 8
        $region56: #{tpu_custom_call.1} parent=47 // pred_fallthru
          _
      $region48: #{tpu_custom_call.1} parent=5 // pred_fallthru
        _
      %p398 = scmp.le.s32.totalorder 1, %s27
      %p399 = scmp.lt.s32.totalorder %s27, 3
      %p400 = pnand %p398, %p399
      %p401 = pneg %p400
      // Predicated region
      $region57: #{tpu_custom_call.1} parent=5 // pred_check
        _
      $region58: #{tpu_custom_call.1} parent=5 // pred_check_branch
        %403 = sbr.rel (%p400) target = $region60
      $region59: #{tpu_custom_call.1} parent=5 // pred_region
        %s404 = ssub.s32 %s27, 1
        %s405 = sand.u32 %s40, 1
        %s406 = scalar_lea.sflag [#allocation7], %s405
        %s407 = sand.u32 %s40, 1
        %s408 = smul.addr %s407, 32
        %s409 = scalar_lea.vmem [#allocation6], %s408
        // Predicated region
        $region61: #{tpu_custom_call.1} parent=59 // pred_check
          %p410 = pneg %p53
        $region62: #{tpu_custom_call.1} parent=59 // pred_check_branch
          %412 = sbr.rel (%p410) target = $region64
        $region63: #{tpu_custom_call.1} parent=59 // pred_region
          %413 = dma.done %s406, 512
        $region64: #{tpu_custom_call.1} parent=59 // pred_fallthru
          _
        %s414 = sand.u32 %s32, 1
        %s415 = scalar_lea.sflag [#allocation10], %s414
        %s416 = sand.u32 %s66, 1
        %s417 = smul.addr %s416, 16
        %s418 = scalar_lea.vmem [#allocation9], %s417
        // Predicated region
        $region65: #{tpu_custom_call.1} parent=59 // pred_check
          %p419 = pneg %p79
        $region66: #{tpu_custom_call.1} parent=59 // pred_check_branch
          %421 = sbr.rel (%p419) target = $region68
        $region67: #{tpu_custom_call.1} parent=59 // pred_region
          %422 = dma.done %s415, 256
        $region68: #{tpu_custom_call.1} parent=59 // pred_fallthru
          _
        // Predicated region
        $region69: #{tpu_custom_call.1} parent=59 // pred_check
          %p423 = pneg %p100
        $region70: #{tpu_custom_call.1} parent=59 // pred_check_branch
          %425 = sbr.rel (%p423) target = $region72
        $region71: #{tpu_custom_call.1} parent=59 // pred_region
          %426 = dma.done [#allocation10], 1024
        $region72: #{tpu_custom_call.1} parent=59 // pred_fallthru
          _
        // Predicated region
        $region73: #{tpu_custom_call.1} parent=59 // pred_check
          %p427 = pneg %p121
        $region74: #{tpu_custom_call.1} parent=59 // pred_check_branch
          %429 = sbr.rel (%p427) target = $region76
        $region75: #{tpu_custom_call.1} parent=59 // pred_region
          %430 = dma.done [#allocation13], 11264
        $region76: #{tpu_custom_call.1} parent=59 // pred_fallthru
          _
        // Predicated region
        $region77: #{tpu_custom_call.1} parent=59 // pred_check
          %p431 = pneg %p142
        $region78: #{tpu_custom_call.1} parent=59 // pred_check_branch
          %433 = sbr.rel (%p431) target = $region80
        $region79: #{tpu_custom_call.1} parent=59 // pred_region
          %434 = dma.done [#allocation13], 1152
        $region80: #{tpu_custom_call.1} parent=59 // pred_fallthru
          _
        // Predicated region
        $region81: #{tpu_custom_call.1} parent=59 // pred_check
          %p435 = pneg %p184
        $region82: #{tpu_custom_call.1} parent=59 // pred_check_branch
          %437 = sbr.rel (%p435) target = $region84
        $region83: #{tpu_custom_call.1} parent=59 // pred_region
          %438 = dma.done [#allocation16], 640
        $region84: #{tpu_custom_call.1} parent=59 // pred_fallthru
          _
        %s439 = sand.u32 %s40, 1
        %s440 = scalar_lea.sflag [#allocation7], %s439
        %s441 = sand.u32 %s40, 1
        %s442 = smul.addr %s441, 32
        %s443 = scalar_lea.vmem [#allocation6], %s442
        %p444 = pneg %p53
        %p445 = pneg %p50
        %s446 = sand.u32 %s32, 1
        %s447 = scalar_lea.sflag [#allocation10], %s446
        %s448 = sand.u32 %s66, 1
        %s449 = smul.addr %s448, 16
        %s450 = scalar_lea.vmem [#allocation9], %s449
        %p451 = pneg %p79
        %p452 = pneg %p76
        %p453 = pneg %p100
        %p454 = pneg %p97
        %p455 = pneg %p121
        %p456 = pneg %p118
        %p457 = pneg %p142
        %p458 = pneg %p139
        %p459 = pneg %p163
        %p460 = pneg %p160
        %p461 = pneg %p184
        %p462 = pneg %p181
        %p463 = pneg %p205
        %p464 = pneg %p202
        %p465 = pneg %p226
        %p466 = pneg %p223
        %p467 = pneg %p247
        %p468 = pneg %p244
        %p469 = pneg %p273
        %p470 = pneg %p270
        %s471 = sand.u32 %s260, 1
        %s472 = scalar_lea.sflag [#allocation8], %s471
        %s473 = sand.u32 %s260, 1
        %s474 = smul.addr %s473, 16
        %s475 = scalar_lea.vmem [#allocation17], %s474
        %v477 = vld [vmem:[%s409] sm:$0xff]
        %v478 = vld [vmem:[%s409 + $0x8] sm:$0xff]
        %s479 = scalar_lea.vmem %s409, 16 [#allocation6]
        %v480 = vld [vmem:[%s479] sm:$0xff]
        %v481 = vld [vmem:[%s479 + $0x8] sm:$0xff]
        %v482 = vmul.f32 %v477, %v477
        %v483 = vmul.f32 %v478, %v478
        %v484 = vmul.f32 %v480, %v480
        %v485 = vmul.f32 %v481, %v481
        %v486 = vadd.f32 %v482, %v484
        %v487 = vadd.f32 %v483, %v485
        %v488 = vadd.f32 %v486, 1e-08
        %v489 = vadd.f32 %v487, 1e-08
        %v490 = vrsqrt.pop %v488
        %v491 = vmul.f32 %v488, %v490
        %vm492 = vcmp.eq.f32.partialorder %v488, inf
        %v493 = vsel %vm492, %v488, %v491
        %vm494 = vcmp.eq.f32.partialorder %v488, 0.0
        %v495 = vand.u32 %v488, 2147483648
        %v496 = vsel %vm494, %v495, %v493
        %v497 = vrsqrt.pop %v489
        %v498 = vmul.f32 %v489, %v497
        %vm499 = vcmp.eq.f32.partialorder %v489, inf
        %v500 = vsel %vm499, %v489, %v498
        %vm501 = vcmp.eq.f32.partialorder %v489, 0.0
        %v502 = vand.u32 %v489, 2147483648
        %v503 = vsel %vm501, %v502, %v500
        %v504 = vlaneseq
        %v505 = vshrl.u32 %v504, 7
        %v506 = vadd.s32 %v505, 8
        %v507 = vrot.slane %v496, 7
        %v508 = vrot.slane %v503, 7
        %vm509 = vcmp.lt.s32.totalorder %v505, 1
        %v510 = vsel %vm509, %v507, %v508
        %v511 = vsel %vm509, %v508, %v507
        %vm512 = vcmp.eq.s32.totalorder %v505, 0
        %vm513 = vcmp.eq.s32.totalorder %v506, 0
        %v514 = vsel %vm512, 1, 0
        %v515 = vsel %vm513, 1, 0
        %vm516 = vcmp.eq.s32.totalorder %v514, 1
        %vm517 = vcmp.eq.s32.totalorder %v515, 1
        %v518 = vsel %vm516, 0.0, %v511
        %v519 = vsel %vm517, 0.0, %v510
        %v520 = vrot.slane %v496, 1
        %v521 = vrot.slane %v503, 1
        %vm522 = vcmp.lt.s32.totalorder %v505, 7
        %v523 = vsel %vm522, %v520, %v521
        %v524 = vsel %vm522, %v521, %v520
        %vm525 = vcmp.eq.s32.totalorder %v505, 15
        %vm526 = vcmp.eq.s32.totalorder %v506, 15
        %v527 = vsel %vm525, 1, 0
        %v528 = vsel %vm526, 1, 0
        %vm529 = vcmp.eq.s32.totalorder %v527, 1
        %vm530 = vcmp.eq.s32.totalorder %v528, 1
        %v531 = vsel %vm529, 0.0, %v523
        %v532 = vsel %vm530, 0.0, %v524
        %v533 = vld [vmem:[#allocation11 + $0x6] sm:$0x1]
        %v534 = vlaneseq
        %v535 = vshrl.u32 %v534, 7
        %v536 = vsub.s32 0, %v535
        %v537 = vrot.slane %v533, %v536
        %v538 = vmul.f32 %v518, %v537
        %v539 = vmul.f32 %v519, %v537
        %v540 = vld [vmem:[#allocation11 + $0x7] sm:$0x1]
        %v541 = vlaneseq
        %v542 = vshrl.u32 %v541, 7
        %v543 = vsub.s32 0, %v542
        %v544 = vrot.slane %v540, %v543
        %v545 = vmul.f32 %v496, %v544
        %v546 = vmul.f32 %v503, %v544
        %v547 = vadd.f32 %v538, %v545
        %v548 = vadd.f32 %v539, %v546
        %v549 = vld [vmem:[#allocation11 + $0x8] sm:$0x1]
        %v550 = vlaneseq
        %v551 = vshrl.u32 %v550, 7
        %v552 = vsub.s32 0, %v551
        %v553 = vrot.slane %v549, %v552
        %v554 = vmul.f32 %v531, %v553
        %v555 = vmul.f32 %v532, %v553
        %v556 = vadd.f32 %v547, %v554
        %v557 = vadd.f32 %v548, %v555
        %v558 = vld [vmem:[#allocation11] sm:$0x1]
        %v559 = vlaneseq
        %v560 = vshrl.u32 %v559, 7
        %v561 = vsub.s32 0, %v560
        %v562 = vrot.slane %v558, %v561
        %v563 = vadd.f32 %v556, %v562
        %v564 = vadd.f32 %v557, %v562
        %v565 = vld [vmem:[#allocation11 + $0x3] sm:$0x1]
        %v566 = vlaneseq
        %v567 = vshrl.u32 %v566, 7
        %v568 = vsub.s32 0, %v567
        %v569 = vrot.slane %v565, %v568
        %v570 = vmul.f32 %v563, %v569
        %v571 = vmul.f32 %v564, %v569
        %v572 = vld [vmem:[#allocation14] sm:$0xff]
        %v573 = vld [vmem:[#allocation14 + $0x8] sm:$0xff]
        %v574 = vld [vmem:[#allocation14 + $0x10] sm:$0xf]
        %v575 = vld [vmem:[#allocation11 + $0xf] sm:$0x1]
        %v576 = vlaneseq
        %v577 = vshrl.u32 %v576, 7
        %v578 = vsub.s32 0, %v577
        %v579 = vrot.slane %v575, %v578
        %vm580 = vcmask 162816
        %v582 = vsel %vm580, %v570, 0
        %v585 = vsel %vm580, %v571, 0
        %vm587 = vcmask 1043456
        %v589 = vsel %vm587, %v574, 0
        %591 = vmatprep.subr.mxu0 0.0
        %592 = vmatpush1.msra.mxu0 %v572
        %593 = vmatprep.subr.mxu0 0.0
        %594 = vmatpush1.msra.mxu0 %v573
        %595 = vmatprep.subr.mxu0 0.0
        %596 = vmatpush1.msra.mxu0 %v589
        %597 = vmatprep.subr.mxu0 0.0
        %598 = vmatpush1.msra.mxu0 0.0
        %599 = vmatprep.subr.mxu0 0.0
        %600 = vmatpush1.msra.mxu0 0.0
        %601 = vmatprep.subr.mxu0 0.0
        %602 = vmatpush1.msra.mxu0 0.0
        %603 = vmatprep.subr.mxu0 0.0
        %604 = vmatpush1.msra.mxu0 0.0
        %605 = vmatprep.subr.mxu0 0.0
        %606 = vmatpush1.msra.mxu0 0.0
        %607 = vmatprep.subr.mxu0 0.0
        %608 = vmatpush1.msra.mxu0 0.0
        %609 = vmatprep.subr.mxu0 0.0
        %610 = vmatpush1.msra.mxu0 0.0
        %611 = vmatprep.subr.mxu0 0.0
        %612 = vmatpush1.msra.mxu0 0.0
        %613 = vmatprep.subr.mxu0 0.0
        %614 = vmatpush1.msra.mxu0 0.0
        %615 = vmatprep.subr.mxu0 0.0
        %616 = vmatpush1.msra.mxu0 0.0
        %617 = vmatprep.subr.mxu0 0.0
        %618 = vmatpush1.msra.mxu0 0.0
        %619 = vmatprep.subr.mxu0 0.0
        %620 = vmatpush1.msra.mxu0 0.0
        %621 = vmatprep.subr.mxu0 0.0
        %622 = vmatpush1.msra.mxu0 0.0
        %623 = vmatprep.subr.mxu0 0.0
        %624 = vmatpush1.msra.mxu0 0.0
        %625 = vmatprep.subr.mxu0 0.0
        %626 = vmatpush1.msra.mxu0 0.0
        %627 = vmatprep.subr.mxu0 0.0
        %628 = vmatpush1.msra.mxu0 0.0
        %629 = vmatprep.subr.mxu0 0.0
        %630 = vmatpush1.msra.mxu0 0.0
        %631 = vmatprep.subr.mxu0 0.0
        %632 = vmatpush1.msra.mxu0 0.0
        %633 = vmatprep.subr.mxu0 0.0
        %634 = vmatpush1.msra.mxu0 0.0
        %635 = vmatprep.subr.mxu0 0.0
        %636 = vmatpush1.msra.mxu0 0.0
        %637 = vmatprep.subr.mxu0 0.0
        %638 = vmatpush1.msra.mxu0 0.0
        %639 = vmatprep.subr.mxu0 0.0
        %640 = vmatpush1.msra.mxu0 0.0
        %641 = vmatprep.subr.mxu0 0.0
        %642 = vmatpush1.msra.mxu0 0.0
        %643 = vmatprep.subr.mxu0 0.0
        %644 = vmatpush1.msra.mxu0 0.0
        %645 = vmatprep.subr.mxu0 0.0
        %646 = vmatpush1.msra.mxu0 0.0
        %647 = vmatprep.subr.mxu0 0.0
        %648 = vmatpush1.msra.mxu0 0.0
        %649 = vmatprep.subr.mxu0 0.0
        %650 = vmatpush1.msra.mxu0 0.0
        %651 = vmatprep.subr.mxu0 0.0
        %652 = vmatpush1.msra.mxu0 0.0
        %653 = vmatprep.subr.mxu0 0.0
        %654 = vmatpush1.msra.mxu0 0.0
        %655 = vmatprep.mubr.f32.mxu0 0.0
        %656 = vmatmul.mubr.f32.gmra.mrb[0].mxu0 %v582
        %v657 = vpop.f32.mrb[0].mxu0
        %v658 = vadd.f32 %v579, %v657
        %v659 = vpop.f32.mrb[0].mxu0
        %660 = vmatprep.mubr.f32.mxu0 0.0
        %661 = vmatmul.mubr.f32.gmra.mrb[0].mxu0 %v585
        %v662 = vpop.f32.mrb[0].mxu0
        %v663 = vadd.f32 %v579, %v662
        %v664 = vpop.f32.mrb[0].mxu0
        %665 = vdwg.mxu0
        %v666 = vmul.f32 %v658, 0.5
        %v667 = vmul.f32 %v663, 0.5
        %v668 = vmul.f32 %v658, 0.70710677
        %v669 = vmul.f32 %v663, 0.70710677
        %v670 = verf.f32.pop %v668
        %v671 = verf.f32.pop %v669
        %v672 = vadd.f32 %v670, 1.0
        %v673 = vadd.f32 %v671, 1.0
        %v674 = vmul.f32 %v666, %v672
        %v675 = vmul.f32 %v667, %v673
        %v676 = vld [vmem:[#allocation11 + $0x12] sm:$0x1]
        %v677 = vld [vmem:[#allocation11 + $0x15] sm:$0x1]
        %vm678 = vcmask 261120
        %v679 = vsel %vm678, %v674, 0.0
        %680 = vadd.xlane.f32.xlu0 %v679
        %v681 = vpop.xlane.xlu0 %680
        %v682 = vsel %vm678, %v675, 0.0
        %683 = vadd.xlane.f32.xlu0 %v682
        %v684 = vpop.xlane.xlu0 %683
        %v685 = vrcp.pop 32.0
        %v686 = vmul.f32 %v681, %v685
        %v687 = vmul.f32 %v684, %v685
        %v688 = vsub.f32 %v674, %v686
        %v689 = vsub.f32 %v675, %v687
        %v690 = vmul.f32 %v688, %v688
        %v691 = vmul.f32 %v689, %v689
        %v692 = vsel %vm678, %v690, 0.0
        %693 = vadd.xlane.f32.xlu0 %v692
        %v694 = vpop.xlane.xlu0 %693
        %v695 = vsel %vm678, %v691, 0.0
        %696 = vadd.xlane.f32.xlu0 %v695
        %v697 = vpop.xlane.xlu0 %696
        %v698 = vmul.f32 %v694, %v685
        %v699 = vmul.f32 %v697, %v685
        %v700 = vadd.f32 %v698, 1e-05
        %v701 = vadd.f32 %v699, 1e-05
        %v702 = vrsqrt.pop %v700
        %v703 = vrsqrt.pop %v701
        %v704 = vmul.f32 %v688, %v702
        %v705 = vmul.f32 %v689, %v703
        %v706 = vlaneseq
        %v707 = vshrl.u32 %v706, 7
        %v708 = vsub.s32 0, %v707
        %v709 = vrot.slane %v676, %v708
        %v710 = vmul.f32 %v704, %v709
        %v711 = vmul.f32 %v705, %v709
        %v712 = vlaneseq
        %v713 = vshrl.u32 %v712, 7
        %v714 = vsub.s32 0, %v713
        %v715 = vrot.slane %v677, %v714
        %v716 = vadd.f32 %v710, %v715
        %v717 = vadd.f32 %v711, %v715
        %v718 = vld [vmem:[%s5] sm:$0xff]
        %v719 = vld [vmem:[%s5 + $0x8] sm:$0xff]
        %v720 = vld [vmem:[%s5 + $0x10] sm:$0xff]
        %v721 = vld [vmem:[%s5 + $0x18] sm:$0xff]
        %v722 = vld [vmem:[#allocation11 + $0x18] sm:$0x1]
        %v723 = vlaneseq
        %v724 = vshrl.u32 %v723, 7
        %v725 = vsub.s32 0, %v724
        %v726 = vrot.slane %v722, %v725
        %v728 = vsel %vm678, %v716, 0
        %v731 = vsel %vm678, %v717, 0
        %733 = vmatprep.subr.mxu0 0.0
        %734 = vmatpush1.msra.mxu0 %v718
        %735 = vmatprep.subr.mxu0 0.0
        %736 = vmatpush1.msra.mxu0 %v719
        %737 = vmatprep.subr.mxu0 0.0
        %738 = vmatpush1.msra.mxu0 %v720
        %739 = vmatprep.subr.mxu0 0.0
        %740 = vmatpush1.msra.mxu0 %v721
        %741 = vmatprep.subr.mxu0 0.0
        %742 = vmatpush1.msra.mxu0 0.0
        %743 = vmatprep.subr.mxu0 0.0
        %744 = vmatpush1.msra.mxu0 0.0
        %745 = vmatprep.subr.mxu0 0.0
        %746 = vmatpush1.msra.mxu0 0.0
        %747 = vmatprep.subr.mxu0 0.0
        %748 = vmatpush1.msra.mxu0 0.0
        %749 = vmatprep.subr.mxu0 0.0
        %750 = vmatpush1.msra.mxu0 0.0
        %751 = vmatprep.subr.mxu0 0.0
        %752 = vmatpush1.msra.mxu0 0.0
        %753 = vmatprep.subr.mxu0 0.0
        %754 = vmatpush1.msra.mxu0 0.0
        %755 = vmatprep.subr.mxu0 0.0
        %756 = vmatpush1.msra.mxu0 0.0
        %757 = vmatprep.subr.mxu0 0.0
        %758 = vmatpush1.msra.mxu0 0.0
        %759 = vmatprep.subr.mxu0 0.0
        %760 = vmatpush1.msra.mxu0 0.0
        %761 = vmatprep.subr.mxu0 0.0
        %762 = vmatpush1.msra.mxu0 0.0
        %763 = vmatprep.subr.mxu0 0.0
        %764 = vmatpush1.msra.mxu0 0.0
        %765 = vmatprep.subr.mxu0 0.0
        %766 = vmatpush1.msra.mxu0 0.0
        %767 = vmatprep.subr.mxu0 0.0
        %768 = vmatpush1.msra.mxu0 0.0
        %769 = vmatprep.subr.mxu0 0.0
        %770 = vmatpush1.msra.mxu0 0.0
        %771 = vmatprep.subr.mxu0 0.0
        %772 = vmatpush1.msra.mxu0 0.0
        %773 = vmatprep.subr.mxu0 0.0
        %774 = vmatpush1.msra.mxu0 0.0
        %775 = vmatprep.subr.mxu0 0.0
        %776 = vmatpush1.msra.mxu0 0.0
        %777 = vmatprep.subr.mxu0 0.0
        %778 = vmatpush1.msra.mxu0 0.0
        %779 = vmatprep.subr.mxu0 0.0
        %780 = vmatpush1.msra.mxu0 0.0
        %781 = vmatprep.subr.mxu0 0.0
        %782 = vmatpush1.msra.mxu0 0.0
        %783 = vmatprep.subr.mxu0 0.0
        %784 = vmatpush1.msra.mxu0 0.0
        %785 = vmatprep.subr.mxu0 0.0
        %786 = vmatpush1.msra.mxu0 0.0
        %787 = vmatprep.subr.mxu0 0.0
        %788 = vmatpush1.msra.mxu0 0.0
        %789 = vmatprep.subr.mxu0 0.0
        %790 = vmatpush1.msra.mxu0 0.0
        %791 = vmatprep.subr.mxu0 0.0
        %792 = vmatpush1.msra.mxu0 0.0
        %793 = vmatprep.subr.mxu0 0.0
        %794 = vmatpush1.msra.mxu0 0.0
        %795 = vmatprep.subr.mxu0 0.0
        %796 = vmatpush1.msra.mxu0 0.0
        %797 = vmatprep.mubr.f32.mxu0 0.0
        %798 = vmatmul.mubr.f32.gmra.mrb[0].mxu0 %v728
        %v799 = vpop.f32.mrb[0].mxu0
        %v800 = vadd.f32 %v726, %v799
        %v801 = vpop.f32.mrb[0].mxu0
        %802 = vmatprep.mubr.f32.mxu0 0.0
        %803 = vmatmul.mubr.f32.gmra.mrb[0].mxu0 %v731
        %v804 = vpop.f32.mrb[0].mxu0
        %v805 = vadd.f32 %v726, %v804
        %v806 = vpop.f32.mrb[0].mxu0
        %807 = vdwg.mxu0
        %v808 = vmul.f32 %v800, 0.5
        %v809 = vmul.f32 %v805, 0.5
        %v810 = vmul.f32 %v800, 0.70710677
        %v811 = vmul.f32 %v805, 0.70710677
        %v812 = verf.f32.pop %v810
        %v813 = verf.f32.pop %v811
        %v814 = vadd.f32 %v812, 1.0
        %v815 = vadd.f32 %v813, 1.0
        %v816 = vmul.f32 %v808, %v814
        %v817 = vmul.f32 %v809, %v815
        %v818 = vld [vmem:[#allocation11 + $0x1b] sm:$0x1]
        %v819 = vld [vmem:[#allocation11 + $0x1e] sm:$0x1]
        %vm820 = vcmask 523264
        %v821 = vsel %vm820, %v816, 0.0
        %822 = vadd.xlane.f32.xlu0 %v821
        %v823 = vpop.xlane.xlu0 %822
        %v824 = vsel %vm820, %v817, 0.0
        %825 = vadd.xlane.f32.xlu0 %v824
        %v826 = vpop.xlane.xlu0 %825
        %v827 = vrcp.pop 64.0
        %v828 = vmul.f32 %v823, %v827
        %v829 = vmul.f32 %v826, %v827
        %v830 = vsub.f32 %v816, %v828
        %v831 = vsub.f32 %v817, %v829
        %v832 = vmul.f32 %v830, %v830
        %v833 = vmul.f32 %v831, %v831
        %v834 = vsel %vm820, %v832, 0.0
        %835 = vadd.xlane.f32.xlu0 %v834
        %v836 = vpop.xlane.xlu0 %835
        %v837 = vsel %vm820, %v833, 0.0
        %838 = vadd.xlane.f32.xlu0 %v837
        %v839 = vpop.xlane.xlu0 %838
        %v840 = vmul.f32 %v836, %v827
        %v841 = vmul.f32 %v839, %v827
        %v842 = vadd.f32 %v840, 1e-05
        %v843 = vadd.f32 %v841, 1e-05
        %v844 = vrsqrt.pop %v842
        %v845 = vrsqrt.pop %v843
        %v846 = vmul.f32 %v830, %v844
        %v847 = vmul.f32 %v831, %v845
        %v848 = vlaneseq
        %v849 = vshrl.u32 %v848, 7
        %v850 = vsub.s32 0, %v849
        %v851 = vrot.slane %v818, %v850
        %v852 = vmul.f32 %v846, %v851
        %v853 = vmul.f32 %v847, %v851
        %v854 = vlaneseq
        %v855 = vshrl.u32 %v854, 7
        %v856 = vsub.s32 0, %v855
        %v857 = vrot.slane %v819, %v856
        %v858 = vadd.f32 %v852, %v857
        %v859 = vadd.f32 %v853, %v857
        %v860 = vld [vmem:[#allocation12] sm:$0xff]
        %v861 = vld [vmem:[#allocation12 + $0x8] sm:$0xff]
        %v862 = vld [vmem:[#allocation12 + $0x10] sm:$0xff]
        %v863 = vld [vmem:[#allocation12 + $0x18] sm:$0xff]
        %v864 = vld [vmem:[#allocation12 + $0x20] sm:$0xff]
        %v865 = vld [vmem:[#allocation12 + $0x28] sm:$0xff]
        %v866 = vld [vmem:[#allocation12 + $0x30] sm:$0xff]
        %v867 = vld [vmem:[#allocation12 + $0x38] sm:$0xff]
        %v868 = vld [vmem:[#allocation11 + $0x21] sm:$0x1]
        %v869 = vlaneseq
        %v870 = vshrl.u32 %v869, 7
        %v871 = vsub.s32 0, %v870
        %v872 = vrot.slane %v868, %v871
        %v874 = vsel %vm820, %v858, 0
        %v877 = vsel %vm820, %v859, 0
        %879 = vmatprep.subr.mxu0 0.0
        %880 = vmatpush1.msra.mxu0 %v860
        %881 = vmatprep.subr.mxu0 0.0
        %882 = vmatpush1.msra.mxu0 %v861
        %883 = vmatprep.subr.mxu0 0.0
        %884 = vmatpush1.msra.mxu0 %v862
        %885 = vmatprep.subr.mxu0 0.0
        %886 = vmatpush1.msra.mxu0 %v863
        %887 = vmatprep.subr.mxu0 0.0
        %888 = vmatpush1.msra.mxu0 %v864
        %889 = vmatprep.subr.mxu0 0.0
        %890 = vmatpush1.msra.mxu0 %v865
        %891 = vmatprep.subr.mxu0 0.0
        %892 = vmatpush1.msra.mxu0 %v866
        %893 = vmatprep.subr.mxu0 0.0
        %894 = vmatpush1.msra.mxu0 %v867
        %895 = vmatprep.subr.mxu0 0.0
        %896 = vmatpush1.msra.mxu0 0.0
        %897 = vmatprep.subr.mxu0 0.0
        %898 = vmatpush1.msra.mxu0 0.0
        %899 = vmatprep.subr.mxu0 0.0
        %900 = vmatpush1.msra.mxu0 0.0
        %901 = vmatprep.subr.mxu0 0.0
        %902 = vmatpush1.msra.mxu0 0.0
        %903 = vmatprep.subr.mxu0 0.0
        %904 = vmatpush1.msra.mxu0 0.0
        %905 = vmatprep.subr.mxu0 0.0
        %906 = vmatpush1.msra.mxu0 0.0
        %907 = vmatprep.subr.mxu0 0.0
        %908 = vmatpush1.msra.mxu0 0.0
        %909 = vmatprep.subr.mxu0 0.0
        %910 = vmatpush1.msra.mxu0 0.0
        %911 = vmatprep.subr.mxu0 0.0
        %912 = vmatpush1.msra.mxu0 0.0
        %913 = vmatprep.subr.mxu0 0.0
        %914 = vmatpush1.msra.mxu0 0.0
        %915 = vmatprep.subr.mxu0 0.0
        %916 = vmatpush1.msra.mxu0 0.0
        %917 = vmatprep.subr.mxu0 0.0
        %918 = vmatpush1.msra.mxu0 0.0
        %919 = vmatprep.subr.mxu0 0.0
        %920 = vmatpush1.msra.mxu0 0.0
        %921 = vmatprep.subr.mxu0 0.0
        %922 = vmatpush1.msra.mxu0 0.0
        %923 = vmatprep.subr.mxu0 0.0
        %924 = vmatpush1.msra.mxu0 0.0
        %925 = vmatprep.subr.mxu0 0.0
        %926 = vmatpush1.msra.mxu0 0.0
        %927 = vmatprep.subr.mxu0 0.0
        %928 = vmatpush1.msra.mxu0 0.0
        %929 = vmatprep.subr.mxu0 0.0
        %930 = vmatpush1.msra.mxu0 0.0
        %931 = vmatprep.subr.mxu0 0.0
        %932 = vmatpush1.msra.mxu0 0.0
        %933 = vmatprep.subr.mxu0 0.0
        %934 = vmatpush1.msra.mxu0 0.0
        %935 = vmatprep.subr.mxu0 0.0
        %936 = vmatpush1.msra.mxu0 0.0
        %937 = vmatprep.subr.mxu0 0.0
        %938 = vmatpush1.msra.mxu0 0.0
        %939 = vmatprep.subr.mxu0 0.0
        %940 = vmatpush1.msra.mxu0 0.0
        %941 = vmatprep.subr.mxu0 0.0
        %942 = vmatpush1.msra.mxu0 0.0
        %943 = vmatprep.mubr.f32.mxu0 0.0
        %944 = vmatmul.mubr.f32.gmra.mrb[0].mxu0 %v874
        %v945 = vpop.f32.mrb[0].mxu0
        %v946 = vadd.f32 %v872, %v945
        %v947 = vpop.f32.mrb[0].mxu0
        %948 = vmatprep.mubr.f32.mxu0 0.0
        %949 = vmatmul.mubr.f32.gmra.mrb[0].mxu0 %v877
        %v950 = vpop.f32.mrb[0].mxu0
        %v951 = vadd.f32 %v872, %v950
        %v952 = vpop.f32.mrb[0].mxu0
        %953 = vdwg.mxu0
        %v954 = vld [vmem:[#allocation11 + $0x24] sm:$0x1]
        %v955 = vld [vmem:[#allocation11 + $0x27] sm:$0x1]
        %v956 = vsel %vm820, %v946, 0.0
        %957 = vadd.xlane.f32.xlu0 %v956
        %v958 = vpop.xlane.xlu0 %957
        %v959 = vsel %vm820, %v951, 0.0
        %960 = vadd.xlane.f32.xlu0 %v959
        %v961 = vpop.xlane.xlu0 %960
        %v962 = vmul.f32 %v958, %v827
        %v963 = vmul.f32 %v961, %v827
        %v964 = vsub.f32 %v946, %v962
        %v965 = vsub.f32 %v951, %v963
        %v966 = vmul.f32 %v964, %v964
        %v967 = vmul.f32 %v965, %v965
        %v968 = vsel %vm820, %v966, 0.0
        %969 = vadd.xlane.f32.xlu0 %v968
        %v970 = vpop.xlane.xlu0 %969
        %v971 = vsel %vm820, %v967, 0.0
        %972 = vadd.xlane.f32.xlu0 %v971
        %v973 = vpop.xlane.xlu0 %972
        %v974 = vmul.f32 %v970, %v827
        %v975 = vmul.f32 %v973, %v827
        %v976 = vadd.f32 %v974, 1e-05
        %v977 = vadd.f32 %v975, 1e-05
        %v978 = vrsqrt.pop %v976
        %v979 = vrsqrt.pop %v977
        %v980 = vmul.f32 %v964, %v978
        %v981 = vmul.f32 %v965, %v979
        %v982 = vlaneseq
        %v983 = vshrl.u32 %v982, 7
        %v984 = vsub.s32 0, %v983
        %v985 = vrot.slane %v954, %v984
        %v986 = vmul.f32 %v980, %v985
        %v987 = vmul.f32 %v981, %v985
        %v988 = vlaneseq
        %v989 = vshrl.u32 %v988, 7
        %v990 = vsub.s32 0, %v989
        %v991 = vrot.slane %v955, %v990
        %v992 = vadd.f32 %v986, %v991
        %v993 = vadd.f32 %v987, %v991
        %v994 = vld [vmem:[#allocation11 + $0x2a] sm:$0x1]
        %v995 = vlaneseq
        %v996 = vshrl.u32 %v995, 7
        %v997 = vsub.s32 0, %v996
        %v998 = vrot.slane %v994, %v997
        %v999 = vadd.f32 %v992, %v998
        %v1000 = vadd.f32 %v993, %v998
        %1001 = vst.msk [vmem:[#allocation2] sm:$0xff] %vm820, %v999
        %1002 = vst.msk [vmem:[#allocation2 + $0x8] sm:$0xff] %vm820, %v1000
        %v1003 = vld [vmem:[#allocation11 + $0x9] sm:$0x1]
        %v1004 = vlaneseq
        %v1005 = vshrl.u32 %v1004, 7
        %v1006 = vsub.s32 0, %v1005
        %v1007 = vrot.slane %v1003, %v1006
        %v1008 = vmul.f32 %v518, %v1007
        %v1009 = vmul.f32 %v519, %v1007
        %v1010 = vld [vmem:[#allocation11 + $0xa] sm:$0x1]
        %v1011 = vlaneseq
        %v1012 = vshrl.u32 %v1011, 7
        %v1013 = vsub.s32 0, %v1012
        %v1014 = vrot.slane %v1010, %v1013
        %v1015 = vmul.f32 %v496, %v1014
        %v1016 = vmul.f32 %v503, %v1014
        %v1017 = vadd.f32 %v1008, %v1015
        %v1018 = vadd.f32 %v1009, %v1016
        %v1019 = vld [vmem:[#allocation11 + $0xb] sm:$0x1]
        %v1020 = vlaneseq
        %v1021 = vshrl.u32 %v1020, 7
        %v1022 = vsub.s32 0, %v1021
        %v1023 = vrot.slane %v1019, %v1022
        %v1024 = vmul.f32 %v531, %v1023
        %v1025 = vmul.f32 %v532, %v1023
        %v1026 = vadd.f32 %v1017, %v1024
        %v1027 = vadd.f32 %v1018, %v1025
        %v1028 = vld [vmem:[#allocation11 + $0x1] sm:$0x1]
        %v1029 = vlaneseq
        %v1030 = vshrl.u32 %v1029, 7
        %v1031 = vsub.s32 0, %v1030
        %v1032 = vrot.slane %v1028, %v1031
        %v1033 = vadd.f32 %v1026, %v1032
        %v1034 = vadd.f32 %v1027, %v1032
        %v1035 = vld [vmem:[#allocation11 + $0x4] sm:$0x1]
        %v1036 = vlaneseq
        %v1037 = vshrl.u32 %v1036, 7
        %v1038 = vsub.s32 0, %v1037
        %v1039 = vrot.slane %v1035, %v1038
        %v1040 = vmul.f32 %v1033, %v1039
        %v1041 = vmul.f32 %v1034, %v1039
        %s1042 = scalar_lea.vmem [#allocation14], 24
        %v1043 = vld [vmem:[%s1042] sm:$0xff]
        %v1044 = vld [vmem:[%s1042 + $0x8] sm:$0xff]
        %v1045 = vld [vmem:[%s1042 + $0x10] sm:$0xf]
        %v1046 = vld [vmem:[#allocation11 + $0x10] sm:$0x1]
        %v1047 = vlaneseq
        %v1048 = vshrl.u32 %v1047, 7
        %v1049 = vsub.s32 0, %v1048
        %v1050 = vrot.slane %v1046, %v1049
        %v1052 = vsel %vm580, %v1040, 0
        %v1055 = vsel %vm580, %v1041, 0
        %v1058 = vsel %vm587, %v1045, 0
        %1060 = vmatprep.subr.mxu0 0.0
        %1061 = vmatpush1.msra.mxu0 %v1043
        %1062 = vmatprep.subr.mxu0 0.0
        %1063 = vmatpush1.msra.mxu0 %v1044
        %1064 = vmatprep.subr.mxu0 0.0
        %1065 = vmatpush1.msra.mxu0 %v1058
        %1066 = vmatprep.subr.mxu0 0.0
        %1067 = vmatpush1.msra.mxu0 0.0
        %1068 = vmatprep.subr.mxu0 0.0
        %1069 = vmatpush1.msra.mxu0 0.0
        %1070 = vmatprep.subr.mxu0 0.0
        %1071 = vmatpush1.msra.mxu0 0.0
        %1072 = vmatprep.subr.mxu0 0.0
        %1073 = vmatpush1.msra.mxu0 0.0
        %1074 = vmatprep.subr.mxu0 0.0
        %1075 = vmatpush1.msra.mxu0 0.0
        %1076 = vmatprep.subr.mxu0 0.0
        %1077 = vmatpush1.msra.mxu0 0.0
        %1078 = vmatprep.subr.mxu0 0.0
        %1079 = vmatpush1.msra.mxu0 0.0
        %1080 = vmatprep.subr.mxu0 0.0
        %1081 = vmatpush1.msra.mxu0 0.0
        %1082 = vmatprep.subr.mxu0 0.0
        %1083 = vmatpush1.msra.mxu0 0.0
        %1084 = vmatprep.subr.mxu0 0.0
        %1085 = vmatpush1.msra.mxu0 0.0
        %1086 = vmatprep.subr.mxu0 0.0
        %1087 = vmatpush1.msra.mxu0 0.0
        %1088 = vmatprep.subr.mxu0 0.0
        %1089 = vmatpush1.msra.mxu0 0.0
        %1090 = vmatprep.subr.mxu0 0.0
        %1091 = vmatpush1.msra.mxu0 0.0
        %1092 = vmatprep.subr.mxu0 0.0
        %1093 = vmatpush1.msra.mxu0 0.0
        %1094 = vmatprep.subr.mxu0 0.0
        %1095 = vmatpush1.msra.mxu0 0.0
        %1096 = vmatprep.subr.mxu0 0.0
        %1097 = vmatpush1.msra.mxu0 0.0
        %1098 = vmatprep.subr.mxu0 0.0
        %1099 = vmatpush1.msra.mxu0 0.0
        %1100 = vmatprep.subr.mxu0 0.0
        %1101 = vmatpush1.msra.mxu0 0.0
        %1102 = vmatprep.subr.mxu0 0.0
        %1103 = vmatpush1.msra.mxu0 0.0
        %1104 = vmatprep.subr.mxu0 0.0
        %1105 = vmatpush1.msra.mxu0 0.0
        %1106 = vmatprep.subr.mxu0 0.0
        %1107 = vmatpush1.msra.mxu0 0.0
        %1108 = vmatprep.subr.mxu0 0.0
        %1109 = vmatpush1.msra.mxu0 0.0
        %1110 = vmatprep.subr.mxu0 0.0
        %1111 = vmatpush1.msra.mxu0 0.0
        %1112 = vmatprep.subr.mxu0 0.0
        %1113 = vmatpush1.msra.mxu0 0.0
        %1114 = vmatprep.subr.mxu0 0.0
        %1115 = vmatpush1.msra.mxu0 0.0
        %1116 = vmatprep.subr.mxu0 0.0
        %1117 = vmatpush1.msra.mxu0 0.0
        %1118 = vmatprep.subr.mxu0 0.0
        %1119 = vmatpush1.msra.mxu0 0.0
        %1120 = vmatprep.subr.mxu0 0.0
        %1121 = vmatpush1.msra.mxu0 0.0
        %1122 = vmatprep.subr.mxu0 0.0
        %1123 = vmatpush1.msra.mxu0 0.0
        %1124 = vmatprep.mubr.f32.mxu0 0.0
        %1125 = vmatmul.mubr.f32.gmra.mrb[0].mxu0 %v1052
        %v1126 = vpop.f32.mrb[0].mxu0
        %v1127 = vadd.f32 %v1050, %v1126
        %v1128 = vpop.f32.mrb[0].mxu0
        %1129 = vmatprep.mubr.f32.mxu0 0.0
        %1130 = vmatmul.mubr.f32.gmra.mrb[0].mxu0 %v1055
        %v1131 = vpop.f32.mrb[0].mxu0
        %v1132 = vadd.f32 %v1050, %v1131
        %v1133 = vpop.f32.mrb[0].mxu0
        %1134 = vdwg.mxu0
        %v1135 = vmul.f32 %v1127, 0.5
        %v1136 = vmul.f32 %v1132, 0.5
        %v1137 = vmul.f32 %v1127, 0.70710677
        %v1138 = vmul.f32 %v1132, 0.70710677
        %v1139 = verf.f32.pop %v1137
        %v1140 = verf.f32.pop %v1138
        %v1141 = vadd.f32 %v1139, 1.0
        %v1142 = vadd.f32 %v1140, 1.0
        %v1143 = vmul.f32 %v1135, %v1141
        %v1144 = vmul.f32 %v1136, %v1142
        %v1145 = vld [vmem:[#allocation11 + $0x13] sm:$0x1]
        %v1146 = vld [vmem:[#allocation11 + $0x16] sm:$0x1]
        %v1147 = vsel %vm678, %v1143, 0.0
        %1148 = vadd.xlane.f32.xlu0 %v1147
        %v1149 = vpop.xlane.xlu0 %1148
        %v1150 = vsel %vm678, %v1144, 0.0
        %1151 = vadd.xlane.f32.xlu0 %v1150
        %v1152 = vpop.xlane.xlu0 %1151
        %v1153 = vmul.f32 %v1149, %v685
        %v1154 = vmul.f32 %v1152, %v685
        %v1155 = vsub.f32 %v1143, %v1153
        %v1156 = vsub.f32 %v1144, %v1154
        %v1157 = vmul.f32 %v1155, %v1155
        %v1158 = vmul.f32 %v1156, %v1156
        %v1159 = vsel %vm678, %v1157, 0.0
        %1160 = vadd.xlane.f32.xlu0 %v1159
        %v1161 = vpop.xlane.xlu0 %1160
        %v1162 = vsel %vm678, %v1158, 0.0
        %1163 = vadd.xlane.f32.xlu0 %v1162
        %v1164 = vpop.xlane.xlu0 %1163
        %v1165 = vmul.f32 %v1161, %v685
        %v1166 = vmul.f32 %v1164, %v685
        %v1167 = vadd.f32 %v1165, 1e-05
        %v1168 = vadd.f32 %v1166, 1e-05
        %v1169 = vrsqrt.pop %v1167
        %v1170 = vrsqrt.pop %v1168
        %v1171 = vmul.f32 %v1155, %v1169
        %v1172 = vmul.f32 %v1156, %v1170
        %v1173 = vlaneseq
        %v1174 = vshrl.u32 %v1173, 7
        %v1175 = vsub.s32 0, %v1174
        %v1176 = vrot.slane %v1145, %v1175
        %v1177 = vmul.f32 %v1171, %v1176
        %v1178 = vmul.f32 %v1172, %v1176
        %v1179 = vlaneseq
        %v1180 = vshrl.u32 %v1179, 7
        %v1181 = vsub.s32 0, %v1180
        %v1182 = vrot.slane %v1146, %v1181
        %v1183 = vadd.f32 %v1177, %v1182
        %v1184 = vadd.f32 %v1178, %v1182
        %s1185 = scalar_lea.vmem %s5, 32
        %v1186 = vld [vmem:[%s1185] sm:$0xff]
        %v1187 = vld [vmem:[%s1185 + $0x8] sm:$0xff]
        %v1188 = vld [vmem:[%s1185 + $0x10] sm:$0xff]
        %v1189 = vld [vmem:[%s1185 + $0x18] sm:$0xff]
        %v1190 = vld [vmem:[#allocation11 + $0x19] sm:$0x1]
        %v1191 = vlaneseq
        %v1192 = vshrl.u32 %v1191, 7
        %v1193 = vsub.s32 0, %v1192
        %v1194 = vrot.slane %v1190, %v1193
        %v1196 = vsel %vm678, %v1183, 0
        %v1199 = vsel %vm678, %v1184, 0
        %1201 = vmatprep.subr.mxu0 0.0
        %1202 = vmatpush1.msra.mxu0 %v1186
        %1203 = vmatprep.subr.mxu0 0.0
        %1204 = vmatpush1.msra.mxu0 %v1187
        %1205 = vmatprep.subr.mxu0 0.0
        %1206 = vmatpush1.msra.mxu0 %v1188
        %1207 = vmatprep.subr.mxu0 0.0
        %1208 = vmatpush1.msra.mxu0 %v1189
        %1209 = vmatprep.subr.mxu0 0.0
        %1210 = vmatpush1.msra.mxu0 0.0
        %1211 = vmatprep.subr.mxu0 0.0
        %1212 = vmatpush1.msra.mxu0 0.0
        %1213 = vmatprep.subr.mxu0 0.0
        %1214 = vmatpush1.msra.mxu0 0.0
        %1215 = vmatprep.subr.mxu0 0.0
        %1216 = vmatpush1.msra.mxu0 0.0
        %1217 = vmatprep.subr.mxu0 0.0
        %1218 = vmatpush1.msra.mxu0 0.0
        %1219 = vmatprep.subr.mxu0 0.0
        %1220 = vmatpush1.msra.mxu0 0.0
        %1221 = vmatprep.subr.mxu0 0.0
        %1222 = vmatpush1.msra.mxu0 0.0
        %1223 = vmatprep.subr.mxu0 0.0
        %1224 = vmatpush1.msra.mxu0 0.0
        %1225 = vmatprep.subr.mxu0 0.0
        %1226 = vmatpush1.msra.mxu0 0.0
        %1227 = vmatprep.subr.mxu0 0.0
        %1228 = vmatpush1.msra.mxu0 0.0
        %1229 = vmatprep.subr.mxu0 0.0
        %1230 = vmatpush1.msra.mxu0 0.0
        %1231 = vmatprep.subr.mxu0 0.0
        %1232 = vmatpush1.msra.mxu0 0.0
        %1233 = vmatprep.subr.mxu0 0.0
        %1234 = vmatpush1.msra.mxu0 0.0
        %1235 = vmatprep.subr.mxu0 0.0
        %1236 = vmatpush1.msra.mxu0 0.0
        %1237 = vmatprep.subr.mxu0 0.0
        %1238 = vmatpush1.msra.mxu0 0.0
        %1239 = vmatprep.subr.mxu0 0.0
        %1240 = vmatpush1.msra.mxu0 0.0
        %1241 = vmatprep.subr.mxu0 0.0
        %1242 = vmatpush1.msra.mxu0 0.0
        %1243 = vmatprep.subr.mxu0 0.0
        %1244 = vmatpush1.msra.mxu0 0.0
        %1245 = vmatprep.subr.mxu0 0.0
        %1246 = vmatpush1.msra.mxu0 0.0
        %1247 = vmatprep.subr.mxu0 0.0
        %1248 = vmatpush1.msra.mxu0 0.0
        %1249 = vmatprep.subr.mxu0 0.0
        %1250 = vmatpush1.msra.mxu0 0.0
        %1251 = vmatprep.subr.mxu0 0.0
        %1252 = vmatpush1.msra.mxu0 0.0
        %1253 = vmatprep.subr.mxu0 0.0
        %1254 = vmatpush1.msra.mxu0 0.0
        %1255 = vmatprep.subr.mxu0 0.0
        %1256 = vmatpush1.msra.mxu0 0.0
        %1257 = vmatprep.subr.mxu0 0.0
        %1258 = vmatpush1.msra.mxu0 0.0
        %1259 = vmatprep.subr.mxu0 0.0
        %1260 = vmatpush1.msra.mxu0 0.0
        %1261 = vmatprep.subr.mxu0 0.0
        %1262 = vmatpush1.msra.mxu0 0.0
        %1263 = vmatprep.subr.mxu0 0.0
        %1264 = vmatpush1.msra.mxu0 0.0
        %1265 = vmatprep.mubr.f32.mxu0 0.0
        %1266 = vmatmul.mubr.f32.gmra.mrb[0].mxu0 %v1196
        %v1267 = vpop.f32.mrb[0].mxu0
        %v1268 = vadd.f32 %v1194, %v1267
        %v1269 = vpop.f32.mrb[0].mxu0
        %1270 = vmatprep.mubr.f32.mxu0 0.0
        %1271 = vmatmul.mubr.f32.gmra.mrb[0].mxu0 %v1199
        %v1272 = vpop.f32.mrb[0].mxu0
        %v1273 = vadd.f32 %v1194, %v1272
        %v1274 = vpop.f32.mrb[0].mxu0
        %1275 = vdwg.mxu0
        %v1276 = vmul.f32 %v1268, 0.5
        %v1277 = vmul.f32 %v1273, 0.5
        %v1278 = vmul.f32 %v1268, 0.70710677
        %v1279 = vmul.f32 %v1273, 0.70710677
        %v1280 = verf.f32.pop %v1278
        %v1281 = verf.f32.pop %v1279
        %v1282 = vadd.f32 %v1280, 1.0
        %v1283 = vadd.f32 %v1281, 1.0
        %v1284 = vmul.f32 %v1276, %v1282
        %v1285 = vmul.f32 %v1277, %v1283
        %v1286 = vld [vmem:[#allocation11 + $0x1c] sm:$0x1]
        %v1287 = vld [vmem:[#allocation11 + $0x1f] sm:$0x1]
        %v1288 = vsel %vm820, %v1284, 0.0
        %1289 = vadd.xlane.f32.xlu0 %v1288
        %v1290 = vpop.xlane.xlu0 %1289
        %v1291 = vsel %vm820, %v1285, 0.0
        %1292 = vadd.xlane.f32.xlu0 %v1291
        %v1293 = vpop.xlane.xlu0 %1292
        %v1294 = vmul.f32 %v1290, %v827
        %v1295 = vmul.f32 %v1293, %v827
        %v1296 = vsub.f32 %v1284, %v1294
        %v1297 = vsub.f32 %v1285, %v1295
        %v1298 = vmul.f32 %v1296, %v1296
        %v1299 = vmul.f32 %v1297, %v1297
        %v1300 = vsel %vm820, %v1298, 0.0
        %1301 = vadd.xlane.f32.xlu0 %v1300
        %v1302 = vpop.xlane.xlu0 %1301
        %v1303 = vsel %vm820, %v1299, 0.0
        %1304 = vadd.xlane.f32.xlu0 %v1303
        %v1305 = vpop.xlane.xlu0 %1304
        %v1306 = vmul.f32 %v1302, %v827
        %v1307 = vmul.f32 %v1305, %v827
        %v1308 = vadd.f32 %v1306, 1e-05
        %v1309 = vadd.f32 %v1307, 1e-05
        %v1310 = vrsqrt.pop %v1308
        %v1311 = vrsqrt.pop %v1309
        %v1312 = vmul.f32 %v1296, %v1310
        %v1313 = vmul.f32 %v1297, %v1311
        %v1314 = vlaneseq
        %v1315 = vshrl.u32 %v1314, 7
        %v1316 = vsub.s32 0, %v1315
        %v1317 = vrot.slane %v1286, %v1316
        %v1318 = vmul.f32 %v1312, %v1317
        %v1319 = vmul.f32 %v1313, %v1317
        %v1320 = vlaneseq
        %v1321 = vshrl.u32 %v1320, 7
        %v1322 = vsub.s32 0, %v1321
        %v1323 = vrot.slane %v1287, %v1322
        %v1324 = vadd.f32 %v1318, %v1323
        %v1325 = vadd.f32 %v1319, %v1323
        %s1326 = scalar_lea.vmem [#allocation12], 64
        %v1327 = vld [vmem:[%s1326] sm:$0xff]
        %v1328 = vld [vmem:[%s1326 + $0x8] sm:$0xff]
        %v1329 = vld [vmem:[%s1326 + $0x10] sm:$0xff]
        %v1330 = vld [vmem:[%s1326 + $0x18] sm:$0xff]
        %v1331 = vld [vmem:[%s1326 + $0x20] sm:$0xff]
        %v1332 = vld [vmem:[%s1326 + $0x28] sm:$0xff]
        %v1333 = vld [vmem:[%s1326 + $0x30] sm:$0xff]
        %v1334 = vld [vmem:[%s1326 + $0x38] sm:$0xff]
        %v1335 = vld [vmem:[#allocation11 + $0x22] sm:$0x1]
        %v1336 = vlaneseq
        %v1337 = vshrl.u32 %v1336, 7
        %v1338 = vsub.s32 0, %v1337
        %v1339 = vrot.slane %v1335, %v1338
        %v1341 = vsel %vm820, %v1324, 0
        %v1344 = vsel %vm820, %v1325, 0
        %1346 = vmatprep.subr.mxu0 0.0
        %1347 = vmatpush1.msra.mxu0 %v1327
        %1348 = vmatprep.subr.mxu0 0.0
        %1349 = vmatpush1.msra.mxu0 %v1328
        %1350 = vmatprep.subr.mxu0 0.0
        %1351 = vmatpush1.msra.mxu0 %v1329
        %1352 = vmatprep.subr.mxu0 0.0
        %1353 = vmatpush1.msra.mxu0 %v1330
        %1354 = vmatprep.subr.mxu0 0.0
        %1355 = vmatpush1.msra.mxu0 %v1331
        %1356 = vmatprep.subr.mxu0 0.0
        %1357 = vmatpush1.msra.mxu0 %v1332
        %1358 = vmatprep.subr.mxu0 0.0
        %1359 = vmatpush1.msra.mxu0 %v1333
        %1360 = vmatprep.subr.mxu0 0.0
        %1361 = vmatpush1.msra.mxu0 %v1334
        %1362 = vmatprep.subr.mxu0 0.0
        %1363 = vmatpush1.msra.mxu0 0.0
        %1364 = vmatprep.subr.mxu0 0.0
        %1365 = vmatpush1.msra.mxu0 0.0
        %1366 = vmatprep.subr.mxu0 0.0
        %1367 = vmatpush1.msra.mxu0 0.0
        %1368 = vmatprep.subr.mxu0 0.0
        %1369 = vmatpush1.msra.mxu0 0.0
        %1370 = vmatprep.subr.mxu0 0.0
        %1371 = vmatpush1.msra.mxu0 0.0
        %1372 = vmatprep.subr.mxu0 0.0
        %1373 = vmatpush1.msra.mxu0 0.0
        %1374 = vmatprep.subr.mxu0 0.0
        %1375 = vmatpush1.msra.mxu0 0.0
        %1376 = vmatprep.subr.mxu0 0.0
        %1377 = vmatpush1.msra.mxu0 0.0
        %1378 = vmatprep.subr.mxu0 0.0
        %1379 = vmatpush1.msra.mxu0 0.0
        %1380 = vmatprep.subr.mxu0 0.0
        %1381 = vmatpush1.msra.mxu0 0.0
        %1382 = vmatprep.subr.mxu0 0.0
        %1383 = vmatpush1.msra.mxu0 0.0
        %1384 = vmatprep.subr.mxu0 0.0
        %1385 = vmatpush1.msra.mxu0 0.0
        %1386 = vmatprep.subr.mxu0 0.0
        %1387 = vmatpush1.msra.mxu0 0.0
        %1388 = vmatprep.subr.mxu0 0.0
        %1389 = vmatpush1.msra.mxu0 0.0
        %1390 = vmatprep.subr.mxu0 0.0
        %1391 = vmatpush1.msra.mxu0 0.0
        %1392 = vmatprep.subr.mxu0 0.0
        %1393 = vmatpush1.msra.mxu0 0.0
        %1394 = vmatprep.subr.mxu0 0.0
        %1395 = vmatpush1.msra.mxu0 0.0
        %1396 = vmatprep.subr.mxu0 0.0
        %1397 = vmatpush1.msra.mxu0 0.0
        %1398 = vmatprep.subr.mxu0 0.0
        %1399 = vmatpush1.msra.mxu0 0.0
        %1400 = vmatprep.subr.mxu0 0.0
        %1401 = vmatpush1.msra.mxu0 0.0
        %1402 = vmatprep.subr.mxu0 0.0
        %1403 = vmatpush1.msra.mxu0 0.0
        %1404 = vmatprep.subr.mxu0 0.0
        %1405 = vmatpush1.msra.mxu0 0.0
        %1406 = vmatprep.subr.mxu0 0.0
        %1407 = vmatpush1.msra.mxu0 0.0
        %1408 = vmatprep.subr.mxu0 0.0
        %1409 = vmatpush1.msra.mxu0 0.0
        %1410 = vmatprep.mubr.f32.mxu0 0.0
        %1411 = vmatmul.mubr.f32.gmra.mrb[0].mxu0 %v1341
        %v1412 = vpop.f32.mrb[0].mxu0
        %v1413 = vadd.f32 %v1339, %v1412
        %v1414 = vpop.f32.mrb[0].mxu0
        %1415 = vmatprep.mubr.f32.mxu0 0.0
        %1416 = vmatmul.mubr.f32.gmra.mrb[0].mxu0 %v1344
        %v1417 = vpop.f32.mrb[0].mxu0
        %v1418 = vadd.f32 %v1339, %v1417
        %v1419 = vpop.f32.mrb[0].mxu0
        %1420 = vdwg.mxu0
        %v1421 = vld [vmem:[#allocation11 + $0x25] sm:$0x1]
        %v1422 = vld [vmem:[#allocation11 + $0x28] sm:$0x1]
        %v1423 = vsel %vm820, %v1413, 0.0
        %1424 = vadd.xlane.f32.xlu0 %v1423
        %v1425 = vpop.xlane.xlu0 %1424
        %v1426 = vsel %vm820, %v1418, 0.0
        %1427 = vadd.xlane.f32.xlu0 %v1426
        %v1428 = vpop.xlane.xlu0 %1427
        %v1429 = vmul.f32 %v1425, %v827
        %v1430 = vmul.f32 %v1428, %v827
        %v1431 = vsub.f32 %v1413, %v1429
        %v1432 = vsub.f32 %v1418, %v1430
        %v1433 = vmul.f32 %v1431, %v1431
        %v1434 = vmul.f32 %v1432, %v1432
        %v1435 = vsel %vm820, %v1433, 0.0
        %1436 = vadd.xlane.f32.xlu0 %v1435
        %v1437 = vpop.xlane.xlu0 %1436
        %v1438 = vsel %vm820, %v1434, 0.0
        %1439 = vadd.xlane.f32.xlu0 %v1438
        %v1440 = vpop.xlane.xlu0 %1439
        %v1441 = vmul.f32 %v1437, %v827
        %v1442 = vmul.f32 %v1440, %v827
        %v1443 = vadd.f32 %v1441, 1e-05
        %v1444 = vadd.f32 %v1442, 1e-05
        %v1445 = vrsqrt.pop %v1443
        %v1446 = vrsqrt.pop %v1444
        %v1447 = vmul.f32 %v1431, %v1445
        %v1448 = vmul.f32 %v1432, %v1446
        %v1449 = vlaneseq
        %v1450 = vshrl.u32 %v1449, 7
        %v1451 = vsub.s32 0, %v1450
        %v1452 = vrot.slane %v1421, %v1451
        %v1453 = vmul.f32 %v1447, %v1452
        %v1454 = vmul.f32 %v1448, %v1452
        %v1455 = vlaneseq
        %v1456 = vshrl.u32 %v1455, 7
        %v1457 = vsub.s32 0, %v1456
        %v1458 = vrot.slane %v1422, %v1457
        %v1459 = vadd.f32 %v1453, %v1458
        %v1460 = vadd.f32 %v1454, %v1458
        %v1461 = vld [vmem:[#allocation11 + $0x2b] sm:$0x1]
        %v1462 = vlaneseq
        %v1463 = vshrl.u32 %v1462, 7
        %v1464 = vsub.s32 0, %v1463
        %v1465 = vrot.slane %v1461, %v1464
        %v1466 = vadd.f32 %v1459, %v1465
        %v1467 = vadd.f32 %v1460, %v1465
        %1468 = vst.msk [vmem:[#allocation2 + $0x10] sm:$0xff] %vm820, %v1466
        %1469 = vst.msk [vmem:[#allocation2 + $0x18] sm:$0xff] %vm820, %v1467
        %v1470 = vld [vmem:[#allocation11 + $0xc] sm:$0x1]
        %v1471 = vlaneseq
        %v1472 = vshrl.u32 %v1471, 7
        %v1473 = vsub.s32 0, %v1472
        %v1474 = vrot.slane %v1470, %v1473
        %v1475 = vmul.f32 %v518, %v1474
        %v1476 = vmul.f32 %v519, %v1474
        %v1477 = vld [vmem:[#allocation11 + $0xd] sm:$0x1]
        %v1478 = vlaneseq
        %v1479 = vshrl.u32 %v1478, 7
        %v1480 = vsub.s32 0, %v1479
        %v1481 = vrot.slane %v1477, %v1480
        %v1482 = vmul.f32 %v496, %v1481
        %v1483 = vmul.f32 %v503, %v1481
        %v1484 = vadd.f32 %v1475, %v1482
        %v1485 = vadd.f32 %v1476, %v1483
        %v1486 = vld [vmem:[#allocation11 + $0xe] sm:$0x1]
        %v1487 = vlaneseq
        %v1488 = vshrl.u32 %v1487, 7
        %v1489 = vsub.s32 0, %v1488
        %v1490 = vrot.slane %v1486, %v1489
        %v1491 = vmul.f32 %v531, %v1490
        %v1492 = vmul.f32 %v532, %v1490
        %v1493 = vadd.f32 %v1484, %v1491
        %v1494 = vadd.f32 %v1485, %v1492
        %v1495 = vld [vmem:[#allocation11 + $0x2] sm:$0x1]
        %v1496 = vlaneseq
        %v1497 = vshrl.u32 %v1496, 7
        %v1498 = vsub.s32 0, %v1497
        %v1499 = vrot.slane %v1495, %v1498
        %v1500 = vadd.f32 %v1493, %v1499
        %v1501 = vadd.f32 %v1494, %v1499
        %v1502 = vld [vmem:[#allocation11 + $0x5] sm:$0x1]
        %v1503 = vlaneseq
        %v1504 = vshrl.u32 %v1503, 7
        %v1505 = vsub.s32 0, %v1504
        %v1506 = vrot.slane %v1502, %v1505
        %v1507 = vmul.f32 %v1500, %v1506
        %v1508 = vmul.f32 %v1501, %v1506
        %s1509 = scalar_lea.vmem [#allocation14], 48
        %v1510 = vld [vmem:[%s1509] sm:$0xff]
        %v1511 = vld [vmem:[%s1509 + $0x8] sm:$0xff]
        %v1512 = vld [vmem:[%s1509 + $0x10] sm:$0xf]
        %v1513 = vld [vmem:[#allocation11 + $0x11] sm:$0x1]
        %v1514 = vlaneseq
        %v1515 = vshrl.u32 %v1514, 7
        %v1516 = vsub.s32 0, %v1515
        %v1517 = vrot.slane %v1513, %v1516
        %v1519 = vsel %vm580, %v1507, 0
        %v1522 = vsel %vm580, %v1508, 0
        %v1525 = vsel %vm587, %v1512, 0
        %1527 = vmatprep.subr.mxu0 0.0
        %1528 = vmatpush1.msra.mxu0 %v1510
        %1529 = vmatprep.subr.mxu0 0.0
        %1530 = vmatpush1.msra.mxu0 %v1511
        %1531 = vmatprep.subr.mxu0 0.0
        %1532 = vmatpush1.msra.mxu0 %v1525
        %1533 = vmatprep.subr.mxu0 0.0
        %1534 = vmatpush1.msra.mxu0 0.0
        %1535 = vmatprep.subr.mxu0 0.0
        %1536 = vmatpush1.msra.mxu0 0.0
        %1537 = vmatprep.subr.mxu0 0.0
        %1538 = vmatpush1.msra.mxu0 0.0
        %1539 = vmatprep.subr.mxu0 0.0
        %1540 = vmatpush1.msra.mxu0 0.0
        %1541 = vmatprep.subr.mxu0 0.0
        %1542 = vmatpush1.msra.mxu0 0.0
        %1543 = vmatprep.subr.mxu0 0.0
        %1544 = vmatpush1.msra.mxu0 0.0
        %1545 = vmatprep.subr.mxu0 0.0
        %1546 = vmatpush1.msra.mxu0 0.0
        %1547 = vmatprep.subr.mxu0 0.0
        %1548 = vmatpush1.msra.mxu0 0.0
        %1549 = vmatprep.subr.mxu0 0.0
        %1550 = vmatpush1.msra.mxu0 0.0
        %1551 = vmatprep.subr.mxu0 0.0
        %1552 = vmatpush1.msra.mxu0 0.0
        %1553 = vmatprep.subr.mxu0 0.0
        %1554 = vmatpush1.msra.mxu0 0.0
        %1555 = vmatprep.subr.mxu0 0.0
        %1556 = vmatpush1.msra.mxu0 0.0
        %1557 = vmatprep.subr.mxu0 0.0
        %1558 = vmatpush1.msra.mxu0 0.0
        %1559 = vmatprep.subr.mxu0 0.0
        %1560 = vmatpush1.msra.mxu0 0.0
        %1561 = vmatprep.subr.mxu0 0.0
        %1562 = vmatpush1.msra.mxu0 0.0
        %1563 = vmatprep.subr.mxu0 0.0
        %1564 = vmatpush1.msra.mxu0 0.0
        %1565 = vmatprep.subr.mxu0 0.0
        %1566 = vmatpush1.msra.mxu0 0.0
        %1567 = vmatprep.subr.mxu0 0.0
        %1568 = vmatpush1.msra.mxu0 0.0
        %1569 = vmatprep.subr.mxu0 0.0
        %1570 = vmatpush1.msra.mxu0 0.0
        %1571 = vmatprep.subr.mxu0 0.0
        %1572 = vmatpush1.msra.mxu0 0.0
        %1573 = vmatprep.subr.mxu0 0.0
        %1574 = vmatpush1.msra.mxu0 0.0
        %1575 = vmatprep.subr.mxu0 0.0
        %1576 = vmatpush1.msra.mxu0 0.0
        %1577 = vmatprep.subr.mxu0 0.0
        %1578 = vmatpush1.msra.mxu0 0.0
        %1579 = vmatprep.subr.mxu0 0.0
        %1580 = vmatpush1.msra.mxu0 0.0
        %1581 = vmatprep.subr.mxu0 0.0
        %1582 = vmatpush1.msra.mxu0 0.0
        %1583 = vmatprep.subr.mxu0 0.0
        %1584 = vmatpush1.msra.mxu0 0.0
        %1585 = vmatprep.subr.mxu0 0.0
        %1586 = vmatpush1.msra.mxu0 0.0
        %1587 = vmatprep.subr.mxu0 0.0
        %1588 = vmatpush1.msra.mxu0 0.0
        %1589 = vmatprep.subr.mxu0 0.0
        %1590 = vmatpush1.msra.mxu0 0.0
        %1591 = vmatprep.mubr.f32.mxu0 0.0
        %1592 = vmatmul.mubr.f32.gmra.mrb[0].mxu0 %v1519
        %v1593 = vpop.f32.mrb[0].mxu0
        %v1594 = vadd.f32 %v1517, %v1593
        %v1595 = vpop.f32.mrb[0].mxu0
        %1596 = vmatprep.mubr.f32.mxu0 0.0
        %1597 = vmatmul.mubr.f32.gmra.mrb[0].mxu0 %v1522
        %v1598 = vpop.f32.mrb[0].mxu0
        %v1599 = vadd.f32 %v1517, %v1598
        %v1600 = vpop.f32.mrb[0].mxu0
        %1601 = vdwg.mxu0
        %v1602 = vmul.f32 %v1594, 0.5
        %v1603 = vmul.f32 %v1599, 0.5
        %v1604 = vmul.f32 %v1594, 0.70710677
        %v1605 = vmul.f32 %v1599, 0.70710677
        %v1606 = verf.f32.pop %v1604
        %v1607 = verf.f32.pop %v1605
        %v1608 = vadd.f32 %v1606, 1.0
        %v1609 = vadd.f32 %v1607, 1.0
        %v1610 = vmul.f32 %v1602, %v1608
        %v1611 = vmul.f32 %v1603, %v1609
        %v1612 = vld [vmem:[#allocation11 + $0x14] sm:$0x1]
        %v1613 = vld [vmem:[#allocation11 + $0x17] sm:$0x1]
        %v1614 = vsel %vm678, %v1610, 0.0
        %1615 = vadd.xlane.f32.xlu0 %v1614
        %v1616 = vpop.xlane.xlu0 %1615
        %v1617 = vsel %vm678, %v1611, 0.0
        %1618 = vadd.xlane.f32.xlu0 %v1617
        %v1619 = vpop.xlane.xlu0 %1618
        %v1620 = vmul.f32 %v1616, %v685
        %v1621 = vmul.f32 %v1619, %v685
        %v1622 = vsub.f32 %v1610, %v1620
        %v1623 = vsub.f32 %v1611, %v1621
        %v1624 = vmul.f32 %v1622, %v1622
        %v1625 = vmul.f32 %v1623, %v1623
        %v1626 = vsel %vm678, %v1624, 0.0
        %1627 = vadd.xlane.f32.xlu0 %v1626
        %v1628 = vpop.xlane.xlu0 %1627
        %v1629 = vsel %vm678, %v1625, 0.0
        %1630 = vadd.xlane.f32.xlu0 %v1629
        %v1631 = vpop.xlane.xlu0 %1630
        %v1632 = vmul.f32 %v1628, %v685
        %v1633 = vmul.f32 %v1631, %v685
        %v1634 = vadd.f32 %v1632, 1e-05
        %v1635 = vadd.f32 %v1633, 1e-05
        %v1636 = vrsqrt.pop %v1634
        %v1637 = vrsqrt.pop %v1635
        %v1638 = vmul.f32 %v1622, %v1636
        %v1639 = vmul.f32 %v1623, %v1637
        %v1640 = vlaneseq
        %v1641 = vshrl.u32 %v1640, 7
        %v1642 = vsub.s32 0, %v1641
        %v1643 = vrot.slane %v1612, %v1642
        %v1644 = vmul.f32 %v1638, %v1643
        %v1645 = vmul.f32 %v1639, %v1643
        %v1646 = vlaneseq
        %v1647 = vshrl.u32 %v1646, 7
        %v1648 = vsub.s32 0, %v1647
        %v1649 = vrot.slane %v1613, %v1648
        %v1650 = vadd.f32 %v1644, %v1649
        %v1651 = vadd.f32 %v1645, %v1649
        %s1652 = scalar_lea.vmem %s5, 64
        %v1653 = vld [vmem:[%s1652] sm:$0xff]
        %v1654 = vld [vmem:[%s1652 + $0x8] sm:$0xff]
        %v1655 = vld [vmem:[%s1652 + $0x10] sm:$0xff]
        %v1656 = vld [vmem:[%s1652 + $0x18] sm:$0xff]
        %v1657 = vld [vmem:[#allocation11 + $0x1a] sm:$0x1]
        %v1658 = vlaneseq
        %v1659 = vshrl.u32 %v1658, 7
        %v1660 = vsub.s32 0, %v1659
        %v1661 = vrot.slane %v1657, %v1660
        %v1663 = vsel %vm678, %v1650, 0
        %v1666 = vsel %vm678, %v1651, 0
        %1668 = vmatprep.subr.mxu0 0.0
        %1669 = vmatpush1.msra.mxu0 %v1653
        %1670 = vmatprep.subr.mxu0 0.0
        %1671 = vmatpush1.msra.mxu0 %v1654
        %1672 = vmatprep.subr.mxu0 0.0
        %1673 = vmatpush1.msra.mxu0 %v1655
        %1674 = vmatprep.subr.mxu0 0.0
        %1675 = vmatpush1.msra.mxu0 %v1656
        %1676 = vmatprep.subr.mxu0 0.0
        %1677 = vmatpush1.msra.mxu0 0.0
        %1678 = vmatprep.subr.mxu0 0.0
        %1679 = vmatpush1.msra.mxu0 0.0
        %1680 = vmatprep.subr.mxu0 0.0
        %1681 = vmatpush1.msra.mxu0 0.0
        %1682 = vmatprep.subr.mxu0 0.0
        %1683 = vmatpush1.msra.mxu0 0.0
        %1684 = vmatprep.subr.mxu0 0.0
        %1685 = vmatpush1.msra.mxu0 0.0
        %1686 = vmatprep.subr.mxu0 0.0
        %1687 = vmatpush1.msra.mxu0 0.0
        %1688 = vmatprep.subr.mxu0 0.0
        %1689 = vmatpush1.msra.mxu0 0.0
        %1690 = vmatprep.subr.mxu0 0.0
        %1691 = vmatpush1.msra.mxu0 0.0
        %1692 = vmatprep.subr.mxu0 0.0
        %1693 = vmatpush1.msra.mxu0 0.0
        %1694 = vmatprep.subr.mxu0 0.0
        %1695 = vmatpush1.msra.mxu0 0.0
        %1696 = vmatprep.subr.mxu0 0.0
        %1697 = vmatpush1.msra.mxu0 0.0
        %1698 = vmatprep.subr.mxu0 0.0
        %1699 = vmatpush1.msra.mxu0 0.0
        %1700 = vmatprep.subr.mxu0 0.0
        %1701 = vmatpush1.msra.mxu0 0.0
        %1702 = vmatprep.subr.mxu0 0.0
        %1703 = vmatpush1.msra.mxu0 0.0
        %1704 = vmatprep.subr.mxu0 0.0
        %1705 = vmatpush1.msra.mxu0 0.0
        %1706 = vmatprep.subr.mxu0 0.0
        %1707 = vmatpush1.msra.mxu0 0.0
        %1708 = vmatprep.subr.mxu0 0.0
        %1709 = vmatpush1.msra.mxu0 0.0
        %1710 = vmatprep.subr.mxu0 0.0
        %1711 = vmatpush1.msra.mxu0 0.0
        %1712 = vmatprep.subr.mxu0 0.0
        %1713 = vmatpush1.msra.mxu0 0.0
        %1714 = vmatprep.subr.mxu0 0.0
        %1715 = vmatpush1.msra.mxu0 0.0
        %1716 = vmatprep.subr.mxu0 0.0
        %1717 = vmatpush1.msra.mxu0 0.0
        %1718 = vmatprep.subr.mxu0 0.0
        %1719 = vmatpush1.msra.mxu0 0.0
        %1720 = vmatprep.subr.mxu0 0.0
        %1721 = vmatpush1.msra.mxu0 0.0
        %1722 = vmatprep.subr.mxu0 0.0
        %1723 = vmatpush1.msra.mxu0 0.0
        %1724 = vmatprep.subr.mxu0 0.0
        %1725 = vmatpush1.msra.mxu0 0.0
        %1726 = vmatprep.subr.mxu0 0.0
        %1727 = vmatpush1.msra.mxu0 0.0
        %1728 = vmatprep.subr.mxu0 0.0
        %1729 = vmatpush1.msra.mxu0 0.0
        %1730 = vmatprep.subr.mxu0 0.0
        %1731 = vmatpush1.msra.mxu0 0.0
        %1732 = vmatprep.mubr.f32.mxu0 0.0
        %1733 = vmatmul.mubr.f32.gmra.mrb[0].mxu0 %v1663
        %v1734 = vpop.f32.mrb[0].mxu0
        %v1735 = vadd.f32 %v1661, %v1734
        %v1736 = vpop.f32.mrb[0].mxu0
        %1737 = vmatprep.mubr.f32.mxu0 0.0
        %1738 = vmatmul.mubr.f32.gmra.mrb[0].mxu0 %v1666
        %v1739 = vpop.f32.mrb[0].mxu0
        %v1740 = vadd.f32 %v1661, %v1739
        %v1741 = vpop.f32.mrb[0].mxu0
        %1742 = vdwg.mxu0
        %v1743 = vmul.f32 %v1735, 0.5
        %v1744 = vmul.f32 %v1740, 0.5
        %v1745 = vmul.f32 %v1735, 0.70710677
        %v1746 = vmul.f32 %v1740, 0.70710677
        %v1747 = verf.f32.pop %v1745
        %v1748 = verf.f32.pop %v1746
        %v1749 = vadd.f32 %v1747, 1.0
        %v1750 = vadd.f32 %v1748, 1.0
        %v1751 = vmul.f32 %v1743, %v1749
        %v1752 = vmul.f32 %v1744, %v1750
        %v1753 = vld [vmem:[#allocation11 + $0x1d] sm:$0x1]
        %v1754 = vld [vmem:[#allocation11 + $0x20] sm:$0x1]
        %v1755 = vsel %vm820, %v1751, 0.0
        %1756 = vadd.xlane.f32.xlu0 %v1755
        %v1757 = vpop.xlane.xlu0 %1756
        %v1758 = vsel %vm820, %v1752, 0.0
        %1759 = vadd.xlane.f32.xlu0 %v1758
        %v1760 = vpop.xlane.xlu0 %1759
        %v1761 = vmul.f32 %v1757, %v827
        %v1762 = vmul.f32 %v1760, %v827
        %v1763 = vsub.f32 %v1751, %v1761
        %v1764 = vsub.f32 %v1752, %v1762
        %v1765 = vmul.f32 %v1763, %v1763
        %v1766 = vmul.f32 %v1764, %v1764
        %v1767 = vsel %vm820, %v1765, 0.0
        %1768 = vadd.xlane.f32.xlu0 %v1767
        %v1769 = vpop.xlane.xlu0 %1768
        %v1770 = vsel %vm820, %v1766, 0.0
        %1771 = vadd.xlane.f32.xlu0 %v1770
        %v1772 = vpop.xlane.xlu0 %1771
        %v1773 = vmul.f32 %v1769, %v827
        %v1774 = vmul.f32 %v1772, %v827
        %v1775 = vadd.f32 %v1773, 1e-05
        %v1776 = vadd.f32 %v1774, 1e-05
        %v1777 = vrsqrt.pop %v1775
        %v1778 = vrsqrt.pop %v1776
        %v1779 = vmul.f32 %v1763, %v1777
        %v1780 = vmul.f32 %v1764, %v1778
        %v1781 = vlaneseq
        %v1782 = vshrl.u32 %v1781, 7
        %v1783 = vsub.s32 0, %v1782
        %v1784 = vrot.slane %v1753, %v1783
        %v1785 = vmul.f32 %v1779, %v1784
        %v1786 = vmul.f32 %v1780, %v1784
        %v1787 = vlaneseq
        %v1788 = vshrl.u32 %v1787, 7
        %v1789 = vsub.s32 0, %v1788
        %v1790 = vrot.slane %v1754, %v1789
        %v1791 = vadd.f32 %v1785, %v1790
        %v1792 = vadd.f32 %v1786, %v1790
        %s1793 = scalar_lea.vmem [#allocation12], 128
        %v1794 = vld [vmem:[%s1793] sm:$0xff]
        %v1795 = vld [vmem:[%s1793 + $0x8] sm:$0xff]
        %v1796 = vld [vmem:[%s1793 + $0x10] sm:$0xff]
        %v1797 = vld [vmem:[%s1793 + $0x18] sm:$0xff]
        %v1798 = vld [vmem:[%s1793 + $0x20] sm:$0xff]
        %v1799 = vld [vmem:[%s1793 + $0x28] sm:$0xff]
        %v1800 = vld [vmem:[%s1793 + $0x30] sm:$0xff]
        %v1801 = vld [vmem:[%s1793 + $0x38] sm:$0xff]
        %v1802 = vld [vmem:[#allocation11 + $0x23] sm:$0x1]
        %v1803 = vlaneseq
        %v1804 = vshrl.u32 %v1803, 7
        %v1805 = vsub.s32 0, %v1804
        %v1806 = vrot.slane %v1802, %v1805
        %v1808 = vsel %vm820, %v1791, 0
        %v1811 = vsel %vm820, %v1792, 0
        %1813 = vmatprep.subr.mxu0 0.0
        %1814 = vmatpush1.msra.mxu0 %v1794
        %1815 = vmatprep.subr.mxu0 0.0
        %1816 = vmatpush1.msra.mxu0 %v1795
        %1817 = vmatprep.subr.mxu0 0.0
        %1818 = vmatpush1.msra.mxu0 %v1796
        %1819 = vmatprep.subr.mxu0 0.0
        %1820 = vmatpush1.msra.mxu0 %v1797
        %1821 = vmatprep.subr.mxu0 0.0
        %1822 = vmatpush1.msra.mxu0 %v1798
        %1823 = vmatprep.subr.mxu0 0.0
        %1824 = vmatpush1.msra.mxu0 %v1799
        %1825 = vmatprep.subr.mxu0 0.0
        %1826 = vmatpush1.msra.mxu0 %v1800
        %1827 = vmatprep.subr.mxu0 0.0
        %1828 = vmatpush1.msra.mxu0 %v1801
        %1829 = vmatprep.subr.mxu0 0.0
        %1830 = vmatpush1.msra.mxu0 0.0
        %1831 = vmatprep.subr.mxu0 0.0
        %1832 = vmatpush1.msra.mxu0 0.0
        %1833 = vmatprep.subr.mxu0 0.0
        %1834 = vmatpush1.msra.mxu0 0.0
        %1835 = vmatprep.subr.mxu0 0.0
        %1836 = vmatpush1.msra.mxu0 0.0
        %1837 = vmatprep.subr.mxu0 0.0
        %1838 = vmatpush1.msra.mxu0 0.0
        %1839 = vmatprep.subr.mxu0 0.0
        %1840 = vmatpush1.msra.mxu0 0.0
        %1841 = vmatprep.subr.mxu0 0.0
        %1842 = vmatpush1.msra.mxu0 0.0
        %1843 = vmatprep.subr.mxu0 0.0
        %1844 = vmatpush1.msra.mxu0 0.0
        %1845 = vmatprep.subr.mxu0 0.0
        %1846 = vmatpush1.msra.mxu0 0.0
        %1847 = vmatprep.subr.mxu0 0.0
        %1848 = vmatpush1.msra.mxu0 0.0
        %1849 = vmatprep.subr.mxu0 0.0
        %1850 = vmatpush1.msra.mxu0 0.0
        %1851 = vmatprep.subr.mxu0 0.0
        %1852 = vmatpush1.msra.mxu0 0.0
        %1853 = vmatprep.subr.mxu0 0.0
        %1854 = vmatpush1.msra.mxu0 0.0
        %1855 = vmatprep.subr.mxu0 0.0
        %1856 = vmatpush1.msra.mxu0 0.0
        %1857 = vmatprep.subr.mxu0 0.0
        %1858 = vmatpush1.msra.mxu0 0.0
        %1859 = vmatprep.subr.mxu0 0.0
        %1860 = vmatpush1.msra.mxu0 0.0
        %1861 = vmatprep.subr.mxu0 0.0
        %1862 = vmatpush1.msra.mxu0 0.0
        %1863 = vmatprep.subr.mxu0 0.0
        %1864 = vmatpush1.msra.mxu0 0.0
        %1865 = vmatprep.subr.mxu0 0.0
        %1866 = vmatpush1.msra.mxu0 0.0
        %1867 = vmatprep.subr.mxu0 0.0
        %1868 = vmatpush1.msra.mxu0 0.0
        %1869 = vmatprep.subr.mxu0 0.0
        %1870 = vmatpush1.msra.mxu0 0.0
        %1871 = vmatprep.subr.mxu0 0.0
        %1872 = vmatpush1.msra.mxu0 0.0
        %1873 = vmatprep.subr.mxu0 0.0
        %1874 = vmatpush1.msra.mxu0 0.0
        %1875 = vmatprep.subr.mxu0 0.0
        %1876 = vmatpush1.msra.mxu0 0.0
        %1877 = vmatprep.mubr.f32.mxu0 0.0
        %1878 = vmatmul.mubr.f32.gmra.mrb[0].mxu0 %v1808
        %v1879 = vpop.f32.mrb[0].mxu0
        %v1880 = vadd.f32 %v1806, %v1879
        %v1881 = vpop.f32.mrb[0].mxu0
        %1882 = vmatprep.mubr.f32.mxu0 0.0
        %1883 = vmatmul.mubr.f32.gmra.mrb[0].mxu0 %v1811
        %v1884 = vpop.f32.mrb[0].mxu0
        %v1885 = vadd.f32 %v1806, %v1884
        %v1886 = vpop.f32.mrb[0].mxu0
        %1887 = vdwg.mxu0
        %v1888 = vld [vmem:[#allocation11 + $0x26] sm:$0x1]
        %v1889 = vld [vmem:[#allocation11 + $0x29] sm:$0x1]
        %v1890 = vsel %vm820, %v1880, 0.0
        %1891 = vadd.xlane.f32.xlu0 %v1890
        %v1892 = vpop.xlane.xlu0 %1891
        %v1893 = vsel %vm820, %v1885, 0.0
        %1894 = vadd.xlane.f32.xlu0 %v1893
        %v1895 = vpop.xlane.xlu0 %1894
        %v1896 = vmul.f32 %v1892, %v827
        %v1897 = vmul.f32 %v1895, %v827
        %v1898 = vsub.f32 %v1880, %v1896
        %v1899 = vsub.f32 %v1885, %v1897
        %v1900 = vmul.f32 %v1898, %v1898
        %v1901 = vmul.f32 %v1899, %v1899
        %v1902 = vsel %vm820, %v1900, 0.0
        %1903 = vadd.xlane.f32.xlu0 %v1902
        %v1904 = vpop.xlane.xlu0 %1903
        %v1905 = vsel %vm820, %v1901, 0.0
        %1906 = vadd.xlane.f32.xlu0 %v1905
        %v1907 = vpop.xlane.xlu0 %1906
        %v1908 = vmul.f32 %v1904, %v827
        %v1909 = vmul.f32 %v1907, %v827
        %v1910 = vadd.f32 %v1908, 1e-05
        %v1911 = vadd.f32 %v1909, 1e-05
        %v1912 = vrsqrt.pop %v1910
        %v1913 = vrsqrt.pop %v1911
        %v1914 = vmul.f32 %v1898, %v1912
        %v1915 = vmul.f32 %v1899, %v1913
        %v1916 = vlaneseq
        %v1917 = vshrl.u32 %v1916, 7
        %v1918 = vsub.s32 0, %v1917
        %v1919 = vrot.slane %v1888, %v1918
        %v1920 = vmul.f32 %v1914, %v1919
        %v1921 = vmul.f32 %v1915, %v1919
        %v1922 = vlaneseq
        %v1923 = vshrl.u32 %v1922, 7
        %v1924 = vsub.s32 0, %v1923
        %v1925 = vrot.slane %v1889, %v1924
        %v1926 = vadd.f32 %v1920, %v1925
        %v1927 = vadd.f32 %v1921, %v1925
        %v1928 = vld [vmem:[#allocation11 + $0x2c] sm:$0x1]
        %v1929 = vlaneseq
        %v1930 = vshrl.u32 %v1929, 7
        %v1931 = vsub.s32 0, %v1930
        %v1932 = vrot.slane %v1928, %v1931
        %v1933 = vadd.f32 %v1926, %v1932
        %v1934 = vadd.f32 %v1927, %v1932
        %1935 = vst.msk [vmem:[#allocation2 + $0x20] sm:$0xff] %vm820, %v1933
        %1936 = vst.msk [vmem:[#allocation2 + $0x28] sm:$0xff] %vm820, %v1934
        %v1937 = vld [vmem:[#allocation2] sm:$0xff]
        %v1938 = vld [vmem:[#allocation2 + $0x8] sm:$0xff]
        %v1939 = vld [vmem:[#allocation2 + $0x10] sm:$0xff]
        %v1940 = vld [vmem:[#allocation2 + $0x18] sm:$0xff]
        %v1941 = vld [vmem:[#allocation2 + $0x20] sm:$0xff]
        %v1942 = vld [vmem:[#allocation2 + $0x28] sm:$0xff]
        %v1943 = vpack.c.bf16 %v1938, %v1937
        %v1944 = vpack.c.bf16 %v1940, %v1939
        %v1945 = vpack.c.bf16 %v1942, %v1941
        %1946 = vst.msk [vmem:[#allocation3] sm:$0xff] %vm820, %v1943
        %1947 = vst.msk [vmem:[#allocation3 + $0x8] sm:$0xff] %vm820, %v1944
        %1948 = vst.msk [vmem:[#allocation3 + $0x10] sm:$0xff] %vm820, %v1945
        %v1949 = vld [vmem:[%s7] sm:$0xff]
        %v1950 = vld [vmem:[%s7 + $0x8] sm:$0xff]
        %v1951 = vld [vmem:[%s7 + $0x10] sm:$0xff]
        %v1952 = vld [vmem:[%s7 + $0x18] sm:$0xff]
        %v1953 = vld [vmem:[%s7 + $0x20] sm:$0xff]
        %v1954 = vld [vmem:[%s7 + $0x28] sm:$0xff]
        %v1955 = vld [vmem:[%s7 + $0x30] sm:$0xff]
        %v1956 = vld [vmem:[%s7 + $0x38] sm:$0xff]
        %v1957 = vld [vmem:[%s7 + $0x40] sm:$0xff]
        %v1958 = vld [vmem:[%s7 + $0x48] sm:$0xff]
        %v1959 = vld [vmem:[%s7 + $0x50] sm:$0xff]
        %v1960 = vld [vmem:[%s7 + $0x58] sm:$0xff]
        %v1961 = vld [vmem:[%s7 + $0x60] sm:$0xff]
        %v1962 = vld [vmem:[%s7 + $0x68] sm:$0xff]
        %v1963 = vld [vmem:[%s7 + $0x70] sm:$0xff]
        %v1964 = vld [vmem:[%s7 + $0x78] sm:$0xff]
        %v1965 = vld [vmem:[%s8] sm:$0xff]
        %v1966 = vld [vmem:[%s8 + $0x8] sm:$0xff]
        %v1967 = vld [vmem:[%s8 + $0x10] sm:$0xff]
        %v1968 = vld [vmem:[%s8 + $0x18] sm:$0xff]
        %v1969 = vld [vmem:[%s8 + $0x20] sm:$0xff]
        %v1970 = vld [vmem:[%s8 + $0x28] sm:$0xff]
        %v1971 = vld [vmem:[%s8 + $0x30] sm:$0xff]
        %v1972 = vld [vmem:[%s8 + $0x38] sm:$0xff]
        %v1973 = vld [vmem:[%s8 + $0x40] sm:$0xff]
        %v1974 = vld [vmem:[%s8 + $0x48] sm:$0xff]
        %v1975 = vld [vmem:[%s8 + $0x50] sm:$0xff]
        %v1976 = vld [vmem:[%s8 + $0x58] sm:$0xff]
        %v1977 = vld [vmem:[%s8 + $0x60] sm:$0xff]
        %v1978 = vld [vmem:[%s8 + $0x68] sm:$0xff]
        %v1979 = vld [vmem:[%s8 + $0x70] sm:$0xff]
        %v1980 = vld [vmem:[%s8 + $0x78] sm:$0xff]
        %1982 = vset.pattern.permute.xlu0 0
        %1983 = vperm.xlu0 %1982, %v1965
        %v1984 = vpop.permute.xlu0 %1983
        %1987 = vset.pattern.permute.xlu0 0
        %1988 = vperm.xlu0 %1987, %v1966
        %v1989 = vpop.permute.xlu0 %1988
        %1992 = vset.pattern.permute.xlu0 0
        %1993 = vperm.xlu0 %1992, %v1967
        %v1994 = vpop.permute.xlu0 %1993
        %1997 = vset.pattern.permute.xlu0 0
        %1998 = vperm.xlu0 %1997, %v1968
        %v1999 = vpop.permute.xlu0 %1998
        %2002 = vset.pattern.permute.xlu0 0
        %2003 = vperm.xlu0 %2002, %v1969
        %v2004 = vpop.permute.xlu0 %2003
        %2007 = vset.pattern.permute.xlu0 0
        %2008 = vperm.xlu0 %2007, %v1970
        %v2009 = vpop.permute.xlu0 %2008
        %2012 = vset.pattern.permute.xlu0 0
        %2013 = vperm.xlu0 %2012, %v1971
        %v2014 = vpop.permute.xlu0 %2013
        %2017 = vset.pattern.permute.xlu0 0
        %2018 = vperm.xlu0 %2017, %v1972
        %v2019 = vpop.permute.xlu0 %2018
        %2022 = vset.pattern.permute.xlu0 0
        %2023 = vperm.xlu0 %2022, %v1973
        %v2024 = vpop.permute.xlu0 %2023
        %2027 = vset.pattern.permute.xlu0 0
        %2028 = vperm.xlu0 %2027, %v1974
        %v2029 = vpop.permute.xlu0 %2028
        %2032 = vset.pattern.permute.xlu0 0
        %2033 = vperm.xlu0 %2032, %v1975
        %v2034 = vpop.permute.xlu0 %2033
        %2037 = vset.pattern.permute.xlu0 0
        %2038 = vperm.xlu0 %2037, %v1976
        %v2039 = vpop.permute.xlu0 %2038
        %2042 = vset.pattern.permute.xlu0 0
        %2043 = vperm.xlu0 %2042, %v1977
        %v2044 = vpop.permute.xlu0 %2043
        %2047 = vset.pattern.permute.xlu0 0
        %2048 = vperm.xlu0 %2047, %v1978
        %v2049 = vpop.permute.xlu0 %2048
        %2052 = vset.pattern.permute.xlu0 0
        %2053 = vperm.xlu0 %2052, %v1979
        %v2054 = vpop.permute.xlu0 %2053
        %2057 = vset.pattern.permute.xlu0 0
        %2058 = vperm.xlu0 %2057, %v1980
        %v2059 = vpop.permute.xlu0 %2058
        %v2062 = vsel %vm820, %v1949, 0
        %v2065 = vsel %vm820, %v1950, 0
        %v2068 = vsel %vm820, %v1951, 0
        %v2071 = vsel %vm820, %v1952, 0
        %v2074 = vsel %vm820, %v1953, 0
        %v2077 = vsel %vm820, %v1954, 0
        %v2080 = vsel %vm820, %v1955, 0
        %v2083 = vsel %vm820, %v1956, 0
        %v2086 = vsel %vm820, %v1957, 0
        %v2089 = vsel %vm820, %v1958, 0
        %v2092 = vsel %vm820, %v1959, 0
        %v2095 = vsel %vm820, %v1960, 0
        %v2098 = vsel %vm820, %v1961, 0
        %v2101 = vsel %vm820, %v1962, 0
        %v2104 = vsel %vm820, %v1963, 0
        %v2107 = vsel %vm820, %v1964, 0
        %v2110 = vsel %vm820, %v1937, 0
        %v2113 = vsel %vm820, %v1938, 0
        %v2116 = vsel %vm820, %v1939, 0
        %v2119 = vsel %vm820, %v1940, 0
        %v2122 = vsel %vm820, %v1941, 0
        %v2125 = vsel %vm820, %v1942, 0
        %2127 = vmatprep.subr.mxu0 0.0
        %2128 = vmatpush1.xpose.msra.mxu0 %v2110
        %2129 = vmatprep.subr.mxu0 0.0
        %2130 = vmatpush1.xpose.msra.mxu0 %v2113
        %2131 = vmatprep.subr.mxu0 0.0
        %2132 = vmatpush1.xpose.msra.mxu0 %v2116
        %2133 = vmatprep.subr.mxu0 0.0
        %2134 = vmatpush1.xpose.msra.mxu0 %v2119
        %2135 = vmatprep.subr.mxu0 0.0
        %2136 = vmatpush1.xpose.msra.mxu0 %v2122
        %2137 = vmatprep.subr.mxu0 0.0
        %2138 = vmatpush1.xpose.msra.mxu0 %v2125
        %2139 = vmatprep.subr.mxu0 0.0
        %2140 = vmatpush1.xpose.msra.mxu0 0.0
        %2141 = vmatprep.subr.mxu0 0.0
        %2142 = vmatpush1.xpose.msra.mxu0 0.0
        %2143 = vmatprep.subr.mxu0 0.0
        %2144 = vmatpush1.xpose.msra.mxu0 0.0
        %2145 = vmatprep.subr.mxu0 0.0
        %2146 = vmatpush1.xpose.msra.mxu0 0.0
        %2147 = vmatprep.subr.mxu0 0.0
        %2148 = vmatpush1.xpose.msra.mxu0 0.0
        %2149 = vmatprep.subr.mxu0 0.0
        %2150 = vmatpush1.xpose.msra.mxu0 0.0
        %2151 = vmatprep.subr.mxu0 0.0
        %2152 = vmatpush1.xpose.msra.mxu0 0.0
        %2153 = vmatprep.subr.mxu0 0.0
        %2154 = vmatpush1.xpose.msra.mxu0 0.0
        %2155 = vmatprep.subr.mxu0 0.0
        %2156 = vmatpush1.xpose.msra.mxu0 0.0
        %2157 = vmatprep.subr.mxu0 0.0
        %2158 = vmatpush1.xpose.msra.mxu0 0.0
        %2159 = vmatprep.subr.mxu0 0.0
        %2160 = vmatpush1.xpose.msra.mxu0 0.0
        %2161 = vmatprep.subr.mxu0 0.0
        %2162 = vmatpush1.xpose.msra.mxu0 0.0
        %2163 = vmatprep.subr.mxu0 0.0
        %2164 = vmatpush1.xpose.msra.mxu0 0.0
        %2165 = vmatprep.subr.mxu0 0.0
        %2166 = vmatpush1.xpose.msra.mxu0 0.0
        %2167 = vmatprep.subr.mxu0 0.0
        %2168 = vmatpush1.xpose.msra.mxu0 0.0
        %2169 = vmatprep.subr.mxu0 0.0
        %2170 = vmatpush1.xpose.msra.mxu0 0.0
        %2171 = vmatprep.subr.mxu0 0.0
        %2172 = vmatpush1.xpose.msra.mxu0 0.0
        %2173 = vmatprep.subr.mxu0 0.0
        %2174 = vmatpush1.xpose.msra.mxu0 0.0
        %2175 = vmatprep.subr.mxu0 0.0
        %2176 = vmatpush1.xpose.msra.mxu0 0.0
        %2177 = vmatprep.subr.mxu0 0.0
        %2178 = vmatpush1.xpose.msra.mxu0 0.0
        %2179 = vmatprep.subr.mxu0 0.0
        %2180 = vmatpush1.xpose.msra.mxu0 0.0
        %2181 = vmatprep.subr.mxu0 0.0
        %2182 = vmatpush1.xpose.msra.mxu0 0.0
        %2183 = vmatprep.subr.mxu0 0.0
        %2184 = vmatpush1.xpose.msra.mxu0 0.0
        %2185 = vmatprep.subr.mxu0 0.0
        %2186 = vmatpush1.xpose.msra.mxu0 0.0
        %2187 = vmatprep.subr.mxu0 0.0
        %2188 = vmatpush1.xpose.msra.mxu0 0.0
        %2189 = vmatprep.subr.mxu0 0.0
        %2190 = vmatpush1.xpose.msra.mxu0 0.0
        %2191 = vmatprep.mubr.f32.mxu0 0.0
        %2192 = vmatmul.mubr.f32.gmra.mrb[0].mxu0 %v2062
        %v2193 = vpop.f32.mrb[0].mxu0
        %v2194 = vadd.f32 %v1984, %v2193
        %v2195 = vpop.f32.mrb[0].mxu0
        %2196 = vmatprep.mubr.f32.mxu0 0.0
        %2197 = vmatmul.mubr.f32.gmra.mrb[0].mxu0 %v2065
        %v2198 = vpop.f32.mrb[0].mxu0
        %v2199 = vadd.f32 %v1989, %v2198
        %v2200 = vpop.f32.mrb[0].mxu0
        %2201 = vmatprep.mubr.f32.mxu0 0.0
        %2202 = vmatmul.mubr.f32.gmra.mrb[0].mxu0 %v2068
        %v2203 = vpop.f32.mrb[0].mxu0
        %v2204 = vadd.f32 %v1994, %v2203
        %v2205 = vpop.f32.mrb[0].mxu0
        %2206 = vmatprep.mubr.f32.mxu0 0.0
        %2207 = vmatmul.mubr.f32.gmra.mrb[0].mxu0 %v2071
        %v2208 = vpop.f32.mrb[0].mxu0
        %v2209 = vadd.f32 %v1999, %v2208
        %v2210 = vpop.f32.mrb[0].mxu0
        %2211 = vmatprep.mubr.f32.mxu0 0.0
        %2212 = vmatmul.mubr.f32.gmra.mrb[0].mxu0 %v2074
        %v2213 = vpop.f32.mrb[0].mxu0
        %v2214 = vadd.f32 %v2004, %v2213
        %v2215 = vpop.f32.mrb[0].mxu0
        %2216 = vmatprep.mubr.f32.mxu0 0.0
        %2217 = vmatmul.mubr.f32.gmra.mrb[0].mxu0 %v2077
        %v2218 = vpop.f32.mrb[0].mxu0
        %v2219 = vadd.f32 %v2009, %v2218
        %v2220 = vpop.f32.mrb[0].mxu0
        %2221 = vmatprep.mubr.f32.mxu0 0.0
        %2222 = vmatmul.mubr.f32.gmra.mrb[0].mxu0 %v2080
        %v2223 = vpop.f32.mrb[0].mxu0
        %v2224 = vadd.f32 %v2014, %v2223
        %v2225 = vpop.f32.mrb[0].mxu0
        %2226 = vmatprep.mubr.f32.mxu0 0.0
        %2227 = vmatmul.mubr.f32.gmra.mrb[0].mxu0 %v2083
        %v2228 = vpop.f32.mrb[0].mxu0
        %v2229 = vadd.f32 %v2019, %v2228
        %v2230 = vpop.f32.mrb[0].mxu0
        %2231 = vmatprep.mubr.f32.mxu0 0.0
        %2232 = vmatmul.mubr.f32.gmra.mrb[0].mxu0 %v2086
        %v2233 = vpop.f32.mrb[0].mxu0
        %v2234 = vadd.f32 %v2024, %v2233
        %v2235 = vpop.f32.mrb[0].mxu0
        %2236 = vmatprep.mubr.f32.mxu0 0.0
        %2237 = vmatmul.mubr.f32.gmra.mrb[0].mxu0 %v2089
        %v2238 = vpop.f32.mrb[0].mxu0
        %v2239 = vadd.f32 %v2029, %v2238
        %v2240 = vpop.f32.mrb[0].mxu0
        %2241 = vmatprep.mubr.f32.mxu0 0.0
        %2242 = vmatmul.mubr.f32.gmra.mrb[0].mxu0 %v2092
        %v2243 = vpop.f32.mrb[0].mxu0
        %v2244 = vadd.f32 %v2034, %v2243
        %v2245 = vpop.f32.mrb[0].mxu0
        %2246 = vmatprep.mubr.f32.mxu0 0.0
        %2247 = vmatmul.mubr.f32.gmra.mrb[0].mxu0 %v2095
        %v2248 = vpop.f32.mrb[0].mxu0
        %v2249 = vadd.f32 %v2039, %v2248
        %v2250 = vpop.f32.mrb[0].mxu0
        %2251 = vmatprep.mubr.f32.mxu0 0.0
        %2252 = vmatmul.mubr.f32.gmra.mrb[0].mxu0 %v2098
        %v2253 = vpop.f32.mrb[0].mxu0
        %v2254 = vadd.f32 %v2044, %v2253
        %v2255 = vpop.f32.mrb[0].mxu0
        %2256 = vmatprep.mubr.f32.mxu0 0.0
        %2257 = vmatmul.mubr.f32.gmra.mrb[0].mxu0 %v2101
        %v2258 = vpop.f32.mrb[0].mxu0
        %v2259 = vadd.f32 %v2049, %v2258
        %v2260 = vpop.f32.mrb[0].mxu0
        %2261 = vmatprep.mubr.f32.mxu0 0.0
        %2262 = vmatmul.mubr.f32.gmra.mrb[0].mxu0 %v2104
        %v2263 = vpop.f32.mrb[0].mxu0
        %v2264 = vadd.f32 %v2054, %v2263
        %v2265 = vpop.f32.mrb[0].mxu0
        %2266 = vmatprep.mubr.f32.mxu0 0.0
        %2267 = vmatmul.mubr.f32.gmra.mrb[0].mxu0 %v2107
        %v2268 = vpop.f32.mrb[0].mxu0
        %v2269 = vadd.f32 %v2059, %v2268
        %v2270 = vpop.f32.mrb[0].mxu0
        %2271 = vdwg.mxu0
        %vm2272 = vcmask 392192
        %2273 = vst.msk [vmem:[#allocation4] sm:$0xff] %vm2272, %v2194
        %2274 = vst.msk [vmem:[#allocation4 + $0x8] sm:$0xff] %vm2272, %v2199
        %2275 = vst.msk [vmem:[#allocation4 + $0x10] sm:$0xff] %vm2272, %v2204
        %2276 = vst.msk [vmem:[#allocation4 + $0x18] sm:$0xff] %vm2272, %v2209
        %2277 = vst.msk [vmem:[#allocation4 + $0x20] sm:$0xff] %vm2272, %v2214
        %2278 = vst.msk [vmem:[#allocation4 + $0x28] sm:$0xff] %vm2272, %v2219
        %2279 = vst.msk [vmem:[#allocation4 + $0x30] sm:$0xff] %vm2272, %v2224
        %2280 = vst.msk [vmem:[#allocation4 + $0x38] sm:$0xff] %vm2272, %v2229
        %2281 = vst.msk [vmem:[#allocation4 + $0x40] sm:$0xff] %vm2272, %v2234
        %2282 = vst.msk [vmem:[#allocation4 + $0x48] sm:$0xff] %vm2272, %v2239
        %2283 = vst.msk [vmem:[#allocation4 + $0x50] sm:$0xff] %vm2272, %v2244
        %2284 = vst.msk [vmem:[#allocation4 + $0x58] sm:$0xff] %vm2272, %v2249
        %2285 = vst.msk [vmem:[#allocation4 + $0x60] sm:$0xff] %vm2272, %v2254
        %2286 = vst.msk [vmem:[#allocation4 + $0x68] sm:$0xff] %vm2272, %v2259
        %2287 = vst.msk [vmem:[#allocation4 + $0x70] sm:$0xff] %vm2272, %v2264
        %2288 = vst.msk [vmem:[#allocation4 + $0x78] sm:$0xff] %vm2272, %v2269
        %2289 = vst.msk [vmem:[#allocation5] sm:$0xff] %vm820, 0.0
        %2290 = vst.msk [vmem:[#allocation5 + $0x8] sm:$0xff] %vm820, 0.0
        %2291 = vst.msk [vmem:[#allocation5 + $0x10] sm:$0xff] %vm820, 0.0
        %2292 = vst.msk [vmem:[#allocation5 + $0x18] sm:$0xff] %vm820, 0.0
        %2293 = vst.msk [vmem:[#allocation5 + $0x20] sm:$0xff] %vm820, 0.0
        %2294 = vst.msk [vmem:[#allocation5 + $0x28] sm:$0xff] %vm820, 0.0
        loop: start=0, step=1, limit=8
        $region85: #{tpu_custom_call.1} parent=59 // loop_pre_header
          _
        $region86: #{tpu_custom_call.1} parent=59 // loop_header
          %s2296 = sphi 0, %s2300
          %p2297 = scmp.ge.s32.totalorder %s2296, 8
        $region87: #{tpu_custom_call.1} parent=59 // loop_header_branch
          %2299 = sbr.rel (%p2297) target = $region91
        $region88: #{tpu_custom_call.1} parent=59 // loop_body
          %s2301 = smul.u32 %s2296, 8
          %s2302 = sadd.s32 %s2301, 64
          %s2303 = scalar_lea.vmem [#allocation4], %s2301
          %v2304 = vld [vmem:[%s2303] sm:$0xff]
          %2305 = vxpose.xlu0.b32.start [1/16] %v2304, 128
          %2306 = vxpose.xlu0.b32.cont [2/16] 0.0, 128
          %2307 = vxpose.xlu0.b32.cont [3/16] 0.0, 128
          %2308 = vxpose.xlu0.b32.cont [4/16] 0.0, 128
          %2309 = vxpose.xlu0.b32.cont [5/16] 0.0, 128
          %2310 = vxpose.xlu0.b32.cont [6/16] 0.0, 128
          %2311 = vxpose.xlu0.b32.cont [7/16] 0.0, 128
          %2312 = vxpose.xlu0.b32.cont [8/16] 0.0, 128
          %2313 = vxpose.xlu0.b32.cont [9/16] 0.0, 128
          %2314 = vxpose.xlu0.b32.cont [10/16] 0.0, 128
          %2315 = vxpose.xlu0.b32.cont [11/16] 0.0, 128
          %2316 = vxpose.xlu0.b32.cont [12/16] 0.0, 128
          %2317 = vxpose.xlu0.b32.cont [13/16] 0.0, 128
          %2318 = vxpose.xlu0.b32.cont [14/16] 0.0, 128
          %2319 = vxpose.xlu0.b32.cont [15/16] 0.0, 128
          %2320 = vxpose.xlu0.b32.end [16/16] 0.0, 128
          %v2321 = vpop.trf.xlu0
          %v2322 = vpop.trf.xlu0
          %v2323 = vpop.trf.xlu0
          %v2324 = vpop.trf.xlu0
          %v2325 = vpop.trf.xlu0
          %v2326 = vpop.trf.xlu0
          %v2327 = vpop.trf.xlu0
          %v2328 = vpop.trf.xlu0
          %v2329 = vpop.trf.xlu0
          %v2330 = vpop.trf.xlu0
          %v2331 = vpop.trf.xlu0
          %v2332 = vpop.trf.xlu0
          %v2333 = vpop.trf.xlu0
          %v2334 = vpop.trf.xlu0
          %v2335 = vpop.trf.xlu0
          %v2336 = vpop.trf.xlu0
          %v2337 = vpack.c.bf16 %v2322, %v2321
          %v2338 = vpack.c.bf16 %v2324, %v2323
          %v2339 = vpack.c.bf16 %v2326, %v2325
          %s2340 = scalar_lea.vmem [#allocation4], %s2302
          %v2341 = vld [vmem:[%s2340] sm:$0xff]
          %v2342 = vpack.c.bf16 %v2341, %v2341
          %vm2343 = vcmask 64512
          %v2345 = vsel %vm2343, %v2337, 0
          %v2348 = vsel %vm2343, %v2338, 0
          %v2351 = vsel %vm2343, %v2339, 0
          %v2354 = vsel %vm587, %v2342, 0
          %2356 = vmatprep.subr.bf16.mxu0 0
          %2357 = vmatpush1.bf16.msra.mxu0 %v2354
          %2358 = vmatprep.subr.bf16.mxu0 0
          %2359 = vmatpush1.bf16.msra.mxu0 0
          %2360 = vmatprep.subr.bf16.mxu0 0
          %2361 = vmatpush1.bf16.msra.mxu0 0
          %2362 = vmatprep.subr.bf16.mxu0 0
          %2363 = vmatpush1.bf16.msra.mxu0 0
          %2364 = vmatprep.subr.bf16.mxu0 0
          %2365 = vmatpush1.bf16.msra.mxu0 0
          %2366 = vmatprep.subr.bf16.mxu0 0
          %2367 = vmatpush1.bf16.msra.mxu0 0
          %2368 = vmatprep.subr.bf16.mxu0 0
          %2369 = vmatpush1.bf16.msra.mxu0 0
          %2370 = vmatprep.subr.bf16.mxu0 0
          %2371 = vmatpush1.bf16.msra.mxu0 0
          %2372 = vmatprep.subr.bf16.mxu0 0
          %2373 = vmatpush1.bf16.msra.mxu0 0
          %2374 = vmatprep.subr.bf16.mxu0 0
          %2375 = vmatpush1.bf16.msra.mxu0 0
          %2376 = vmatprep.subr.bf16.mxu0 0
          %2377 = vmatpush1.bf16.msra.mxu0 0
          %2378 = vmatprep.subr.bf16.mxu0 0
          %2379 = vmatpush1.bf16.msra.mxu0 0
          %2380 = vmatprep.subr.bf16.mxu0 0
          %2381 = vmatpush1.bf16.msra.mxu0 0
          %2382 = vmatprep.subr.bf16.mxu0 0
          %2383 = vmatpush1.bf16.msra.mxu0 0
          %2384 = vmatprep.subr.bf16.mxu0 0
          %2385 = vmatpush1.bf16.msra.mxu0 0
          %2386 = vmatprep.subr.bf16.mxu0 0
          %2387 = vmatpush1.bf16.msra.mxu0 0
          %2388 = vmatprep.mubr.bf16.mxu0 0
          %2389 = vmatmul.mubr.bf16.gmra.mrb[0].mxu0 %v2345
          %v2390 = vpop.f32.mrb[0].mxu0
          %v2391 = vadd.f32 0.0, %v2390
          %v2392 = vpop.f32.mrb[0].mxu0
          %v2393 = vpop.f32.mrb[0].mxu0
          %v2394 = vadd.f32 0.0, %v2393
          %v2395 = vpop.f32.mrb[0].mxu0
          %2396 = vmatprep.mubr.bf16.mxu0 0
          %2397 = vmatmul.mubr.bf16.gmra.mrb[0].mxu0 %v2348
          %v2398 = vpop.f32.mrb[0].mxu0
          %v2399 = vadd.f32 0.0, %v2398
          %v2400 = vpop.f32.mrb[0].mxu0
          %v2401 = vpop.f32.mrb[0].mxu0
          %v2402 = vadd.f32 0.0, %v2401
          %v2403 = vpop.f32.mrb[0].mxu0
          %2404 = vmatprep.mubr.bf16.mxu0 0
          %2405 = vmatmul.mubr.bf16.gmra.mrb[0].mxu0 %v2351
          %v2406 = vpop.f32.mrb[0].mxu0
          %v2407 = vadd.f32 0.0, %v2406
          %v2408 = vpop.f32.mrb[0].mxu0
          %v2409 = vpop.f32.mrb[0].mxu0
          %v2410 = vadd.f32 0.0, %v2409
          %v2411 = vpop.f32.mrb[0].mxu0
          %2412 = vdwg.mxu0
          %v2413 = vsel %vm2272, %v2391, -inf
          %2414 = vmax.xlane.f32.xlu0 %v2413
          %v2415 = vpop.xlane.xlu0 %2414
          %v2416 = vsel %vm2272, %v2394, -inf
          %2417 = vmax.xlane.f32.xlu0 %v2416
          %v2418 = vpop.xlane.xlu0 %2417
          %v2419 = vsel %vm2272, %v2399, -inf
          %2420 = vmax.xlane.f32.xlu0 %v2419
          %v2421 = vpop.xlane.xlu0 %2420
          %v2422 = vsel %vm2272, %v2402, -inf
          %2423 = vmax.xlane.f32.xlu0 %v2422
          %v2424 = vpop.xlane.xlu0 %2423
          %v2425 = vsel %vm2272, %v2407, -inf
          %2426 = vmax.xlane.f32.xlu0 %v2425
          %v2427 = vpop.xlane.xlu0 %2426
          %v2428 = vsel %vm2272, %v2410, -inf
          %2429 = vmax.xlane.f32.xlu0 %v2428
          %v2430 = vpop.xlane.xlu0 %2429
          %v2431 = vsub.f32 %v2391, %v2415
          %v2432 = vsub.f32 %v2394, %v2418
          %v2433 = vsub.f32 %v2399, %v2421
          %v2434 = vsub.f32 %v2402, %v2424
          %v2435 = vsub.f32 %v2407, %v2427
          %v2436 = vsub.f32 %v2410, %v2430
          %v2437 = vmul.f32 %v2431, 1.442695
          %v2438 = vpow.pop %v2437
          %v2439 = vmul.f32 %v2432, 1.442695
          %v2440 = vpow.pop %v2439
          %v2441 = vmul.f32 %v2433, 1.442695
          %v2442 = vpow.pop %v2441
          %v2443 = vmul.f32 %v2434, 1.442695
          %v2444 = vpow.pop %v2443
          %v2445 = vmul.f32 %v2435, 1.442695
          %v2446 = vpow.pop %v2445
          %v2447 = vmul.f32 %v2436, 1.442695
          %v2448 = vpow.pop %v2447
          %v2449 = vsel %vm2272, %v2438, 0.0
          %2450 = vadd.xlane.f32.xlu0 %v2449
          %v2451 = vpop.xlane.xlu0 %2450
          %v2452 = vsel %vm2272, %v2440, 0.0
          %2453 = vadd.xlane.f32.xlu0 %v2452
          %v2454 = vpop.xlane.xlu0 %2453
          %v2455 = vsel %vm2272, %v2442, 0.0
          %2456 = vadd.xlane.f32.xlu0 %v2455
          %v2457 = vpop.xlane.xlu0 %2456
          %v2458 = vsel %vm2272, %v2444, 0.0
          %2459 = vadd.xlane.f32.xlu0 %v2458
          %v2460 = vpop.xlane.xlu0 %2459
          %v2461 = vsel %vm2272, %v2446, 0.0
          %2462 = vadd.xlane.f32.xlu0 %v2461
          %v2463 = vpop.xlane.xlu0 %2462
          %v2464 = vsel %vm2272, %v2448, 0.0
          %2465 = vadd.xlane.f32.xlu0 %v2464
          %v2466 = vpop.xlane.xlu0 %2465
          %v2467 = vld [vmem:[#allocation3] sm:$0xff]
          %v2468 = vld [vmem:[#allocation3 + $0x8] sm:$0xff]
          %v2469 = vld [vmem:[#allocation3 + $0x10] sm:$0xff]
          %s2470 = smul.addr %s2301, 4
          %s2471 = scalar_lea.vmem %s9, %s2470
          %v2472 = vld [vmem:[%s2471] sm:$0xf]
          %v2473 = vld [vmem:[%s2471 + $0x4] sm:$0xf]
          %v2474 = vld [vmem:[%s2471 + $0x8] sm:$0xf]
          %v2475 = vld [vmem:[%s2471 + $0xc] sm:$0xf]
          %v2476 = vld [vmem:[%s2471 + $0x10] sm:$0xf]
          %v2477 = vld [vmem:[%s2471 + $0x14] sm:$0xf]
          %v2478 = vld [vmem:[%s2471 + $0x18] sm:$0xf]
          %v2479 = vld [vmem:[%s2471 + $0x1c] sm:$0xf]
          %v2488 = vunpack.c.l.b16 %v2472
          %v2489 = vunpack.c.l.b16 %v2473
          %v2490 = vunpack.c.l.b16 %v2474
          %v2491 = vunpack.c.l.b16 %v2475
          %v2492 = vunpack.c.l.b16 %v2476
          %v2493 = vunpack.c.l.b16 %v2477
          %v2494 = vunpack.c.l.b16 %v2478
          %v2495 = vunpack.c.l.b16 %v2479
          %v2496 = vpack.c.b16 %v2489, %v2488
          %v2497 = vpack.c.b16 %v2491, %v2490
          %v2498 = vpack.c.b16 %v2493, %v2492
          %v2499 = vpack.c.b16 %v2495, %v2494
          %v2505 = vsel %vm820, %v2467, 0
          %v2508 = vsel %vm820, %v2468, 0
          %v2511 = vsel %vm820, %v2469, 0
          %2513 = vmatprep.subr.bf16.mxu0 0
          %2514 = vmatpush1.bf16.msra.mxu0 %v2496
          %2515 = vmatprep.subr.bf16.mxu0 0
          %2516 = vmatpush1.bf16.msra.mxu0 %v2497
          %2517 = vmatprep.subr.bf16.mxu0 0
          %2518 = vmatpush1.bf16.msra.mxu0 %v2498
          %2519 = vmatprep.subr.bf16.mxu0 0
          %2520 = vmatpush1.bf16.msra.mxu0 %v2499
          %2521 = vmatprep.subr.bf16.mxu0 0
          %2522 = vmatpush1.bf16.msra.mxu0 0
          %2523 = vmatprep.subr.bf16.mxu0 0
          %2524 = vmatpush1.bf16.msra.mxu0 0
          %2525 = vmatprep.subr.bf16.mxu0 0
          %2526 = vmatpush1.bf16.msra.mxu0 0
          %2527 = vmatprep.subr.bf16.mxu0 0
          %2528 = vmatpush1.bf16.msra.mxu0 0
          %2529 = vmatprep.subr.bf16.mxu0 0
          %2530 = vmatpush1.bf16.msra.mxu0 0
          %2531 = vmatprep.subr.bf16.mxu0 0
          %2532 = vmatpush1.bf16.msra.mxu0 0
          %2533 = vmatprep.subr.bf16.mxu0 0
          %2534 = vmatpush1.bf16.msra.mxu0 0
          %2535 = vmatprep.subr.bf16.mxu0 0
          %2536 = vmatpush1.bf16.msra.mxu0 0
          %2537 = vmatprep.subr.bf16.mxu0 0
          %2538 = vmatpush1.bf16.msra.mxu0 0
          %2539 = vmatprep.subr.bf16.mxu0 0
          %2540 = vmatpush1.bf16.msra.mxu0 0
          %2541 = vmatprep.subr.bf16.mxu0 0
          %2542 = vmatpush1.bf16.msra.mxu0 0
          %2543 = vmatprep.subr.bf16.mxu0 0
          %2544 = vmatpush1.bf16.msra.mxu0 0
          %2545 = vmatprep.mubr.bf16.mxu0 0
          %2546 = vmatmul.mubr.bf16.gmra.mrb[0].mxu0 %v2505
          %v2547 = vpop.f32.mrb[0].mxu0
          %v2548 = vadd.f32 0.0, %v2547
          %v2549 = vpop.f32.mrb[0].mxu0
          %v2550 = vpop.f32.mrb[0].mxu0
          %v2551 = vadd.f32 0.0, %v2550
          %v2552 = vpop.f32.mrb[0].mxu0
          %2553 = vmatprep.mubr.bf16.mxu0 0
          %2554 = vmatmul.mubr.bf16.gmra.mrb[0].mxu0 %v2508
          %v2555 = vpop.f32.mrb[0].mxu0
          %v2556 = vadd.f32 0.0, %v2555
          %v2557 = vpop.f32.mrb[0].mxu0
          %v2558 = vpop.f32.mrb[0].mxu0
          %v2559 = vadd.f32 0.0, %v2558
          %v2560 = vpop.f32.mrb[0].mxu0
          %2561 = vmatprep.mubr.bf16.mxu0 0
          %2562 = vmatmul.mubr.bf16.gmra.mrb[0].mxu0 %v2511
          %v2563 = vpop.f32.mrb[0].mxu0
          %v2564 = vadd.f32 0.0, %v2563
          %v2565 = vpop.f32.mrb[0].mxu0
          %v2566 = vpop.f32.mrb[0].mxu0
          %v2567 = vadd.f32 0.0, %v2566
          %v2568 = vpop.f32.mrb[0].mxu0
          %2569 = vdwg.mxu0
          %v2570 = vpack.c.bf16 %v2440, %v2438
          %v2571 = vpack.c.bf16 %v2444, %v2442
          %v2572 = vpack.c.bf16 %v2448, %v2446
          %v2573 = vpack.c.bf16 %v2551, %v2548
          %v2574 = vpack.c.bf16 %v2559, %v2556
          %v2575 = vpack.c.bf16 %v2567, %v2564
          %v2577 = vsel %vm2272, %v2570, 0
          %v2580 = vsel %vm2272, %v2571, 0
          %v2583 = vsel %vm2272, %v2572, 0
          %2585 = vmatprep.subr.bf16.mxu0 0
          %2586 = vmatpush1.bf16.msra.mxu0 %v2573
          %2587 = vmatprep.subr.bf16.mxu0 0
          %2588 = vmatpush1.bf16.msra.mxu0 %v2574
          %2589 = vmatprep.subr.bf16.mxu0 0
          %2590 = vmatpush1.bf16.msra.mxu0 %v2575
          %2591 = vmatprep.subr.bf16.mxu0 0
          %2592 = vmatpush1.bf16.msra.mxu0 0
          %2593 = vmatprep.subr.bf16.mxu0 0
          %2594 = vmatpush1.bf16.msra.mxu0 0
          %2595 = vmatprep.subr.bf16.mxu0 0
          %2596 = vmatpush1.bf16.msra.mxu0 0
          %2597 = vmatprep.subr.bf16.mxu0 0
          %2598 = vmatpush1.bf16.msra.mxu0 0
          %2599 = vmatprep.subr.bf16.mxu0 0
          %2600 = vmatpush1.bf16.msra.mxu0 0
          %2601 = vmatprep.subr.bf16.mxu0 0
          %2602 = vmatpush1.bf16.msra.mxu0 0
          %2603 = vmatprep.subr.bf16.mxu0 0
          %2604 = vmatpush1.bf16.msra.mxu0 0
          %2605 = vmatprep.subr.bf16.mxu0 0
          %2606 = vmatpush1.bf16.msra.mxu0 0
          %2607 = vmatprep.subr.bf16.mxu0 0
          %2608 = vmatpush1.bf16.msra.mxu0 0
          %2609 = vmatprep.subr.bf16.mxu0 0
          %2610 = vmatpush1.bf16.msra.mxu0 0
          %2611 = vmatprep.subr.bf16.mxu0 0
          %2612 = vmatpush1.bf16.msra.mxu0 0
          %2613 = vmatprep.subr.bf16.mxu0 0
          %2614 = vmatpush1.bf16.msra.mxu0 0
          %2615 = vmatprep.subr.bf16.mxu0 0
          %2616 = vmatpush1.bf16.msra.mxu0 0
          %2617 = vmatprep.mubr.bf16.mxu0 0
          %2618 = vmatmul.mubr.bf16.gmra.mrb[0].mxu0 %v2577
          %v2619 = vpop.f32.mrb[0].mxu0
          %v2620 = vadd.f32 0.0, %v2619
          %v2621 = vpop.f32.mrb[0].mxu0
          %v2622 = vpop.f32.mrb[0].mxu0
          %v2623 = vadd.f32 0.0, %v2622
          %v2624 = vpop.f32.mrb[0].mxu0
          %2625 = vmatprep.mubr.bf16.mxu0 0
          %2626 = vmatmul.mubr.bf16.gmra.mrb[0].mxu0 %v2580
          %v2627 = vpop.f32.mrb[0].mxu0
          %v2628 = vadd.f32 0.0, %v2627
          %v2629 = vpop.f32.mrb[0].mxu0
          %v2630 = vpop.f32.mrb[0].mxu0
          %v2631 = vadd.f32 0.0, %v2630
          %v2632 = vpop.f32.mrb[0].mxu0
          %2633 = vmatprep.mubr.bf16.mxu0 0
          %2634 = vmatmul.mubr.bf16.gmra.mrb[0].mxu0 %v2583
          %v2635 = vpop.f32.mrb[0].mxu0
          %v2636 = vadd.f32 0.0, %v2635
          %v2637 = vpop.f32.mrb[0].mxu0
          %v2638 = vpop.f32.mrb[0].mxu0
          %v2639 = vadd.f32 0.0, %v2638
          %v2640 = vpop.f32.mrb[0].mxu0
          %2641 = vdwg.mxu0
          %v2642 = vld [vmem:[#allocation5] sm:$0xff]
          %v2643 = vld [vmem:[#allocation5 + $0x8] sm:$0xff]
          %v2644 = vld [vmem:[#allocation5 + $0x10] sm:$0xff]
          %v2645 = vld [vmem:[#allocation5 + $0x18] sm:$0xff]
          %v2646 = vld [vmem:[#allocation5 + $0x20] sm:$0xff]
          %v2647 = vld [vmem:[#allocation5 + $0x28] sm:$0xff]
          %v2648 = vrcp.pop %v2451
          %v2649 = vrcp.pop %v2454
          %v2650 = vrcp.pop %v2457
          %v2651 = vrcp.pop %v2460
          %v2652 = vrcp.pop %v2463
          %v2653 = vrcp.pop %v2466
          %v2654 = vmul.f32 %v2620, %v2648
          %v2655 = vmul.f32 %v2623, %v2649
          %v2656 = vmul.f32 %v2628, %v2650
          %v2657 = vmul.f32 %v2631, %v2651
          %v2658 = vmul.f32 %v2636, %v2652
          %v2659 = vmul.f32 %v2639, %v2653
          %v2660 = vadd.f32 %v2642, %v2654
          %v2661 = vadd.f32 %v2643, %v2655
          %v2662 = vadd.f32 %v2644, %v2656
          %v2663 = vadd.f32 %v2645, %v2657
          %v2664 = vadd.f32 %v2646, %v2658
          %v2665 = vadd.f32 %v2647, %v2659
          %2666 = vst.msk [vmem:[#allocation5] sm:$0xff] %vm820, %v2660
          %2667 = vst.msk [vmem:[#allocation5 + $0x8] sm:$0xff] %vm820, %v2661
          %2668 = vst.msk [vmem:[#allocation5 + $0x10] sm:$0xff] %vm820, %v2662
          %2669 = vst.msk [vmem:[#allocation5 + $0x18] sm:$0xff] %vm820, %v2663
          %2670 = vst.msk [vmem:[#allocation5 + $0x20] sm:$0xff] %vm820, %v2664
          %2671 = vst.msk [vmem:[#allocation5 + $0x28] sm:$0xff] %vm820, %v2665
        $region89: #{tpu_custom_call.1} parent=59 // loop_footer
          %s2300 = sadd.s32 1, %s2296
        $region90: #{tpu_custom_call.1} parent=59 // loop_footer_branch
          %2295 = sbr.rel target = $region86
        $region91: #{tpu_custom_call.1} parent=59 // loop_exit
          _
        %v2672 = vld [vmem:[#allocation5] sm:$0xff]
        %v2673 = vld [vmem:[#allocation5 + $0x8] sm:$0xff]
        %v2674 = vld [vmem:[#allocation5 + $0x10] sm:$0xff]
        %v2675 = vld [vmem:[#allocation5 + $0x18] sm:$0xff]
        %v2676 = vld [vmem:[#allocation5 + $0x20] sm:$0xff]
        %v2677 = vld [vmem:[#allocation5 + $0x28] sm:$0xff]
        %v2678 = vld [vmem:[#allocation11 + $0x30] sm:$0x1]
        %v2679 = vlaneseq
        %v2680 = vshrl.u32 %v2679, 7
        %v2681 = vsub.s32 0, %v2680
        %v2682 = vrot.slane %v2678, %v2681
        %v2683 = vadd.f32 %v2672, %v2682
        %v2684 = vadd.f32 %v2673, %v2682
        %v2685 = vadd.f32 %v2674, %v2682
        %v2686 = vadd.f32 %v2675, %v2682
        %v2687 = vadd.f32 %v2676, %v2682
        %v2688 = vadd.f32 %v2677, %v2682
        %v2689 = vld [vmem:[#allocation2] sm:$0xff]
        %v2690 = vld [vmem:[#allocation2 + $0x8] sm:$0xff]
        %v2691 = vld [vmem:[#allocation2 + $0x10] sm:$0xff]
        %v2692 = vld [vmem:[#allocation2 + $0x18] sm:$0xff]
        %v2693 = vld [vmem:[#allocation2 + $0x20] sm:$0xff]
        %v2694 = vld [vmem:[#allocation2 + $0x28] sm:$0xff]
        %v2695 = vadd.f32 %v2683, %v2689
        %v2696 = vadd.f32 %v2684, %v2690
        %v2697 = vadd.f32 %v2685, %v2691
        %v2698 = vadd.f32 %v2686, %v2692
        %v2699 = vadd.f32 %v2687, %v2693
        %v2700 = vadd.f32 %v2688, %v2694
        %v2701 = vld [vmem:[#allocation11 + $0x31] sm:$0x1]
        %v2702 = vld [vmem:[#allocation11 + $0x32] sm:$0x1]
        %v2703 = vsel %vm820, %v2695, 0.0
        %2704 = vadd.xlane.f32.xlu0 %v2703
        %v2705 = vpop.xlane.xlu0 %2704
        %v2706 = vsel %vm820, %v2696, 0.0
        %2707 = vadd.xlane.f32.xlu0 %v2706
        %v2708 = vpop.xlane.xlu0 %2707
        %v2709 = vsel %vm820, %v2697, 0.0
        %2710 = vadd.xlane.f32.xlu0 %v2709
        %v2711 = vpop.xlane.xlu0 %2710
        %v2712 = vsel %vm820, %v2698, 0.0
        %2713 = vadd.xlane.f32.xlu0 %v2712
        %v2714 = vpop.xlane.xlu0 %2713
        %v2715 = vsel %vm820, %v2699, 0.0
        %2716 = vadd.xlane.f32.xlu0 %v2715
        %v2717 = vpop.xlane.xlu0 %2716
        %v2718 = vsel %vm820, %v2700, 0.0
        %2719 = vadd.xlane.f32.xlu0 %v2718
        %v2720 = vpop.xlane.xlu0 %2719
        %v2721 = vmul.f32 %v2705, %v827
        %v2722 = vmul.f32 %v2708, %v827
        %v2723 = vmul.f32 %v2711, %v827
        %v2724 = vmul.f32 %v2714, %v827
        %v2725 = vmul.f32 %v2717, %v827
        %v2726 = vmul.f32 %v2720, %v827
        %v2727 = vsub.f32 %v2695, %v2721
        %v2728 = vsub.f32 %v2696, %v2722
        %v2729 = vsub.f32 %v2697, %v2723
        %v2730 = vsub.f32 %v2698, %v2724
        %v2731 = vsub.f32 %v2699, %v2725
        %v2732 = vsub.f32 %v2700, %v2726
        %v2733 = vmul.f32 %v2727, %v2727
        %v2734 = vmul.f32 %v2728, %v2728
        %v2735 = vmul.f32 %v2729, %v2729
        %v2736 = vmul.f32 %v2730, %v2730
        %v2737 = vmul.f32 %v2731, %v2731
        %v2738 = vmul.f32 %v2732, %v2732
        %v2739 = vsel %vm820, %v2733, 0.0
        %2740 = vadd.xlane.f32.xlu0 %v2739
        %v2741 = vpop.xlane.xlu0 %2740
        %v2742 = vsel %vm820, %v2734, 0.0
        %2743 = vadd.xlane.f32.xlu0 %v2742
        %v2744 = vpop.xlane.xlu0 %2743
        %v2745 = vsel %vm820, %v2735, 0.0
        %2746 = vadd.xlane.f32.xlu0 %v2745
        %v2747 = vpop.xlane.xlu0 %2746
        %v2748 = vsel %vm820, %v2736, 0.0
        %2749 = vadd.xlane.f32.xlu0 %v2748
        %v2750 = vpop.xlane.xlu0 %2749
        %v2751 = vsel %vm820, %v2737, 0.0
        %2752 = vadd.xlane.f32.xlu0 %v2751
        %v2753 = vpop.xlane.xlu0 %2752
        %v2754 = vsel %vm820, %v2738, 0.0
        %2755 = vadd.xlane.f32.xlu0 %v2754
        %v2756 = vpop.xlane.xlu0 %2755
        %v2757 = vmul.f32 %v2741, %v827
        %v2758 = vmul.f32 %v2744, %v827
        %v2759 = vmul.f32 %v2747, %v827
        %v2760 = vmul.f32 %v2750, %v827
        %v2761 = vmul.f32 %v2753, %v827
        %v2762 = vmul.f32 %v2756, %v827
        %v2763 = vadd.f32 %v2757, 1e-05
        %v2764 = vadd.f32 %v2758, 1e-05
        %v2765 = vadd.f32 %v2759, 1e-05
        %v2766 = vadd.f32 %v2760, 1e-05
        %v2767 = vadd.f32 %v2761, 1e-05
        %v2768 = vadd.f32 %v2762, 1e-05
        %v2769 = vrsqrt.pop %v2763
        %v2770 = vrsqrt.pop %v2764
        %v2771 = vrsqrt.pop %v2765
        %v2772 = vrsqrt.pop %v2766
        %v2773 = vrsqrt.pop %v2767
        %v2774 = vrsqrt.pop %v2768
        %v2775 = vmul.f32 %v2727, %v2769
        %v2776 = vmul.f32 %v2728, %v2770
        %v2777 = vmul.f32 %v2729, %v2771
        %v2778 = vmul.f32 %v2730, %v2772
        %v2779 = vmul.f32 %v2731, %v2773
        %v2780 = vmul.f32 %v2732, %v2774
        %v2781 = vlaneseq
        %v2782 = vshrl.u32 %v2781, 7
        %v2783 = vsub.s32 0, %v2782
        %v2784 = vrot.slane %v2701, %v2783
        %v2785 = vmul.f32 %v2775, %v2784
        %v2786 = vmul.f32 %v2776, %v2784
        %v2787 = vmul.f32 %v2777, %v2784
        %v2788 = vmul.f32 %v2778, %v2784
        %v2789 = vmul.f32 %v2779, %v2784
        %v2790 = vmul.f32 %v2780, %v2784
        %v2791 = vlaneseq
        %v2792 = vshrl.u32 %v2791, 7
        %v2793 = vsub.s32 0, %v2792
        %v2794 = vrot.slane %v2702, %v2793
        %v2795 = vadd.f32 %v2785, %v2794
        %v2796 = vadd.f32 %v2786, %v2794
        %v2797 = vadd.f32 %v2787, %v2794
        %v2798 = vadd.f32 %v2788, %v2794
        %v2799 = vadd.f32 %v2789, %v2794
        %v2800 = vadd.f32 %v2790, %v2794
        %s2801 = scalar_lea.vmem [#allocation12], 192
        %v2802 = vld [vmem:[%s2801] sm:$0xff]
        %v2803 = vld [vmem:[%s2801 + $0x8] sm:$0xff]
        %v2804 = vld [vmem:[%s2801 + $0x10] sm:$0xff]
        %v2805 = vld [vmem:[%s2801 + $0x18] sm:$0xff]
        %v2806 = vld [vmem:[%s2801 + $0x20] sm:$0xff]
        %v2807 = vld [vmem:[%s2801 + $0x28] sm:$0xff]
        %v2808 = vld [vmem:[%s2801 + $0x30] sm:$0xff]
        %v2809 = vld [vmem:[%s2801 + $0x38] sm:$0xff]
        %v2810 = vld [vmem:[#allocation11 + $0x33] sm:$0x1]
        %v2811 = vlaneseq
        %v2812 = vshrl.u32 %v2811, 7
        %v2813 = vsub.s32 0, %v2812
        %v2814 = vrot.slane %v2810, %v2813
        %v2816 = vsel %vm820, %v2795, 0
        %v2819 = vsel %vm820, %v2796, 0
        %v2822 = vsel %vm820, %v2797, 0
        %v2825 = vsel %vm820, %v2798, 0
        %v2828 = vsel %vm820, %v2799, 0
        %v2831 = vsel %vm820, %v2800, 0
        %2833 = vmatprep.subr.mxu0 0.0
        %2834 = vmatpush1.msra.mxu0 %v2802
        %2835 = vmatprep.subr.mxu0 0.0
        %2836 = vmatpush1.msra.mxu0 %v2803
        %2837 = vmatprep.subr.mxu0 0.0
        %2838 = vmatpush1.msra.mxu0 %v2804
        %2839 = vmatprep.subr.mxu0 0.0
        %2840 = vmatpush1.msra.mxu0 %v2805
        %2841 = vmatprep.subr.mxu0 0.0
        %2842 = vmatpush1.msra.mxu0 %v2806
        %2843 = vmatprep.subr.mxu0 0.0
        %2844 = vmatpush1.msra.mxu0 %v2807
        %2845 = vmatprep.subr.mxu0 0.0
        %2846 = vmatpush1.msra.mxu0 %v2808
        %2847 = vmatprep.subr.mxu0 0.0
        %2848 = vmatpush1.msra.mxu0 %v2809
        %2849 = vmatprep.subr.mxu0 0.0
        %2850 = vmatpush1.msra.mxu0 0.0
        %2851 = vmatprep.subr.mxu0 0.0
        %2852 = vmatpush1.msra.mxu0 0.0
        %2853 = vmatprep.subr.mxu0 0.0
        %2854 = vmatpush1.msra.mxu0 0.0
        %2855 = vmatprep.subr.mxu0 0.0
        %2856 = vmatpush1.msra.mxu0 0.0
        %2857 = vmatprep.subr.mxu0 0.0
        %2858 = vmatpush1.msra.mxu0 0.0
        %2859 = vmatprep.subr.mxu0 0.0
        %2860 = vmatpush1.msra.mxu0 0.0
        %2861 = vmatprep.subr.mxu0 0.0
        %2862 = vmatpush1.msra.mxu0 0.0
        %2863 = vmatprep.subr.mxu0 0.0
        %2864 = vmatpush1.msra.mxu0 0.0
        %2865 = vmatprep.subr.mxu0 0.0
        %2866 = vmatpush1.msra.mxu0 0.0
        %2867 = vmatprep.subr.mxu0 0.0
        %2868 = vmatpush1.msra.mxu0 0.0
        %2869 = vmatprep.subr.mxu0 0.0
        %2870 = vmatpush1.msra.mxu0 0.0
        %2871 = vmatprep.subr.mxu0 0.0
        %2872 = vmatpush1.msra.mxu0 0.0
        %2873 = vmatprep.subr.mxu0 0.0
        %2874 = vmatpush1.msra.mxu0 0.0
        %2875 = vmatprep.subr.mxu0 0.0
        %2876 = vmatpush1.msra.mxu0 0.0
        %2877 = vmatprep.subr.mxu0 0.0
        %2878 = vmatpush1.msra.mxu0 0.0
        %2879 = vmatprep.subr.mxu0 0.0
        %2880 = vmatpush1.msra.mxu0 0.0
        %2881 = vmatprep.subr.mxu0 0.0
        %2882 = vmatpush1.msra.mxu0 0.0
        %2883 = vmatprep.subr.mxu0 0.0
        %2884 = vmatpush1.msra.mxu0 0.0
        %2885 = vmatprep.subr.mxu0 0.0
        %2886 = vmatpush1.msra.mxu0 0.0
        %2887 = vmatprep.subr.mxu0 0.0
        %2888 = vmatpush1.msra.mxu0 0.0
        %2889 = vmatprep.subr.mxu0 0.0
        %2890 = vmatpush1.msra.mxu0 0.0
        %2891 = vmatprep.subr.mxu0 0.0
        %2892 = vmatpush1.msra.mxu0 0.0
        %2893 = vmatprep.subr.mxu0 0.0
        %2894 = vmatpush1.msra.mxu0 0.0
        %2895 = vmatprep.subr.mxu0 0.0
        %2896 = vmatpush1.msra.mxu0 0.0
        %2897 = vmatprep.mubr.f32.mxu0 0.0
        %2898 = vmatmul.mubr.f32.gmra.mrb[0].mxu0 %v2816
        %v2899 = vpop.f32.mrb[0].mxu0
        %v2900 = vadd.f32 %v2814, %v2899
        %v2901 = vpop.f32.mrb[0].mxu0
        %2902 = vmatprep.mubr.f32.mxu0 0.0
        %2903 = vmatmul.mubr.f32.gmra.mrb[0].mxu0 %v2819
        %v2904 = vpop.f32.mrb[0].mxu0
        %v2905 = vadd.f32 %v2814, %v2904
        %v2906 = vpop.f32.mrb[0].mxu0
        %2907 = vmatprep.mubr.f32.mxu0 0.0
        %2908 = vmatmul.mubr.f32.gmra.mrb[0].mxu0 %v2822
        %v2909 = vpop.f32.mrb[0].mxu0
        %v2910 = vadd.f32 %v2814, %v2909
        %v2911 = vpop.f32.mrb[0].mxu0
        %2912 = vmatprep.mubr.f32.mxu0 0.0
        %2913 = vmatmul.mubr.f32.gmra.mrb[0].mxu0 %v2825
        %v2914 = vpop.f32.mrb[0].mxu0
        %v2915 = vadd.f32 %v2814, %v2914
        %v2916 = vpop.f32.mrb[0].mxu0
        %2917 = vmatprep.mubr.f32.mxu0 0.0
        %2918 = vmatmul.mubr.f32.gmra.mrb[0].mxu0 %v2828
        %v2919 = vpop.f32.mrb[0].mxu0
        %v2920 = vadd.f32 %v2814, %v2919
        %v2921 = vpop.f32.mrb[0].mxu0
        %2922 = vmatprep.mubr.f32.mxu0 0.0
        %2923 = vmatmul.mubr.f32.gmra.mrb[0].mxu0 %v2831
        %v2924 = vpop.f32.mrb[0].mxu0
        %v2925 = vadd.f32 %v2814, %v2924
        %v2926 = vpop.f32.mrb[0].mxu0
        %2927 = vdwg.mxu0
        %v2928 = vld [vmem:[#allocation11 + $0x2d] sm:$0x1]
        %v2929 = vlaneseq
        %v2930 = vshrl.u32 %v2929, 7
        %v2931 = vsub.s32 0, %v2930
        %v2932 = vrot.slane %v2928, %v2931
        %v2933 = vmul.f32 %v2900, %v2932
        %v2934 = vmul.f32 %v2905, %v2932
        %v2935 = vld [vmem:[#allocation11 + $0x2e] sm:$0x1]
        %v2936 = vlaneseq
        %v2937 = vshrl.u32 %v2936, 7
        %v2938 = vsub.s32 0, %v2937
        %v2939 = vrot.slane %v2935, %v2938
        %v2940 = vmul.f32 %v2910, %v2939
        %v2941 = vmul.f32 %v2915, %v2939
        %v2942 = vld [vmem:[#allocation11 + $0x2f] sm:$0x1]
        %v2943 = vlaneseq
        %v2944 = vshrl.u32 %v2943, 7
        %v2945 = vsub.s32 0, %v2944
        %v2946 = vrot.slane %v2942, %v2945
        %v2947 = vmul.f32 %v2920, %v2946
        %v2948 = vmul.f32 %v2925, %v2946
        %s2949 = scalar_lea.vmem [#allocation12], 256
        %v2950 = vld [vmem:[%s2949] sm:$0xff]
        %v2951 = vld [vmem:[%s2949 + $0x8] sm:$0xff]
        %v2952 = vld [vmem:[%s2949 + $0x10] sm:$0xff]
        %v2953 = vld [vmem:[%s2949 + $0x18] sm:$0xff]
        %v2954 = vld [vmem:[%s2949 + $0x20] sm:$0xff]
        %v2955 = vld [vmem:[%s2949 + $0x28] sm:$0xff]
        %v2956 = vld [vmem:[%s2949 + $0x30] sm:$0xff]
        %v2957 = vld [vmem:[%s2949 + $0x38] sm:$0xff]
        %s2958 = scalar_lea.vmem [#allocation12], 320
        %v2959 = vld [vmem:[%s2958] sm:$0xff]
        %v2960 = vld [vmem:[%s2958 + $0x8] sm:$0xff]
        %v2961 = vld [vmem:[%s2958 + $0x10] sm:$0xff]
        %v2962 = vld [vmem:[%s2958 + $0x18] sm:$0xff]
        %v2963 = vld [vmem:[%s2958 + $0x20] sm:$0xff]
        %v2964 = vld [vmem:[%s2958 + $0x28] sm:$0xff]
        %v2965 = vld [vmem:[%s2958 + $0x30] sm:$0xff]
        %v2966 = vld [vmem:[%s2958 + $0x38] sm:$0xff]
        %v2968 = vsel %vm820, %v2940, 0
        %v2971 = vsel %vm820, %v2941, 0
        %2973 = vmatprep.subr.mxu0 0.0
        %2974 = vmatpush1.msra.mxu0 %v2959
        %2975 = vmatprep.subr.mxu0 0.0
        %2976 = vmatpush1.msra.mxu0 %v2960
        %2977 = vmatprep.subr.mxu0 0.0
        %2978 = vmatpush1.msra.mxu0 %v2961
        %2979 = vmatprep.subr.mxu0 0.0
        %2980 = vmatpush1.msra.mxu0 %v2962
        %2981 = vmatprep.subr.mxu0 0.0
        %2982 = vmatpush1.msra.mxu0 %v2963
        %2983 = vmatprep.subr.mxu0 0.0
        %2984 = vmatpush1.msra.mxu0 %v2964
        %2985 = vmatprep.subr.mxu0 0.0
        %2986 = vmatpush1.msra.mxu0 %v2965
        %2987 = vmatprep.subr.mxu0 0.0
        %2988 = vmatpush1.msra.mxu0 %v2966
        %2989 = vmatprep.subr.mxu0 0.0
        %2990 = vmatpush1.msra.mxu0 0.0
        %2991 = vmatprep.subr.mxu0 0.0
        %2992 = vmatpush1.msra.mxu0 0.0
        %2993 = vmatprep.subr.mxu0 0.0
        %2994 = vmatpush1.msra.mxu0 0.0
        %2995 = vmatprep.subr.mxu0 0.0
        %2996 = vmatpush1.msra.mxu0 0.0
        %2997 = vmatprep.subr.mxu0 0.0
        %2998 = vmatpush1.msra.mxu0 0.0
        %2999 = vmatprep.subr.mxu0 0.0
        %3000 = vmatpush1.msra.mxu0 0.0
        %3001 = vmatprep.subr.mxu0 0.0
        %3002 = vmatpush1.msra.mxu0 0.0
        %3003 = vmatprep.subr.mxu0 0.0
        %3004 = vmatpush1.msra.mxu0 0.0
        %3005 = vmatprep.subr.mxu0 0.0
        %3006 = vmatpush1.msra.mxu0 0.0
        %3007 = vmatprep.subr.mxu0 0.0
        %3008 = vmatpush1.msra.mxu0 0.0
        %3009 = vmatprep.subr.mxu0 0.0
        %3010 = vmatpush1.msra.mxu0 0.0
        %3011 = vmatprep.subr.mxu0 0.0
        %3012 = vmatpush1.msra.mxu0 0.0
        %3013 = vmatprep.subr.mxu0 0.0
        %3014 = vmatpush1.msra.mxu0 0.0
        %3015 = vmatprep.subr.mxu0 0.0
        %3016 = vmatpush1.msra.mxu0 0.0
        %3017 = vmatprep.subr.mxu0 0.0
        %3018 = vmatpush1.msra.mxu0 0.0
        %3019 = vmatprep.subr.mxu0 0.0
        %3020 = vmatpush1.msra.mxu0 0.0
        %3021 = vmatprep.subr.mxu0 0.0
        %3022 = vmatpush1.msra.mxu0 0.0
        %3023 = vmatprep.subr.mxu0 0.0
        %3024 = vmatpush1.msra.mxu0 0.0
        %3025 = vmatprep.subr.mxu0 0.0
        %3026 = vmatpush1.msra.mxu0 0.0
        %3027 = vmatprep.subr.mxu0 0.0
        %3028 = vmatpush1.msra.mxu0 0.0
        %3029 = vmatprep.subr.mxu0 0.0
        %3030 = vmatpush1.msra.mxu0 0.0
        %3031 = vmatprep.subr.mxu0 0.0
        %3032 = vmatpush1.msra.mxu0 0.0
        %3033 = vmatprep.subr.mxu0 0.0
        %3034 = vmatpush1.msra.mxu0 0.0
        %3035 = vmatprep.subr.mxu0 0.0
        %3036 = vmatpush1.msra.mxu0 0.0
        %3037 = vmatprep.mubr.f32.mxu0 0.0
        %3038 = vmatmul.mubr.f32.gmra.mrb[0].mxu0 %v2968
        %v3039 = vpop.f32.mrb[0].mxu0
        %v3040 = vadd.f32 0.0, %v3039
        %v3041 = vpop.f32.mrb[0].mxu0
        %3042 = vmatprep.mubr.f32.mxu0 0.0
        %3043 = vmatmul.mubr.f32.gmra.mrb[0].mxu0 %v2971
        %v3044 = vpop.f32.mrb[0].mxu0
        %v3045 = vadd.f32 0.0, %v3044
        %v3046 = vpop.f32.mrb[0].mxu0
        %3047 = vdwg.mxu0
        %v3049 = vsel %vm820, %v2933, 0
        %v3052 = vsel %vm820, %v2934, 0
        %3054 = vmatprep.subr.mxu0 0.0
        %3055 = vmatpush1.msra.mxu0 %v2950
        %3056 = vmatprep.subr.mxu0 0.0
        %3057 = vmatpush1.msra.mxu0 %v2951
        %3058 = vmatprep.subr.mxu0 0.0
        %3059 = vmatpush1.msra.mxu0 %v2952
        %3060 = vmatprep.subr.mxu0 0.0
        %3061 = vmatpush1.msra.mxu0 %v2953
        %3062 = vmatprep.subr.mxu0 0.0
        %3063 = vmatpush1.msra.mxu0 %v2954
        %3064 = vmatprep.subr.mxu0 0.0
        %3065 = vmatpush1.msra.mxu0 %v2955
        %3066 = vmatprep.subr.mxu0 0.0
        %3067 = vmatpush1.msra.mxu0 %v2956
        %3068 = vmatprep.subr.mxu0 0.0
        %3069 = vmatpush1.msra.mxu0 %v2957
        %3070 = vmatprep.subr.mxu0 0.0
        %3071 = vmatpush1.msra.mxu0 0.0
        %3072 = vmatprep.subr.mxu0 0.0
        %3073 = vmatpush1.msra.mxu0 0.0
        %3074 = vmatprep.subr.mxu0 0.0
        %3075 = vmatpush1.msra.mxu0 0.0
        %3076 = vmatprep.subr.mxu0 0.0
        %3077 = vmatpush1.msra.mxu0 0.0
        %3078 = vmatprep.subr.mxu0 0.0
        %3079 = vmatpush1.msra.mxu0 0.0
        %3080 = vmatprep.subr.mxu0 0.0
        %3081 = vmatpush1.msra.mxu0 0.0
        %3082 = vmatprep.subr.mxu0 0.0
        %3083 = vmatpush1.msra.mxu0 0.0
        %3084 = vmatprep.subr.mxu0 0.0
        %3085 = vmatpush1.msra.mxu0 0.0
        %3086 = vmatprep.subr.mxu0 0.0
        %3087 = vmatpush1.msra.mxu0 0.0
        %3088 = vmatprep.subr.mxu0 0.0
        %3089 = vmatpush1.msra.mxu0 0.0
        %3090 = vmatprep.subr.mxu0 0.0
        %3091 = vmatpush1.msra.mxu0 0.0
        %3092 = vmatprep.subr.mxu0 0.0
        %3093 = vmatpush1.msra.mxu0 0.0
        %3094 = vmatprep.subr.mxu0 0.0
        %3095 = vmatpush1.msra.mxu0 0.0
        %3096 = vmatprep.subr.mxu0 0.0
        %3097 = vmatpush1.msra.mxu0 0.0
        %3098 = vmatprep.subr.mxu0 0.0
        %3099 = vmatpush1.msra.mxu0 0.0
        %3100 = vmatprep.subr.mxu0 0.0
        %3101 = vmatpush1.msra.mxu0 0.0
        %3102 = vmatprep.subr.mxu0 0.0
        %3103 = vmatpush1.msra.mxu0 0.0
        %3104 = vmatprep.subr.mxu0 0.0
        %3105 = vmatpush1.msra.mxu0 0.0
        %3106 = vmatprep.subr.mxu0 0.0
        %3107 = vmatpush1.msra.mxu0 0.0
        %3108 = vmatprep.subr.mxu0 0.0
        %3109 = vmatpush1.msra.mxu0 0.0
        %3110 = vmatprep.subr.mxu0 0.0
        %3111 = vmatpush1.msra.mxu0 0.0
        %3112 = vmatprep.subr.mxu0 0.0
        %3113 = vmatpush1.msra.mxu0 0.0
        %3114 = vmatprep.subr.mxu0 0.0
        %3115 = vmatpush1.msra.mxu0 0.0
        %3116 = vmatprep.subr.mxu0 0.0
        %3117 = vmatpush1.msra.mxu0 0.0
        %3118 = vmatprep.mubr.f32.mxu0 0.0
        %3119 = vmatmul.mubr.f32.gmra.mrb[0].mxu0 %v3049
        %v3120 = vpop.f32.mrb[0].mxu0
        %v3121 = vadd.f32 %v3040, %v3120
        %v3122 = vpop.f32.mrb[0].mxu0
        %3123 = vmatprep.mubr.f32.mxu0 0.0
        %3124 = vmatmul.mubr.f32.gmra.mrb[0].mxu0 %v3052
        %v3125 = vpop.f32.mrb[0].mxu0
        %v3126 = vadd.f32 %v3045, %v3125
        %v3127 = vpop.f32.mrb[0].mxu0
        %3128 = vdwg.mxu0
        %v3129 = vld [vmem:[#allocation11 + $0x34] sm:$0x1]
        %v3130 = vlaneseq
        %v3131 = vshrl.u32 %v3130, 7
        %v3132 = vsub.s32 0, %v3131
        %v3133 = vrot.slane %v3129, %v3132
        %v3134 = vadd.f32 %v3121, %v3133
        %v3135 = vadd.f32 %v3126, %v3133
        %v3136 = vmul.f32 %v3134, 0.5
        %v3137 = vmul.f32 %v3135, 0.5
        %v3138 = vmul.f32 %v3134, 0.70710677
        %v3139 = vmul.f32 %v3135, 0.70710677
        %v3140 = verf.f32.pop %v3138
        %v3141 = verf.f32.pop %v3139
        %v3142 = vadd.f32 %v3140, 1.0
        %v3143 = vadd.f32 %v3141, 1.0
        %v3144 = vmul.f32 %v3136, %v3142
        %v3145 = vmul.f32 %v3137, %v3143
        %v3146 = vld [vmem:[#allocation11 + $0x35] sm:$0x1]
        %v3147 = vld [vmem:[#allocation11 + $0x36] sm:$0x1]
        %v3148 = vsel %vm820, %v3144, 0.0
        %3149 = vadd.xlane.f32.xlu0 %v3148
        %v3150 = vpop.xlane.xlu0 %3149
        %v3151 = vsel %vm820, %v3145, 0.0
        %3152 = vadd.xlane.f32.xlu0 %v3151
        %v3153 = vpop.xlane.xlu0 %3152
        %v3154 = vmul.f32 %v3150, %v827
        %v3155 = vmul.f32 %v3153, %v827
        %v3156 = vsub.f32 %v3144, %v3154
        %v3157 = vsub.f32 %v3145, %v3155
        %v3158 = vmul.f32 %v3156, %v3156
        %v3159 = vmul.f32 %v3157, %v3157
        %v3160 = vsel %vm820, %v3158, 0.0
        %3161 = vadd.xlane.f32.xlu0 %v3160
        %v3162 = vpop.xlane.xlu0 %3161
        %v3163 = vsel %vm820, %v3159, 0.0
        %3164 = vadd.xlane.f32.xlu0 %v3163
        %v3165 = vpop.xlane.xlu0 %3164
        %v3166 = vmul.f32 %v3162, %v827
        %v3167 = vmul.f32 %v3165, %v827
        %v3168 = vadd.f32 %v3166, 1e-05
        %v3169 = vadd.f32 %v3167, 1e-05
        %v3170 = vrsqrt.pop %v3168
        %v3171 = vrsqrt.pop %v3169
        %v3172 = vmul.f32 %v3156, %v3170
        %v3173 = vmul.f32 %v3157, %v3171
        %v3174 = vlaneseq
        %v3175 = vshrl.u32 %v3174, 7
        %v3176 = vsub.s32 0, %v3175
        %v3177 = vrot.slane %v3146, %v3176
        %v3178 = vmul.f32 %v3172, %v3177
        %v3179 = vmul.f32 %v3173, %v3177
        %v3180 = vlaneseq
        %v3181 = vshrl.u32 %v3180, 7
        %v3182 = vsub.s32 0, %v3181
        %v3183 = vrot.slane %v3147, %v3182
        %v3184 = vadd.f32 %v3178, %v3183
        %v3185 = vadd.f32 %v3179, %v3183
        %s3186 = scalar_lea.vmem [#allocation12], 384
        %v3187 = vld [vmem:[%s3186] sm:$0xff]
        %v3188 = vld [vmem:[%s3186 + $0x8] sm:$0xff]
        %v3189 = vld [vmem:[%s3186 + $0x10] sm:$0xff]
        %v3190 = vld [vmem:[%s3186 + $0x18] sm:$0xff]
        %v3191 = vld [vmem:[%s3186 + $0x20] sm:$0xff]
        %v3192 = vld [vmem:[%s3186 + $0x28] sm:$0xff]
        %v3193 = vld [vmem:[%s3186 + $0x30] sm:$0xff]
        %v3194 = vld [vmem:[%s3186 + $0x38] sm:$0xff]
        %s3195 = scalar_lea.vmem [#allocation12], 448
        %v3196 = vld [vmem:[%s3195] sm:$0xff]
        %v3197 = vld [vmem:[%s3195 + $0x8] sm:$0xff]
        %v3198 = vld [vmem:[%s3195 + $0x10] sm:$0xff]
        %v3199 = vld [vmem:[%s3195 + $0x18] sm:$0xff]
        %v3200 = vld [vmem:[%s3195 + $0x20] sm:$0xff]
        %v3201 = vld [vmem:[%s3195 + $0x28] sm:$0xff]
        %v3202 = vld [vmem:[%s3195 + $0x30] sm:$0xff]
        %v3203 = vld [vmem:[%s3195 + $0x38] sm:$0xff]
        %v3205 = vsel %vm820, %v2947, 0
        %v3208 = vsel %vm820, %v2948, 0
        %3210 = vmatprep.subr.mxu0 0.0
        %3211 = vmatpush1.msra.mxu0 %v3196
        %3212 = vmatprep.subr.mxu0 0.0
        %3213 = vmatpush1.msra.mxu0 %v3197
        %3214 = vmatprep.subr.mxu0 0.0
        %3215 = vmatpush1.msra.mxu0 %v3198
        %3216 = vmatprep.subr.mxu0 0.0
        %3217 = vmatpush1.msra.mxu0 %v3199
        %3218 = vmatprep.subr.mxu0 0.0
        %3219 = vmatpush1.msra.mxu0 %v3200
        %3220 = vmatprep.subr.mxu0 0.0
        %3221 = vmatpush1.msra.mxu0 %v3201
        %3222 = vmatprep.subr.mxu0 0.0
        %3223 = vmatpush1.msra.mxu0 %v3202
        %3224 = vmatprep.subr.mxu0 0.0
        %3225 = vmatpush1.msra.mxu0 %v3203
        %3226 = vmatprep.subr.mxu0 0.0
        %3227 = vmatpush1.msra.mxu0 0.0
        %3228 = vmatprep.subr.mxu0 0.0
        %3229 = vmatpush1.msra.mxu0 0.0
        %3230 = vmatprep.subr.mxu0 0.0
        %3231 = vmatpush1.msra.mxu0 0.0
        %3232 = vmatprep.subr.mxu0 0.0
        %3233 = vmatpush1.msra.mxu0 0.0
        %3234 = vmatprep.subr.mxu0 0.0
        %3235 = vmatpush1.msra.mxu0 0.0
        %3236 = vmatprep.subr.mxu0 0.0
        %3237 = vmatpush1.msra.mxu0 0.0
        %3238 = vmatprep.subr.mxu0 0.0
        %3239 = vmatpush1.msra.mxu0 0.0
        %3240 = vmatprep.subr.mxu0 0.0
        %3241 = vmatpush1.msra.mxu0 0.0
        %3242 = vmatprep.subr.mxu0 0.0
        %3243 = vmatpush1.msra.mxu0 0.0
        %3244 = vmatprep.subr.mxu0 0.0
        %3245 = vmatpush1.msra.mxu0 0.0
        %3246 = vmatprep.subr.mxu0 0.0
        %3247 = vmatpush1.msra.mxu0 0.0
        %3248 = vmatprep.subr.mxu0 0.0
        %3249 = vmatpush1.msra.mxu0 0.0
        %3250 = vmatprep.subr.mxu0 0.0
        %3251 = vmatpush1.msra.mxu0 0.0
        %3252 = vmatprep.subr.mxu0 0.0
        %3253 = vmatpush1.msra.mxu0 0.0
        %3254 = vmatprep.subr.mxu0 0.0
        %3255 = vmatpush1.msra.mxu0 0.0
        %3256 = vmatprep.subr.mxu0 0.0
        %3257 = vmatpush1.msra.mxu0 0.0
        %3258 = vmatprep.subr.mxu0 0.0
        %3259 = vmatpush1.msra.mxu0 0.0
        %3260 = vmatprep.subr.mxu0 0.0
        %3261 = vmatpush1.msra.mxu0 0.0
        %3262 = vmatprep.subr.mxu0 0.0
        %3263 = vmatpush1.msra.mxu0 0.0
        %3264 = vmatprep.subr.mxu0 0.0
        %3265 = vmatpush1.msra.mxu0 0.0
        %3266 = vmatprep.subr.mxu0 0.0
        %3267 = vmatpush1.msra.mxu0 0.0
        %3268 = vmatprep.subr.mxu0 0.0
        %3269 = vmatpush1.msra.mxu0 0.0
        %3270 = vmatprep.subr.mxu0 0.0
        %3271 = vmatpush1.msra.mxu0 0.0
        %3272 = vmatprep.subr.mxu0 0.0
        %3273 = vmatpush1.msra.mxu0 0.0
        %3274 = vmatprep.mubr.f32.mxu0 0.0
        %3275 = vmatmul.mubr.f32.gmra.mrb[0].mxu0 %v3205
        %v3276 = vpop.f32.mrb[0].mxu0
        %v3277 = vadd.f32 0.0, %v3276
        %v3278 = vpop.f32.mrb[0].mxu0
        %3279 = vmatprep.mubr.f32.mxu0 0.0
        %3280 = vmatmul.mubr.f32.gmra.mrb[0].mxu0 %v3208
        %v3281 = vpop.f32.mrb[0].mxu0
        %v3282 = vadd.f32 0.0, %v3281
        %v3283 = vpop.f32.mrb[0].mxu0
        %3284 = vdwg.mxu0
        %v3286 = vsel %vm820, %v3184, 0
        %v3289 = vsel %vm820, %v3185, 0
        %3291 = vmatprep.subr.mxu0 0.0
        %3292 = vmatpush1.msra.mxu0 %v3187
        %3293 = vmatprep.subr.mxu0 0.0
        %3294 = vmatpush1.msra.mxu0 %v3188
        %3295 = vmatprep.subr.mxu0 0.0
        %3296 = vmatpush1.msra.mxu0 %v3189
        %3297 = vmatprep.subr.mxu0 0.0
        %3298 = vmatpush1.msra.mxu0 %v3190
        %3299 = vmatprep.subr.mxu0 0.0
        %3300 = vmatpush1.msra.mxu0 %v3191
        %3301 = vmatprep.subr.mxu0 0.0
        %3302 = vmatpush1.msra.mxu0 %v3192
        %3303 = vmatprep.subr.mxu0 0.0
        %3304 = vmatpush1.msra.mxu0 %v3193
        %3305 = vmatprep.subr.mxu0 0.0
        %3306 = vmatpush1.msra.mxu0 %v3194
        %3307 = vmatprep.subr.mxu0 0.0
        %3308 = vmatpush1.msra.mxu0 0.0
        %3309 = vmatprep.subr.mxu0 0.0
        %3310 = vmatpush1.msra.mxu0 0.0
        %3311 = vmatprep.subr.mxu0 0.0
        %3312 = vmatpush1.msra.mxu0 0.0
        %3313 = vmatprep.subr.mxu0 0.0
        %3314 = vmatpush1.msra.mxu0 0.0
        %3315 = vmatprep.subr.mxu0 0.0
        %3316 = vmatpush1.msra.mxu0 0.0
        %3317 = vmatprep.subr.mxu0 0.0
        %3318 = vmatpush1.msra.mxu0 0.0
        %3319 = vmatprep.subr.mxu0 0.0
        %3320 = vmatpush1.msra.mxu0 0.0
        %3321 = vmatprep.subr.mxu0 0.0
        %3322 = vmatpush1.msra.mxu0 0.0
        %3323 = vmatprep.subr.mxu0 0.0
        %3324 = vmatpush1.msra.mxu0 0.0
        %3325 = vmatprep.subr.mxu0 0.0
        %3326 = vmatpush1.msra.mxu0 0.0
        %3327 = vmatprep.subr.mxu0 0.0
        %3328 = vmatpush1.msra.mxu0 0.0
        %3329 = vmatprep.subr.mxu0 0.0
        %3330 = vmatpush1.msra.mxu0 0.0
        %3331 = vmatprep.subr.mxu0 0.0
        %3332 = vmatpush1.msra.mxu0 0.0
        %3333 = vmatprep.subr.mxu0 0.0
        %3334 = vmatpush1.msra.mxu0 0.0
        %3335 = vmatprep.subr.mxu0 0.0
        %3336 = vmatpush1.msra.mxu0 0.0
        %3337 = vmatprep.subr.mxu0 0.0
        %3338 = vmatpush1.msra.mxu0 0.0
        %3339 = vmatprep.subr.mxu0 0.0
        %3340 = vmatpush1.msra.mxu0 0.0
        %3341 = vmatprep.subr.mxu0 0.0
        %3342 = vmatpush1.msra.mxu0 0.0
        %3343 = vmatprep.subr.mxu0 0.0
        %3344 = vmatpush1.msra.mxu0 0.0
        %3345 = vmatprep.subr.mxu0 0.0
        %3346 = vmatpush1.msra.mxu0 0.0
        %3347 = vmatprep.subr.mxu0 0.0
        %3348 = vmatpush1.msra.mxu0 0.0
        %3349 = vmatprep.subr.mxu0 0.0
        %3350 = vmatpush1.msra.mxu0 0.0
        %3351 = vmatprep.subr.mxu0 0.0
        %3352 = vmatpush1.msra.mxu0 0.0
        %3353 = vmatprep.subr.mxu0 0.0
        %3354 = vmatpush1.msra.mxu0 0.0
        %3355 = vmatprep.mubr.f32.mxu0 0.0
        %3356 = vmatmul.mubr.f32.gmra.mrb[0].mxu0 %v3286
        %v3357 = vpop.f32.mrb[0].mxu0
        %v3358 = vadd.f32 %v3277, %v3357
        %v3359 = vpop.f32.mrb[0].mxu0
        %3360 = vmatprep.mubr.f32.mxu0 0.0
        %3361 = vmatmul.mubr.f32.gmra.mrb[0].mxu0 %v3289
        %v3362 = vpop.f32.mrb[0].mxu0
        %v3363 = vadd.f32 %v3282, %v3362
        %v3364 = vpop.f32.mrb[0].mxu0
        %3365 = vdwg.mxu0
        %v3366 = vld [vmem:[#allocation11 + $0x37] sm:$0x1]
        %v3367 = vlaneseq
        %v3368 = vshrl.u32 %v3367, 7
        %v3369 = vsub.s32 0, %v3368
        %v3370 = vrot.slane %v3366, %v3369
        %v3371 = vadd.f32 %v3358, %v3370
        %v3372 = vadd.f32 %v3363, %v3370
        %v3373 = vmul.f32 %v3371, 0.5
        %v3374 = vmul.f32 %v3372, 0.5
        %v3375 = vmul.f32 %v3371, 0.70710677
        %v3376 = vmul.f32 %v3372, 0.70710677
        %v3377 = verf.f32.pop %v3375
        %v3378 = verf.f32.pop %v3376
        %v3379 = vadd.f32 %v3377, 1.0
        %v3380 = vadd.f32 %v3378, 1.0
        %v3381 = vmul.f32 %v3373, %v3379
        %v3382 = vmul.f32 %v3374, %v3380
        %v3383 = vld [vmem:[#allocation11 + $0x38] sm:$0x1]
        %v3384 = vld [vmem:[#allocation11 + $0x39] sm:$0x1]
        %v3385 = vsel %vm820, %v3381, 0.0
        %3386 = vadd.xlane.f32.xlu0 %v3385
        %v3387 = vpop.xlane.xlu0 %3386
        %v3388 = vsel %vm820, %v3382, 0.0
        %3389 = vadd.xlane.f32.xlu0 %v3388
        %v3390 = vpop.xlane.xlu0 %3389
        %v3391 = vmul.f32 %v3387, %v827
        %v3392 = vmul.f32 %v3390, %v827
        %v3393 = vsub.f32 %v3381, %v3391
        %v3394 = vsub.f32 %v3382, %v3392
        %v3395 = vmul.f32 %v3393, %v3393
        %v3396 = vmul.f32 %v3394, %v3394
        %v3397 = vsel %vm820, %v3395, 0.0
        %3398 = vadd.xlane.f32.xlu0 %v3397
        %v3399 = vpop.xlane.xlu0 %3398
        %v3400 = vsel %vm820, %v3396, 0.0
        %3401 = vadd.xlane.f32.xlu0 %v3400
        %v3402 = vpop.xlane.xlu0 %3401
        %v3403 = vmul.f32 %v3399, %v827
        %v3404 = vmul.f32 %v3402, %v827
        %v3405 = vadd.f32 %v3403, 1e-05
        %v3406 = vadd.f32 %v3404, 1e-05
        %v3407 = vrsqrt.pop %v3405
        %v3408 = vrsqrt.pop %v3406
        %v3409 = vmul.f32 %v3393, %v3407
        %v3410 = vmul.f32 %v3394, %v3408
        %v3411 = vlaneseq
        %v3412 = vshrl.u32 %v3411, 7
        %v3413 = vsub.s32 0, %v3412
        %v3414 = vrot.slane %v3383, %v3413
        %v3415 = vmul.f32 %v3409, %v3414
        %v3416 = vmul.f32 %v3410, %v3414
        %v3417 = vlaneseq
        %v3418 = vshrl.u32 %v3417, 7
        %v3419 = vsub.s32 0, %v3418
        %v3420 = vrot.slane %v3384, %v3419
        %v3421 = vadd.f32 %v3415, %v3420
        %v3422 = vadd.f32 %v3416, %v3420
        %v3423 = vld [vmem:[%s418] sm:$0xff]
        %v3424 = vld [vmem:[%s418 + $0x8] sm:$0xff]
        %v3425 = vld [vmem:[#allocation15] sm:$0xff]
        %v3426 = vld [vmem:[#allocation15 + $0x8] sm:$0xff]
        %v3427 = vld [vmem:[#allocation15 + $0x10] sm:$0xff]
        %v3428 = vld [vmem:[#allocation15 + $0x18] sm:$0xff]
        %v3429 = vld [vmem:[#allocation15 + $0x20] sm:$0xff]
        %v3430 = vld [vmem:[#allocation11 + $0x3a] sm:$0x1]
        %v3431 = vlaneseq
        %v3432 = vshrl.u32 %v3431, 7
        %v3433 = vsub.s32 0, %v3432
        %v3434 = vrot.slane %v3430, %v3433
        %vm3435 = vcmask 326656
        %v3437 = vsel %vm3435, %v3423, 0
        %v3440 = vsel %vm3435, %v3424, 0
        %3442 = vmatprep.subr.mxu0 0.0
        %3443 = vmatpush1.msra.mxu0 %v3425
        %3444 = vmatprep.subr.mxu0 0.0
        %3445 = vmatpush1.msra.mxu0 %v3426
        %3446 = vmatprep.subr.mxu0 0.0
        %3447 = vmatpush1.msra.mxu0 %v3427
        %3448 = vmatprep.subr.mxu0 0.0
        %3449 = vmatpush1.msra.mxu0 %v3428
        %3450 = vmatprep.subr.mxu0 0.0
        %3451 = vmatpush1.msra.mxu0 %v3429
        %3452 = vmatprep.subr.mxu0 0.0
        %3453 = vmatpush1.msra.mxu0 0.0
        %3454 = vmatprep.subr.mxu0 0.0
        %3455 = vmatpush1.msra.mxu0 0.0
        %3456 = vmatprep.subr.mxu0 0.0
        %3457 = vmatpush1.msra.mxu0 0.0
        %3458 = vmatprep.subr.mxu0 0.0
        %3459 = vmatpush1.msra.mxu0 0.0
        %3460 = vmatprep.subr.mxu0 0.0
        %3461 = vmatpush1.msra.mxu0 0.0
        %3462 = vmatprep.subr.mxu0 0.0
        %3463 = vmatpush1.msra.mxu0 0.0
        %3464 = vmatprep.subr.mxu0 0.0
        %3465 = vmatpush1.msra.mxu0 0.0
        %3466 = vmatprep.subr.mxu0 0.0
        %3467 = vmatpush1.msra.mxu0 0.0
        %3468 = vmatprep.subr.mxu0 0.0
        %3469 = vmatpush1.msra.mxu0 0.0
        %3470 = vmatprep.subr.mxu0 0.0
        %3471 = vmatpush1.msra.mxu0 0.0
        %3472 = vmatprep.subr.mxu0 0.0
        %3473 = vmatpush1.msra.mxu0 0.0
        %3474 = vmatprep.subr.mxu0 0.0
        %3475 = vmatpush1.msra.mxu0 0.0
        %3476 = vmatprep.subr.mxu0 0.0
        %3477 = vmatpush1.msra.mxu0 0.0
        %3478 = vmatprep.subr.mxu0 0.0
        %3479 = vmatpush1.msra.mxu0 0.0
        %3480 = vmatprep.subr.mxu0 0.0
        %3481 = vmatpush1.msra.mxu0 0.0
        %3482 = vmatprep.subr.mxu0 0.0
        %3483 = vmatpush1.msra.mxu0 0.0
        %3484 = vmatprep.subr.mxu0 0.0
        %3485 = vmatpush1.msra.mxu0 0.0
        %3486 = vmatprep.subr.mxu0 0.0
        %3487 = vmatpush1.msra.mxu0 0.0
        %3488 = vmatprep.subr.mxu0 0.0
        %3489 = vmatpush1.msra.mxu0 0.0
        %3490 = vmatprep.subr.mxu0 0.0
        %3491 = vmatpush1.msra.mxu0 0.0
        %3492 = vmatprep.subr.mxu0 0.0
        %3493 = vmatpush1.msra.mxu0 0.0
        %3494 = vmatprep.subr.mxu0 0.0
        %3495 = vmatpush1.msra.mxu0 0.0
        %3496 = vmatprep.subr.mxu0 0.0
        %3497 = vmatpush1.msra.mxu0 0.0
        %3498 = vmatprep.subr.mxu0 0.0
        %3499 = vmatpush1.msra.mxu0 0.0
        %3500 = vmatprep.subr.mxu0 0.0
        %3501 = vmatpush1.msra.mxu0 0.0
        %3502 = vmatprep.subr.mxu0 0.0
        %3503 = vmatpush1.msra.mxu0 0.0
        %3504 = vmatprep.subr.mxu0 0.0
        %3505 = vmatpush1.msra.mxu0 0.0
        %3506 = vmatprep.mubr.f32.mxu0 0.0
        %3507 = vmatmul.mubr.f32.gmra.mrb[0].mxu0 %v3437
        %v3508 = vpop.f32.mrb[0].mxu0
        %v3509 = vadd.f32 %v3434, %v3508
        %v3510 = vpop.f32.mrb[0].mxu0
        %3511 = vmatprep.mubr.f32.mxu0 0.0
        %3512 = vmatmul.mubr.f32.gmra.mrb[0].mxu0 %v3440
        %v3513 = vpop.f32.mrb[0].mxu0
        %v3514 = vadd.f32 %v3434, %v3513
        %v3515 = vpop.f32.mrb[0].mxu0
        %3516 = vdwg.mxu0
        %v3517 = vmul.f32 %v3509, 0.5
        %v3518 = vmul.f32 %v3514, 0.5
        %v3519 = vmul.f32 %v3509, 0.70710677
        %v3520 = vmul.f32 %v3514, 0.70710677
        %v3521 = verf.f32.pop %v3519
        %v3522 = verf.f32.pop %v3520
        %v3523 = vadd.f32 %v3521, 1.0
        %v3524 = vadd.f32 %v3522, 1.0
        %v3525 = vmul.f32 %v3517, %v3523
        %v3526 = vmul.f32 %v3518, %v3524
        %s3527 = scalar_lea.vmem [#allocation12], 512
        %v3528 = vld [vmem:[%s3527] sm:$0xff]
        %v3529 = vld [vmem:[%s3527 + $0x8] sm:$0xff]
        %v3530 = vld [vmem:[%s3527 + $0x10] sm:$0xff]
        %v3531 = vld [vmem:[%s3527 + $0x18] sm:$0xff]
        %v3532 = vld [vmem:[%s3527 + $0x20] sm:$0xff]
        %v3533 = vld [vmem:[%s3527 + $0x28] sm:$0xff]
        %v3534 = vld [vmem:[%s3527 + $0x30] sm:$0xff]
        %v3535 = vld [vmem:[%s3527 + $0x38] sm:$0xff]
        %v3536 = vld [vmem:[#allocation11 + $0x3b] sm:$0x1]
        %v3537 = vlaneseq
        %v3538 = vshrl.u32 %v3537, 7
        %v3539 = vsub.s32 0, %v3538
        %v3540 = vrot.slane %v3536, %v3539
        %v3542 = vsel %vm820, %v3525, 0
        %v3545 = vsel %vm820, %v3526, 0
        %3547 = vmatprep.subr.mxu0 0.0
        %3548 = vmatpush1.msra.mxu0 %v3528
        %3549 = vmatprep.subr.mxu0 0.0
        %3550 = vmatpush1.msra.mxu0 %v3529
        %3551 = vmatprep.subr.mxu0 0.0
        %3552 = vmatpush1.msra.mxu0 %v3530
        %3553 = vmatprep.subr.mxu0 0.0
        %3554 = vmatpush1.msra.mxu0 %v3531
        %3555 = vmatprep.subr.mxu0 0.0
        %3556 = vmatpush1.msra.mxu0 %v3532
        %3557 = vmatprep.subr.mxu0 0.0
        %3558 = vmatpush1.msra.mxu0 %v3533
        %3559 = vmatprep.subr.mxu0 0.0
        %3560 = vmatpush1.msra.mxu0 %v3534
        %3561 = vmatprep.subr.mxu0 0.0
        %3562 = vmatpush1.msra.mxu0 %v3535
        %3563 = vmatprep.subr.mxu0 0.0
        %3564 = vmatpush1.msra.mxu0 0.0
        %3565 = vmatprep.subr.mxu0 0.0
        %3566 = vmatpush1.msra.mxu0 0.0
        %3567 = vmatprep.subr.mxu0 0.0
        %3568 = vmatpush1.msra.mxu0 0.0
        %3569 = vmatprep.subr.mxu0 0.0
        %3570 = vmatpush1.msra.mxu0 0.0
        %3571 = vmatprep.subr.mxu0 0.0
        %3572 = vmatpush1.msra.mxu0 0.0
        %3573 = vmatprep.subr.mxu0 0.0
        %3574 = vmatpush1.msra.mxu0 0.0
        %3575 = vmatprep.subr.mxu0 0.0
        %3576 = vmatpush1.msra.mxu0 0.0
        %3577 = vmatprep.subr.mxu0 0.0
        %3578 = vmatpush1.msra.mxu0 0.0
        %3579 = vmatprep.subr.mxu0 0.0
        %3580 = vmatpush1.msra.mxu0 0.0
        %3581 = vmatprep.subr.mxu0 0.0
        %3582 = vmatpush1.msra.mxu0 0.0
        %3583 = vmatprep.subr.mxu0 0.0
        %3584 = vmatpush1.msra.mxu0 0.0
        %3585 = vmatprep.subr.mxu0 0.0
        %3586 = vmatpush1.msra.mxu0 0.0
        %3587 = vmatprep.subr.mxu0 0.0
        %3588 = vmatpush1.msra.mxu0 0.0
        %3589 = vmatprep.subr.mxu0 0.0
        %3590 = vmatpush1.msra.mxu0 0.0
        %3591 = vmatprep.subr.mxu0 0.0
        %3592 = vmatpush1.msra.mxu0 0.0
        %3593 = vmatprep.subr.mxu0 0.0
        %3594 = vmatpush1.msra.mxu0 0.0
        %3595 = vmatprep.subr.mxu0 0.0
        %3596 = vmatpush1.msra.mxu0 0.0
        %3597 = vmatprep.subr.mxu0 0.0
        %3598 = vmatpush1.msra.mxu0 0.0
        %3599 = vmatprep.subr.mxu0 0.0
        %3600 = vmatpush1.msra.mxu0 0.0
        %3601 = vmatprep.subr.mxu0 0.0
        %3602 = vmatpush1.msra.mxu0 0.0
        %3603 = vmatprep.subr.mxu0 0.0
        %3604 = vmatpush1.msra.mxu0 0.0
        %3605 = vmatprep.subr.mxu0 0.0
        %3606 = vmatpush1.msra.mxu0 0.0
        %3607 = vmatprep.subr.mxu0 0.0
        %3608 = vmatpush1.msra.mxu0 0.0
        %3609 = vmatprep.subr.mxu0 0.0
        %3610 = vmatpush1.msra.mxu0 0.0
        %3611 = vmatprep.mubr.f32.mxu0 0.0
        %3612 = vmatmul.mubr.f32.gmra.mrb[0].mxu0 %v3542
        %v3613 = vpop.f32.mrb[0].mxu0
        %v3614 = vadd.f32 %v3540, %v3613
        %v3615 = vpop.f32.mrb[0].mxu0
        %3616 = vmatprep.mubr.f32.mxu0 0.0
        %3617 = vmatmul.mubr.f32.gmra.mrb[0].mxu0 %v3545
        %v3618 = vpop.f32.mrb[0].mxu0
        %v3619 = vadd.f32 %v3540, %v3618
        %v3620 = vpop.f32.mrb[0].mxu0
        %3621 = vdwg.mxu0
        %s3622 = scalar_lea.vmem [#allocation12], 576
        %v3623 = vld [vmem:[%s3622] sm:$0xff]
        %v3624 = vld [vmem:[%s3622 + $0x8] sm:$0xff]
        %v3625 = vld [vmem:[%s3622 + $0x10] sm:$0xff]
        %v3626 = vld [vmem:[%s3622 + $0x18] sm:$0xff]
        %v3627 = vld [vmem:[%s3622 + $0x20] sm:$0xff]
        %v3628 = vld [vmem:[%s3622 + $0x28] sm:$0xff]
        %v3629 = vld [vmem:[%s3622 + $0x30] sm:$0xff]
        %v3630 = vld [vmem:[%s3622 + $0x38] sm:$0xff]
        %s3631 = scalar_lea.vmem [#allocation12], 640
        %v3632 = vld [vmem:[%s3631] sm:$0xff]
        %v3633 = vld [vmem:[%s3631 + $0x8] sm:$0xff]
        %v3634 = vld [vmem:[%s3631 + $0x10] sm:$0xff]
        %v3635 = vld [vmem:[%s3631 + $0x18] sm:$0xff]
        %v3636 = vld [vmem:[%s3631 + $0x20] sm:$0xff]
        %v3637 = vld [vmem:[%s3631 + $0x28] sm:$0xff]
        %v3638 = vld [vmem:[%s3631 + $0x30] sm:$0xff]
        %v3639 = vld [vmem:[%s3631 + $0x38] sm:$0xff]
        %v3641 = vsel %vm820, %v3614, 0
        %v3644 = vsel %vm820, %v3619, 0
        %3646 = vmatprep.subr.mxu0 0.0
        %3647 = vmatpush1.msra.mxu0 %v3632
        %3648 = vmatprep.subr.mxu0 0.0
        %3649 = vmatpush1.msra.mxu0 %v3633
        %3650 = vmatprep.subr.mxu0 0.0
        %3651 = vmatpush1.msra.mxu0 %v3634
        %3652 = vmatprep.subr.mxu0 0.0
        %3653 = vmatpush1.msra.mxu0 %v3635
        %3654 = vmatprep.subr.mxu0 0.0
        %3655 = vmatpush1.msra.mxu0 %v3636
        %3656 = vmatprep.subr.mxu0 0.0
        %3657 = vmatpush1.msra.mxu0 %v3637
        %3658 = vmatprep.subr.mxu0 0.0
        %3659 = vmatpush1.msra.mxu0 %v3638
        %3660 = vmatprep.subr.mxu0 0.0
        %3661 = vmatpush1.msra.mxu0 %v3639
        %3662 = vmatprep.subr.mxu0 0.0
        %3663 = vmatpush1.msra.mxu0 0.0
        %3664 = vmatprep.subr.mxu0 0.0
        %3665 = vmatpush1.msra.mxu0 0.0
        %3666 = vmatprep.subr.mxu0 0.0
        %3667 = vmatpush1.msra.mxu0 0.0
        %3668 = vmatprep.subr.mxu0 0.0
        %3669 = vmatpush1.msra.mxu0 0.0
        %3670 = vmatprep.subr.mxu0 0.0
        %3671 = vmatpush1.msra.mxu0 0.0
        %3672 = vmatprep.subr.mxu0 0.0
        %3673 = vmatpush1.msra.mxu0 0.0
        %3674 = vmatprep.subr.mxu0 0.0
        %3675 = vmatpush1.msra.mxu0 0.0
        %3676 = vmatprep.subr.mxu0 0.0
        %3677 = vmatpush1.msra.mxu0 0.0
        %3678 = vmatprep.subr.mxu0 0.0
        %3679 = vmatpush1.msra.mxu0 0.0
        %3680 = vmatprep.subr.mxu0 0.0
        %3681 = vmatpush1.msra.mxu0 0.0
        %3682 = vmatprep.subr.mxu0 0.0
        %3683 = vmatpush1.msra.mxu0 0.0
        %3684 = vmatprep.subr.mxu0 0.0
        %3685 = vmatpush1.msra.mxu0 0.0
        %3686 = vmatprep.subr.mxu0 0.0
        %3687 = vmatpush1.msra.mxu0 0.0
        %3688 = vmatprep.subr.mxu0 0.0
        %3689 = vmatpush1.msra.mxu0 0.0
        %3690 = vmatprep.subr.mxu0 0.0
        %3691 = vmatpush1.msra.mxu0 0.0
        %3692 = vmatprep.subr.mxu0 0.0
        %3693 = vmatpush1.msra.mxu0 0.0
        %3694 = vmatprep.subr.mxu0 0.0
        %3695 = vmatpush1.msra.mxu0 0.0
        %3696 = vmatprep.subr.mxu0 0.0
        %3697 = vmatpush1.msra.mxu0 0.0
        %3698 = vmatprep.subr.mxu0 0.0
        %3699 = vmatpush1.msra.mxu0 0.0
        %3700 = vmatprep.subr.mxu0 0.0
        %3701 = vmatpush1.msra.mxu0 0.0
        %3702 = vmatprep.subr.mxu0 0.0
        %3703 = vmatpush1.msra.mxu0 0.0
        %3704 = vmatprep.subr.mxu0 0.0
        %3705 = vmatpush1.msra.mxu0 0.0
        %3706 = vmatprep.subr.mxu0 0.0
        %3707 = vmatpush1.msra.mxu0 0.0
        %3708 = vmatprep.subr.mxu0 0.0
        %3709 = vmatpush1.msra.mxu0 0.0
        %3710 = vmatprep.mubr.f32.mxu0 0.0
        %3711 = vmatmul.mubr.f32.gmra.mrb[0].mxu0 %v3641
        %v3712 = vpop.f32.mrb[0].mxu0
        %v3713 = vadd.f32 0.0, %v3712
        %v3714 = vpop.f32.mrb[0].mxu0
        %3715 = vmatprep.mubr.f32.mxu0 0.0
        %3716 = vmatmul.mubr.f32.gmra.mrb[0].mxu0 %v3644
        %v3717 = vpop.f32.mrb[0].mxu0
        %v3718 = vadd.f32 0.0, %v3717
        %v3719 = vpop.f32.mrb[0].mxu0
        %3720 = vdwg.mxu0
        %v3722 = vsel %vm820, %v3421, 0
        %v3725 = vsel %vm820, %v3422, 0
        %3727 = vmatprep.subr.mxu0 0.0
        %3728 = vmatpush1.msra.mxu0 %v3623
        %3729 = vmatprep.subr.mxu0 0.0
        %3730 = vmatpush1.msra.mxu0 %v3624
        %3731 = vmatprep.subr.mxu0 0.0
        %3732 = vmatpush1.msra.mxu0 %v3625
        %3733 = vmatprep.subr.mxu0 0.0
        %3734 = vmatpush1.msra.mxu0 %v3626
        %3735 = vmatprep.subr.mxu0 0.0
        %3736 = vmatpush1.msra.mxu0 %v3627
        %3737 = vmatprep.subr.mxu0 0.0
        %3738 = vmatpush1.msra.mxu0 %v3628
        %3739 = vmatprep.subr.mxu0 0.0
        %3740 = vmatpush1.msra.mxu0 %v3629
        %3741 = vmatprep.subr.mxu0 0.0
        %3742 = vmatpush1.msra.mxu0 %v3630
        %3743 = vmatprep.subr.mxu0 0.0
        %3744 = vmatpush1.msra.mxu0 0.0
        %3745 = vmatprep.subr.mxu0 0.0
        %3746 = vmatpush1.msra.mxu0 0.0
        %3747 = vmatprep.subr.mxu0 0.0
        %3748 = vmatpush1.msra.mxu0 0.0
        %3749 = vmatprep.subr.mxu0 0.0
        %3750 = vmatpush1.msra.mxu0 0.0
        %3751 = vmatprep.subr.mxu0 0.0
        %3752 = vmatpush1.msra.mxu0 0.0
        %3753 = vmatprep.subr.mxu0 0.0
        %3754 = vmatpush1.msra.mxu0 0.0
        %3755 = vmatprep.subr.mxu0 0.0
        %3756 = vmatpush1.msra.mxu0 0.0
        %3757 = vmatprep.subr.mxu0 0.0
        %3758 = vmatpush1.msra.mxu0 0.0
        %3759 = vmatprep.subr.mxu0 0.0
        %3760 = vmatpush1.msra.mxu0 0.0
        %3761 = vmatprep.subr.mxu0 0.0
        %3762 = vmatpush1.msra.mxu0 0.0
        %3763 = vmatprep.subr.mxu0 0.0
        %3764 = vmatpush1.msra.mxu0 0.0
        %3765 = vmatprep.subr.mxu0 0.0
        %3766 = vmatpush1.msra.mxu0 0.0
        %3767 = vmatprep.subr.mxu0 0.0
        %3768 = vmatpush1.msra.mxu0 0.0
        %3769 = vmatprep.subr.mxu0 0.0
        %3770 = vmatpush1.msra.mxu0 0.0
        %3771 = vmatprep.subr.mxu0 0.0
        %3772 = vmatpush1.msra.mxu0 0.0
        %3773 = vmatprep.subr.mxu0 0.0
        %3774 = vmatpush1.msra.mxu0 0.0
        %3775 = vmatprep.subr.mxu0 0.0
        %3776 = vmatpush1.msra.mxu0 0.0
        %3777 = vmatprep.subr.mxu0 0.0
        %3778 = vmatpush1.msra.mxu0 0.0
        %3779 = vmatprep.subr.mxu0 0.0
        %3780 = vmatpush1.msra.mxu0 0.0
        %3781 = vmatprep.subr.mxu0 0.0
        %3782 = vmatpush1.msra.mxu0 0.0
        %3783 = vmatprep.subr.mxu0 0.0
        %3784 = vmatpush1.msra.mxu0 0.0
        %3785 = vmatprep.subr.mxu0 0.0
        %3786 = vmatpush1.msra.mxu0 0.0
        %3787 = vmatprep.subr.mxu0 0.0
        %3788 = vmatpush1.msra.mxu0 0.0
        %3789 = vmatprep.subr.mxu0 0.0
        %3790 = vmatpush1.msra.mxu0 0.0
        %3791 = vmatprep.mubr.f32.mxu0 0.0
        %3792 = vmatmul.mubr.f32.gmra.mrb[0].mxu0 %v3722
        %v3793 = vpop.f32.mrb[0].mxu0
        %v3794 = vadd.f32 %v3713, %v3793
        %v3795 = vpop.f32.mrb[0].mxu0
        %3796 = vmatprep.mubr.f32.mxu0 0.0
        %3797 = vmatmul.mubr.f32.gmra.mrb[0].mxu0 %v3725
        %v3798 = vpop.f32.mrb[0].mxu0
        %v3799 = vadd.f32 %v3718, %v3798
        %v3800 = vpop.f32.mrb[0].mxu0
        %3801 = vdwg.mxu0
        %v3802 = vld [vmem:[#allocation11 + $0x3c] sm:$0x1]
        %v3803 = vlaneseq
        %v3804 = vshrl.u32 %v3803, 7
        %v3805 = vsub.s32 0, %v3804
        %v3806 = vrot.slane %v3802, %v3805
        %v3807 = vadd.f32 %v3794, %v3806
        %v3808 = vadd.f32 %v3799, %v3806
        %v3809 = vmul.f32 %v3807, 0.5
        %v3810 = vmul.f32 %v3808, 0.5
        %v3811 = vmul.f32 %v3807, 0.70710677
        %v3812 = vmul.f32 %v3808, 0.70710677
        %v3813 = verf.f32.pop %v3811
        %v3814 = verf.f32.pop %v3812
        %v3815 = vadd.f32 %v3813, 1.0
        %v3816 = vadd.f32 %v3814, 1.0
        %v3817 = vmul.f32 %v3809, %v3815
        %v3818 = vmul.f32 %v3810, %v3816
        %v3819 = vld [vmem:[#allocation11 + $0x3d] sm:$0x1]
        %v3820 = vld [vmem:[#allocation11 + $0x3e] sm:$0x1]
        %v3821 = vsel %vm820, %v3817, 0.0
        %3822 = vadd.xlane.f32.xlu0 %v3821
        %v3823 = vpop.xlane.xlu0 %3822
        %v3824 = vsel %vm820, %v3818, 0.0
        %3825 = vadd.xlane.f32.xlu0 %v3824
        %v3826 = vpop.xlane.xlu0 %3825
        %v3827 = vmul.f32 %v3823, %v827
        %v3828 = vmul.f32 %v3826, %v827
        %v3829 = vsub.f32 %v3817, %v3827
        %v3830 = vsub.f32 %v3818, %v3828
        %v3831 = vmul.f32 %v3829, %v3829
        %v3832 = vmul.f32 %v3830, %v3830
        %v3833 = vsel %vm820, %v3831, 0.0
        %3834 = vadd.xlane.f32.xlu0 %v3833
        %v3835 = vpop.xlane.xlu0 %3834
        %v3836 = vsel %vm820, %v3832, 0.0
        %3837 = vadd.xlane.f32.xlu0 %v3836
        %v3838 = vpop.xlane.xlu0 %3837
        %v3839 = vmul.f32 %v3835, %v827
        %v3840 = vmul.f32 %v3838, %v827
        %v3841 = vadd.f32 %v3839, 1e-05
        %v3842 = vadd.f32 %v3840, 1e-05
        %v3843 = vrsqrt.pop %v3841
        %v3844 = vrsqrt.pop %v3842
        %v3845 = vmul.f32 %v3829, %v3843
        %v3846 = vmul.f32 %v3830, %v3844
        %v3847 = vlaneseq
        %v3848 = vshrl.u32 %v3847, 7
        %v3849 = vsub.s32 0, %v3848
        %v3850 = vrot.slane %v3819, %v3849
        %v3851 = vmul.f32 %v3845, %v3850
        %v3852 = vmul.f32 %v3846, %v3850
        %v3853 = vlaneseq
        %v3854 = vshrl.u32 %v3853, 7
        %v3855 = vsub.s32 0, %v3854
        %v3856 = vrot.slane %v3820, %v3855
        %v3857 = vadd.f32 %v3851, %v3856
        %v3858 = vadd.f32 %v3852, %v3856
        %3859 = vst.msk [vmem:[%s475] sm:$0xff] %vm820, %v3857
        %3860 = vst.msk [vmem:[%s475 + $0x8] sm:$0xff] %vm820, %v3858
        %s3861 = sand.u32 %s260, 1
        %s3862 = scalar_lea.sflag [#allocation8], %s3861
        %s3863 = sand.u32 %s260, 1
        %s3864 = smul.addr %s3863, 16
        %s3865 = scalar_lea.vmem [#allocation17], %s3864
        // Predicated region
        $region92: #{tpu_custom_call.1} parent=59 // pred_check
          %p3866 = pneg %p270
        $region93: #{tpu_custom_call.1} parent=59 // pred_check_branch
          %3868 = sbr.rel (%p3866) target = $region95
        $region94: #{tpu_custom_call.1} parent=59 // pred_region
          %s3870 = ssub.s32 256, 256
          %3871 = vsyncadd %s3862, %s3870
          %s3872 = smul.addr %s32, 2
          %s3873 = smul.addr %s3872, 128
          %s3874 = scalar_lea.hbm %s10, %s3873
          %s3875 = sshll.u32 %s3865, 4
          %s3876 = int_to_ptr.vmem [resolvable:$true] %s3875
          %3881 = dma.vmem_to_hbm [thread:$0]  %s3876, 256, %s3874, %s3862, 128, 128, 8
        $region95: #{tpu_custom_call.1} parent=59 // pred_fallthru
          _
      $region60: #{tpu_custom_call.1} parent=5 // pred_fallthru
        _
      %p3882 = scmp.le.s32.totalorder 2, %s27
      // Predicated region
      $region96: #{tpu_custom_call.1} parent=5 // pred_check
        %p3883 = pneg %p3882
      $region97: #{tpu_custom_call.1} parent=5 // pred_check_branch
        %3885 = sbr.rel (%p3883) target = $region99
      $region98: #{tpu_custom_call.1} parent=5 // pred_region
        %s3886 = ssub.s32 %s27, 2
        // Predicated region
        $region100: #{tpu_custom_call.1} parent=98 // pred_check
          %p3887 = pneg %p276
        $region101: #{tpu_custom_call.1} parent=98 // pred_check_branch
          %3889 = sbr.rel (%p3887) target = $region103
        $region102: #{tpu_custom_call.1} parent=98 // pred_region
          %s3890 = sand.u32 %s261, 1
          %s3891 = scalar_lea.sflag [#allocation8], %s3890
          %s3892 = sand.u32 %s261, 1
          %s3893 = smul.addr %s3892, 16
          %s3894 = scalar_lea.vmem [#allocation17], %s3893
          %3895 = dma.done %s3891, 256
        $region103: #{tpu_custom_call.1} parent=98 // pred_fallthru
          _
      $region99: #{tpu_custom_call.1} parent=5 // pred_fallthru
        _
    $region6: #{tpu_custom_call.1} parent=1 // loop_footer
      %s31 = sadd.s32 1, %s27
    $region7: #{tpu_custom_call.1} parent=1 // loop_footer_branch
      %26 = sbr.rel target = $region3
    $region8: #{tpu_custom_call.1} parent=1 // loop_exit
      _
    %3896 = vsyncpa [#allocation7], 1
    %s3897 = scalar_lea.sflag [#allocation7], 1
    %3898 = vsyncpa %s3897, 1
    %3899 = vsyncpa [#allocation10], 1
    %s3900 = scalar_lea.sflag [#allocation10], 1
    %3901 = vsyncpa %s3900, 1
    %3902 = vsyncpa [#allocation13], 1
    %3903 = vsyncpa [#allocation16], 1
    %3904 = vsyncpa [#allocation8], 1
    %s3905 = scalar_lea.sflag [#allocation8], 1
    %3906 = vsyncpa %s3905, 1

</llo_original>
